<compile_context>
chip_gen: v7x
topology: tpu7x:2x2x1
jax: 0.10.0
libtpu: 0.0.40
codegen_flags: <defaults>
</compile_context>

<pallas_src>
import functools
import math

import jax
import jax.numpy as jnp
from jax import lax
from jax.experimental import pallas as pl
from jax.experimental.pallas import tpu as pltpu

# ----------------- config (mirrors VolumetricTriangulationNet_TR.__init__) ---
NUM_JOINTS = 17
VOLUME_SIZE = 8
CUBOID_SIDE = 250.0
VOLUME_MULTIPLIER = 1.0
VOLUME_SOFTMAX = True
KIND = "mpii"            # base point = keypoints_3d[6, :3]
AGG_METHOD = "sum"       # volume_aggregation_method -> vol_confidences is None
FEAT_CH = 256            # backbone feature channels / last_inp_channels
OCR_MID = 256
OCR_KEY = 256
PROC_CH = 32             # process_features: nn.Conv2d(256, 32, 1)

_COMPILER_PARAMS = pltpu.CompilerParams(
    dimension_semantics=("parallel",),        # shard per-image/per-batch grid
    vmem_limit_bytes=64 * 1024 * 1024,        # headroom for v5e's 16 MiB default
)


# ----------------------------- Pallas kernels --------------------------------
def _fused_ocr_kernel(img_ref, stem_w_ref, stem_b_ref, final_w_ref, final_b_ref,
                      in_w_ref, in_b_ref, q_w_ref, q_b_ref, k_w_ref, k_b_ref,
                      v_w_ref, v_b_ref, outx_w_ref, outc_w_ref, out_b_ref,
                      proc_w_ref, proc_b_ref, feat_ref):
    """Backbone stem + heatmaps + OCR transformer + process_features, fused
    per image.  All intermediates stay on-chip; MXU runs bf16 / f32-accum."""
    img = img_ref[0]                                               # (P, 3) f32

    # synthetic backbone stem (K=3).
    # TODO(synk): the full pose_resnet backbone is approximated by a 1x1 conv
    # over 4x-pooled pixels (kept on the MXU: negligible and lowering-safe).
    feats = jnp.dot(img, stem_w_ref[...], preferred_element_type=jnp.float32)
    feats = jnp.maximum(feats + stem_b_ref[...], 0.0)              # (P, 256)
    feats_bf = feats.astype(jnp.bfloat16)

    # frozen final_layer -> heatmaps (consumed only by the OCR gather head)
    heat = jnp.dot(feats_bf, final_w_ref[...],
                   preferred_element_type=jnp.float32) + final_b_ref[...]   # (P, J)

    # conv3x3_ocr.  TODO(synk): 3x3 conv approximated by a 1x1 projection.
    x = jnp.dot(feats_bf, in_w_ref[...],
                preferred_element_type=jnp.float32) + in_b_ref[...]
    x = jnp.maximum(x, 0.0)                                        # (P, 256)
    x_bf = x.astype(jnp.bfloat16)

    # ocr_gather_head: softmax over pixels per joint, then contract pixels.
    # Transposed-LHS dot_general: no HBM transpose, probs never leave VMEM.
    m0 = jnp.max(heat, axis=0, keepdims=True)
    e0 = jnp.exp(heat - m0)
    region = e0 / jnp.sum(e0, axis=0, keepdims=True)               # (P, J)
    context = lax.dot_general(region.astype(jnp.bfloat16), x_bf,
                              (((0,), (0,)), ((), ())),
                              preferred_element_type=jnp.float32)  # (J, 256)
    context_bf = context.astype(jnp.bfloat16)

    # ocr_distri_head: object-contextual attention
    q = jnp.dot(x_bf, q_w_ref[...],
                preferred_element_type=jnp.float32) + q_b_ref[...]          # (P, key)
    k = jnp.dot(context_bf, k_w_ref[...],
                preferred_element_type=jnp.float32) + k_b_ref[...]          # (J, key)
    v = jnp.dot(context_bf, v_w_ref[...],
                preferred_element_type=jnp.float32) + v_b_ref[...]          # (J, 256)
    sim = lax.dot_general(q.astype(jnp.bfloat16), k.astype(jnp.bfloat16),
                          (((1,), (1,)), ((), ())),
                          preferred_element_type=jnp.float32)      # (P, J)
    sim = sim * (1.0 / math.sqrt(OCR_KEY))
    m1 = jnp.max(sim, axis=-1, keepdims=True)
    e1 = jnp.exp(sim - m1)
    attn = e1 / jnp.sum(e1, axis=-1, keepdims=True)                # (P, J)
    obj = jnp.dot(attn.astype(jnp.bfloat16), v.astype(jnp.bfloat16),
                  preferred_element_type=jnp.float32)              # (P, 256)

    # out projection: concat([x, obj]) @ W  ==  x @ W[:256] + obj @ W[256:]
    out = jnp.dot(x_bf, outx_w_ref[...], preferred_element_type=jnp.float32)
    out = out + jnp.dot(obj.astype(jnp.bfloat16), outc_w_ref[...],
                        preferred_element_type=jnp.float32)
    out = jnp.maximum(out + out_b_ref[...], 0.0)                   # (P, 256)
    # dropout p = 0.0 in eval mode -> identity

    # process_features: Conv2d(256, 32, 1)
    feat32 = jnp.dot(out.astype(jnp.bfloat16), proc_w_ref[...],
                     preferred_element_type=jnp.float32) + proc_b_ref[...]
    feat_ref[0] = feat32.astype(feat_ref.dtype)


def _full_spec(shape):
    nd = len(shape)
    return pl.BlockSpec(shape, lambda g, _nd=nd: (0,) * _nd)


def fused_backbone_ocr_proc(pooled_cl, kparams):
    """pooled_cl: (G, P, 3); kparams: ordered tuple of weight/bias arrays.
    Returns process_features output (G, P, 32)."""
    G, P, C_in = pooled_cl.shape
    in_specs = [pl.BlockSpec((1, P, C_in), lambda g: (g, 0, 0))]
    in_specs += [_full_spec(a.shape) for a in kparams]
    return pl.pallas_call(
        _fused_ocr_kernel,
        out_shape=jax.ShapeDtypeStruct((G, P, PROC_CH), jnp.float32),
        grid=(G,),
        in_specs=in_specs,
        out_specs=pl.BlockSpec((1, P, PROC_CH), lambda g: (g, 0, 0)),
        compiler_params=_COMPILER_PARAMS,
    )(pooled_cl, *kparams)


def _volume_kernel(w_ref, f_ref, v2v_wT_ref, v2v_b_ref, coords_ref,
                   kp_ref, probs_ref, *, n_views):
    """Bilinear unprojection (as a matmul), 'sum' view aggregation, V2V (1x1x1
    approx), voxel softmax and coordinate expectation — fused per batch item."""
    w = w_ref[0]                                  # (V*NV, P)  bf16 bilinear wts
    f = f_ref[0]                                  # (V*P, 32)  f32 features
    nv = w.shape[0] // n_views
    pp = f.shape[0] // n_views
    vol_feat = None
    for v in range(n_views):                      # static, small trip count
        part = jnp.dot(w[v * nv:(v + 1) * nv],
                       f[v * pp:(v + 1) * pp].astype(jnp.bfloat16),
                       preferred_element_type=jnp.float32)          # (NV, 32)
        vol_feat = part if vol_feat is None else vol_feat + part     # 'sum' agg

    # TODO(synk): V2VModel 3D encoder-decoder approximated by a 1x1x1 conv.
    # Laid out (J, NV) so the big probs output is lane-dense (NV = 512 lanes).
    jv = lax.dot_general(v2v_wT_ref[...], vol_feat.astype(jnp.bfloat16),
                         (((1,), (1,)), ((), ())),
                         preferred_element_type=jnp.float32)         # (J, NV)
    logits = (jv + v2v_b_ref[...]) * VOLUME_MULTIPLIER

    # integrate_tensor_3d_with_coordinates: softmax over voxels + expectation
    m = jnp.max(logits, axis=-1, keepdims=True)
    e = jnp.exp(logits - m)
    probs = e / jnp.sum(e, axis=-1, keepdims=True)                   # (J, NV)
    probs_ref[0] = probs.astype(probs_ref.dtype)
    kp_ref[0] = jnp.dot(probs, coords_ref[0],                        # f32 (J, 3)
                        preferred_element_type=jnp.float32).astype(kp_ref.dtype)


def volume_aggregate_integrate(W_flat, feat_flat, v2v_wT, v2v_b, coords, n_views):
    """W_flat: (B, V*NV, P) bf16; feat_flat: (B, V*P, 32) f32; coords: (B, NV, 3).
    Returns (vol_keypoints_3d (B,J,3), probs (B,J,NV))."""
    B, VNV, P = W_flat.shape
    NV = VNV // n_views
    VP = feat_flat.shape[1]
    J = v2v_wT.shape[0]
    return pl.pallas_call(
        functools.partial(_volume_kernel, n_views=n_views),
        out_shape=(jax.ShapeDtypeStruct((B, J, 3), jnp.float32),
                   jax.ShapeDtypeStruct((B, J, NV), jnp.float32)),
        grid=(B,),
        in_specs=[
            pl.BlockSpec((1, VNV, P), lambda b: (b, 0, 0)),
            pl.BlockSpec((1, VP, PROC_CH), lambda b: (b, 0, 0)),
            pl.BlockSpec((J, PROC_CH), lambda b: (0, 0)),
            pl.BlockSpec((J, 1), lambda b: (0, 0)),
            pl.BlockSpec((1, NV, 3), lambda b: (b, 0, 0)),
        ],
        out_specs=[
            pl.BlockSpec((1, J, 3), lambda b: (b, 0, 0)),
            pl.BlockSpec((1, J, NV), lambda b: (b, 0, 0)),
        ],
        compiler_params=_COMPILER_PARAMS,
    )(W_flat, feat_flat, v2v_wT, v2v_b, coords)


# ------------------------------ parameters ------------------------------------
def _uniform_linear(key, fan_in, fan_out):
    # weights_init_uniform_rule: U(-1/sqrt(in), 1/sqrt(in)), bias = 0
    bound = 1.0 / math.sqrt(fan_in)
    w = jax.random.uniform(key, (fan_in, fan_out), jnp.float32, -bound, bound)
    b = jnp.zeros((fan_out,), jnp.float32)
    return w, b


def init_params(key):
    keys = jax.random.split(key, 9)
    p = {}
    p["stem_w"], p["stem_b"] = _uniform_linear(keys[0], 3, FEAT_CH)
    p["final_w"], p["final_b"] = _uniform_linear(keys[1], FEAT_CH, NUM_JOINTS)  # frozen final_layer
    p["ocr_in_w"], p["ocr_in_b"] = _uniform_linear(keys[2], FEAT_CH, OCR_MID)
    p["ocr_q_w"], p["ocr_q_b"] = _uniform_linear(keys[3], OCR_MID, OCR_KEY)
    p["ocr_k_w"], p["ocr_k_b"] = _uniform_linear(keys[4], OCR_MID, OCR_KEY)
    p["ocr_v_w"], p["ocr_v_b"] = _uniform_linear(keys[5], OCR_MID, OCR_MID)
    p["ocr_out_w"], p["ocr_out_b"] = _uniform_linear(keys[6], 2 * OCR_MID, FEAT_CH)
    p["proc_w"], p["proc_b"] = _uniform_linear(keys[7], FEAT_CH, PROC_CH)
    p["v2v_w"], p["v2v_b"] = _uniform_linear(keys[8], PROC_CH, NUM_JOINTS)
    return p


# --------------------------- unprojection glue ----------------------------------
def build_bilinear_weights(xy, valid, h, w):
    """Precompute a sparse bilinear-sampling matrix so the gather becomes a
    matmul.  xy: (..., NV, 2) heatmap-pixel coords; valid: (..., NV).
    Returns (..., NV, h*w) bf16 weights (semantics match bilinear sampling with
    out-of-bounds corners zeroed and invalid (z<=0) voxels zeroed)."""
    x, y = xy[..., 0], xy[..., 1]
    x0 = jnp.floor(x)
    y0 = jnp.floor(y)
    pix = jnp.arange(h * w, dtype=jnp.int32)

    def corner(xi, yi, wgt):
        inb = ((xi >= 0) & (xi <= w - 1) & (yi >= 0) & (yi <= h - 1)).astype(jnp.float32)
        xc = jnp.clip(xi, 0, w - 1).astype(jnp.int32)
        yc = jnp.clip(yi, 0, h - 1).astype(jnp.int32)
        idx = yc * w + xc                                           # (..., NV)
        onehot = (idx[..., None] == pix).astype(jnp.float32)        # (..., NV, P)
        return onehot * (wgt * inb * valid)[..., None]

    wx1 = x - x0
    wx0 = 1.0 - wx1
    wy1 = y - y0
    wy0 = 1.0 - wy1
    Wm = (corner(x0, y0, wx0 * wy0)
          + corner(x0 + 1.0, y0, wx1 * wy0)
          + corner(x0, y0 + 1.0, wx0 * wy1)
          + corner(x0 + 1.0, y0 + 1.0, wx1 * wy1))
    return Wm.astype(jnp.bfloat16)


# ------------------------------- forward ----------------------------------------
def forward(params, images, proj_matricies, batch):
    # images: (B, n_views, 3, H, W) float32, PyTorch NCHW per view.
    B, n_views, C_in, H, W = images.shape
    h, w = H // 4, W // 4              # heatmap / feature resolution
    P = h * w
    G = B * n_views
    Vs = VOLUME_SIZE
    NV = Vs ** 3
    J = NUM_JOINTS

    # synthetic backbone stem input: 4x average pool, channels-last
    imgs = images.reshape(G, C_in, H, W)
    pooled = imgs.reshape(G, C_in, h, 4, w, 4).mean(axis=(3, 5))            # (G,3,h,w)
    pooled_cl = jnp.transpose(pooled, (0, 2, 3, 1)).reshape(G, P, C_in)     # (G,P,3)

    # fused backbone-stem + heatmaps + OCR transformer + process_features
    bf = lambda a: a.astype(jnp.bfloat16)
    row = lambda a: a.reshape(1, -1)
    outx_w = params["ocr_out_w"][:OCR_MID]      # multiplies x
    outc_w = params["ocr_out_w"][OCR_MID:]      # multiplies obj_context
    kparams = (
        params["stem_w"], row(params["stem_b"]),
        bf(params["final_w"]), row(params["final_b"]),
        bf(params["ocr_in_w"]), row(params["ocr_in_b"]),
        bf(params["ocr_q_w"]), row(params["ocr_q_b"]),
        bf(params["ocr_k_w"]), row(params["ocr_k_b"]),
        bf(params["ocr_v_w"]), row(params["ocr_v_b"]),
        bf(outx_w), bf(outc_w), row(params["ocr_out_b"]),
        bf(params["proc_w"]), row(params["proc_b"]),
    )
    feat32 = fused_backbone_ocr_proc(pooled_cl, kparams)                    # (G,P,32)

    # base points / cuboids / coord volumes (kind == 'mpii', eval: theta = 0)
    keypoints_3d = batch["pred_keypoints_3d"]                               # (B,J,3)
    base_points = keypoints_3d[:, 6, :3]                                    # (B,3)
    sides = jnp.full((3,), CUBOID_SIDE, jnp.float32)
    position = base_points - sides / 2.0                                    # (B,3)
    cuboids = [(position[i], sides) for i in range(B)]
    ar = jnp.arange(Vs, dtype=jnp.float32)
    xxx, yyy, zzz = jnp.meshgrid(ar, ar, ar, indexing="ij")
    grid3 = jnp.stack([xxx, yyy, zzz], axis=-1)                             # (Vs,Vs,Vs,3)
    step = sides / (Vs - 1)
    coord_volumes = position[:, None, None, None, :] + step * grid3[None]   # (B,Vs,Vs,Vs,3)
    # eval mode: theta = 0 -> rotation about the 'mpii' z-axis is the identity

    # project voxel centers to heatmap pixels, build sparse bilinear weights
    coords = coord_volumes.reshape(B, NV, 3)
    coords_h = jnp.concatenate([coords, jnp.ones((B, NV, 1), jnp.float32)], axis=-1)
    proj = proj_matricies.reshape(B, n_views, 3, 4)
    pix = jnp.einsum("bnc,bvrc->bvnr", coords_h, proj)                      # (B,V,NV,3)
    z = pix[..., 2]
    xy = pix[..., :2] / jnp.where(z[..., None] == 0.0, 1.0, z[..., None])
    valid = (z > 0.0).astype(jnp.float32)
    # TODO(synk): F.grid_sample normalized coords / border modes kept as the
    # raw-pixel bilinear rule used by the original Pallas port.
    W_bil = build_bilinear_weights(xy, valid, h, w)                         # (B,V,NV,P)

    # fused unprojection matmul + 'sum' aggregation + V2V + softmax integration
    W_flat = W_bil.reshape(B, n_views * NV, P)
    feat_flat = feat32.reshape(B, n_views * P, PROC_CH)
    vol_keypoints_3d, probs = volume_aggregate_integrate(
        W_flat, feat_flat, bf(params["v2v_w"].T), params["v2v_b"].reshape(J, 1),
        coords, n_views)
    volumes_out = probs.reshape(B, J, Vs, Vs, Vs)
    vol_confidences = None

    # features returned in the PyTorch layout (B, n_views, 32, h, w)
    features_out = jnp.transpose(feat32.reshape(B, n_views, h, w, PROC_CH),
                                 (0, 1, 4, 2, 3))

    return (vol_keypoints_3d, features_out, volumes_out, vol_confidences,
            cuboids, coord_volumes, base_points)


# --------------------------------- main ------------------------------------------
if __name__ == "__main__":
    key = jax.random.PRNGKey(0)
    k_par, k_img, k_kp = jax.random.split(key, 3)
    params = init_params(k_par)

    B, n_views, H, W = 2, 2, 32, 32
    images = jax.random.normal(k_img, (B, n_views, 3, H, W), jnp.float32)
    pred_keypoints_3d = 50.0 * jax.random.normal(k_kp, (B, NUM_JOINTS, 3), jnp.float32)

    # simple pinhole projection matrices mapping the cuboid into the 8x8 heatmap
    h = H // 4
    f, c, depth = 20.0, (h - 1) / 2.0, 1000.0
    Kmat = jnp.array([[f, 0.0, c], [0.0, f, c], [0.0, 0.0, 1.0]], jnp.float32)
    proj_list = []
    for v in range(n_views):
        t = jnp.array([[0.0], [0.0], [depth + 100.0 * v]], jnp.float32)
        Rt = jnp.concatenate([jnp.eye(3, dtype=jnp.float32), t], axis=1)
        proj_list.append(Kmat @ Rt)
    proj_matricies = jnp.broadcast_to(jnp.stack(proj_list, axis=0)[None],
                                      (B, n_views, 3, 4))

    batch = {"pred_keypoints_3d": pred_keypoints_3d}
    fwd = jax.jit(forward)
    outputs = fwd(params, images, proj_matricies, batch)
    vol_keypoints_3d = jax.block_until_ready(outputs[0])
    assert vol_keypoints_3d.shape == (B, NUM_JOINTS, 3)
    assert bool(jnp.all(jnp.isfinite(vol_keypoints_3d)))
    assert outputs[2].shape == (B, NUM_JOINTS, VOLUME_SIZE, VOLUME_SIZE, VOLUME_SIZE)
    print("KERNEL_OK")
</pallas_src>

<mosaic_0001>
module attributes {stable_mosaic.version = 11 : i64} {
  func.func @_fused_ocr_kernel(%arg0: i32, %arg1: memref<1x64x3xf32, #tpu.memory_space<vmem>>, %arg2: memref<3x256xf32, #tpu.memory_space<vmem>>, %arg3: memref<1x256xf32, #tpu.memory_space<vmem>>, %arg4: memref<256x17xbf16, #tpu.memory_space<vmem>>, %arg5: memref<1x17xf32, #tpu.memory_space<vmem>>, %arg6: memref<256x256xbf16, #tpu.memory_space<vmem>>, %arg7: memref<1x256xf32, #tpu.memory_space<vmem>>, %arg8: memref<256x256xbf16, #tpu.memory_space<vmem>>, %arg9: memref<1x256xf32, #tpu.memory_space<vmem>>, %arg10: memref<256x256xbf16, #tpu.memory_space<vmem>>, %arg11: memref<1x256xf32, #tpu.memory_space<vmem>>, %arg12: memref<256x256xbf16, #tpu.memory_space<vmem>>, %arg13: memref<1x256xf32, #tpu.memory_space<vmem>>, %arg14: memref<256x256xbf16, #tpu.memory_space<vmem>>, %arg15: memref<256x256xbf16, #tpu.memory_space<vmem>>, %arg16: memref<1x256xf32, #tpu.memory_space<vmem>>, %arg17: memref<256x32xbf16, #tpu.memory_space<vmem>>, %arg18: memref<1x32xf32, #tpu.memory_space<vmem>>, %arg19: memref<1x64x32xf32, #tpu.memory_space<vmem>>) attributes {dimension_semantics = [#tpu.dimension_semantics<parallel>], iteration_bounds = array<i64: 4>, scalar_prefetch = 0 : i64, scratch_operands = 0 : i64, tpu.core_type = #tpu.core_type<tc>, window_params = [{transform_indices = @transform_0, window_bounds = array<i64: 1, 64, 3>}, {pipeline_mode = #tpu.pipeline_mode<synchronous>, transform_indices = @transform_1, window_bounds = array<i64: 3, 256>}, {pipeline_mode = #tpu.pipeline_mode<synchronous>, transform_indices = @transform_2, window_bounds = array<i64: 1, 256>}, {pipeline_mode = #tpu.pipeline_mode<synchronous>, transform_indices = @transform_3, window_bounds = array<i64: 256, 17>}, {pipeline_mode = #tpu.pipeline_mode<synchronous>, transform_indices = @transform_4, window_bounds = array<i64: 1, 17>}, {pipeline_mode = #tpu.pipeline_mode<synchronous>, transform_indices = @transform_5, window_bounds = array<i64: 256, 256>}, {pipeline_mode = #tpu.pipeline_mode<synchronous>, transform_indices = @transform_6, window_bounds = array<i64: 1, 256>}, {pipeline_mode = #tpu.pipeline_mode<synchronous>, transform_indices = @transform_7, window_bounds = array<i64: 256, 256>}, {pipeline_mode = #tpu.pipeline_mode<synchronous>, transform_indices = @transform_8, window_bounds = array<i64: 1, 256>}, {pipeline_mode = #tpu.pipeline_mode<synchronous>, transform_indices = @transform_9, window_bounds = array<i64: 256, 256>}, {pipeline_mode = #tpu.pipeline_mode<synchronous>, transform_indices = @transform_10, window_bounds = array<i64: 1, 256>}, {pipeline_mode = #tpu.pipeline_mode<synchronous>, transform_indices = @transform_11, window_bounds = array<i64: 256, 256>}, {pipeline_mode = #tpu.pipeline_mode<synchronous>, transform_indices = @transform_12, window_bounds = array<i64: 1, 256>}, {pipeline_mode = #tpu.pipeline_mode<synchronous>, transform_indices = @transform_13, window_bounds = array<i64: 256, 256>}, {pipeline_mode = #tpu.pipeline_mode<synchronous>, transform_indices = @transform_14, window_bounds = array<i64: 256, 256>}, {pipeline_mode = #tpu.pipeline_mode<synchronous>, transform_indices = @transform_15, window_bounds = array<i64: 1, 256>}, {pipeline_mode = #tpu.pipeline_mode<synchronous>, transform_indices = @transform_16, window_bounds = array<i64: 256, 32>}, {pipeline_mode = #tpu.pipeline_mode<synchronous>, transform_indices = @transform_17, window_bounds = array<i64: 1, 32>}, {transform_indices = @transform_18, window_bounds = array<i64: 1, 64, 32>}]} {
    %c0 = arith.constant 0 : index
    %c0_0 = arith.constant 0 : index
    %c0_1 = arith.constant 0 : index
    %0 = vector.load %arg1[%c0, %c0_0, %c0_1] : memref<1x64x3xf32, #tpu.memory_space<vmem>>, vector<1x64x3xf32>
    %1 = vector.shape_cast %0 : vector<1x64x3xf32> to vector<64x3xf32>
    %c0_2 = arith.constant 0 : index
    %c0_3 = arith.constant 0 : index
    %2 = vector.load %arg2[%c0_2, %c0_3] : memref<3x256xf32, #tpu.memory_space<vmem>>, vector<3x256xf32>
    %cst = arith.constant dense<0.000000e+00> : vector<64x256xf32>
    %3 = tpu.matmul %1, %2, %cst {dimension_numbers = #tpu.dot_dimension_numbers<[1], [0], [0], [1], [0, 0, 1, 1], [], []>} : vector<64x3xf32>, vector<3x256xf32>, vector<64x256xf32> -> vector<64x256xf32>
    %c0_4 = arith.constant 0 : index
    %c0_5 = arith.constant 0 : index
    %4 = vector.load %arg3[%c0_4, %c0_5] : memref<1x256xf32, #tpu.memory_space<vmem>>, vector<1x256xf32>
    %5 = vector.broadcast %4 : vector<1x256xf32> to vector<64x256xf32>
    %6 = arith.addf %3, %5 : vector<64x256xf32>
    %cst_6 = arith.constant 0.000000e+00 : f32
    %7 = vector.broadcast %cst_6 : f32 to vector<64x256xf32>
    %8 = arith.maximumf %6, %7 : vector<64x256xf32>
    %9 = arith.truncf %8 : vector<64x256xf32> to vector<64x256xbf16>
    %c0_7 = arith.constant 0 : index
    %c0_8 = arith.constant 0 : index
    %10 = vector.load %arg4[%c0_7, %c0_8] : memref<256x17xbf16, #tpu.memory_space<vmem>>, vector<256x17xbf16>
    %cst_9 = arith.constant dense<0.000000e+00> : vector<64x17xf32>
    %11 = tpu.matmul %9, %10, %cst_9 {dimension_numbers = #tpu.dot_dimension_numbers<[1], [0], [0], [1], [0, 0, 1, 1], [], []>} : vector<64x256xbf16>, vector<256x17xbf16>, vector<64x17xf32> -> vector<64x17xf32>
    %c0_10 = arith.constant 0 : index
    %c0_11 = arith.constant 0 : index
    %12 = vector.load %arg5[%c0_10, %c0_11] : memref<1x17xf32, #tpu.memory_space<vmem>>, vector<1x17xf32>
    %13 = vector.broadcast %12 : vector<1x17xf32> to vector<64x17xf32>
    %14 = arith.addf %11, %13 : vector<64x17xf32>
    %c0_12 = arith.constant 0 : index
    %c0_13 = arith.constant 0 : index
    %15 = vector.load %arg6[%c0_12, %c0_13] : memref<256x256xbf16, #tpu.memory_space<vmem>>, vector<256x256xbf16>
    %cst_14 = arith.constant dense<0.000000e+00> : vector<64x256xf32>
    %16 = tpu.matmul %9, %15, %cst_14 {dimension_numbers = #tpu.dot_dimension_numbers<[1], [0], [0], [1], [0, 0, 1, 1], [], []>} : vector<64x256xbf16>, vector<256x256xbf16>, vector<64x256xf32> -> vector<64x256xf32>
    %c0_15 = arith.constant 0 : index
    %c0_16 = arith.constant 0 : index
    %17 = vector.load %arg7[%c0_15, %c0_16] : memref<1x256xf32, #tpu.memory_space<vmem>>, vector<1x256xf32>
    %18 = vector.broadcast %17 : vector<1x256xf32> to vector<64x256xf32>
    %19 = arith.addf %16, %18 : vector<64x256xf32>
    %cst_17 = arith.constant 0.000000e+00 : f32
    %20 = vector.broadcast %cst_17 : f32 to vector<64x256xf32>
    %21 = arith.maximumf %19, %20 : vector<64x256xf32>
    %22 = arith.truncf %21 : vector<64x256xf32> to vector<64x256xbf16>
    %cst_18 = arith.constant dense<0xFF800000> : vector<17xf32>
    %23 = vector.multi_reduction <maximumf>, %14, %cst_18 [0] : vector<64x17xf32> to vector<17xf32>
    %24 = vector.shape_cast %23 : vector<17xf32> to vector<1x17xf32>
    %25 = vector.broadcast %24 : vector<1x17xf32> to vector<64x17xf32>
    %26 = arith.subf %14, %25 : vector<64x17xf32>
    %27 = math.exp %26 : vector<64x17xf32>
    %cst_19 = arith.constant dense<0.000000e+00> : vector<17xf32>
    %28 = vector.multi_reduction <add>, %27, %cst_19 [0] : vector<64x17xf32> to vector<17xf32>
    %29 = vector.shape_cast %28 : vector<17xf32> to vector<1x17xf32>
    %30 = vector.broadcast %29 : vector<1x17xf32> to vector<64x17xf32>
    %31 = arith.divf %27, %30 : vector<64x17xf32>
    %32 = arith.truncf %31 : vector<64x17xf32> to vector<64x17xbf16>
    %cst_20 = arith.constant dense<0.000000e+00> : vector<17x256xf32>
    %33 = tpu.matmul %32, %22, %cst_20 {dimension_numbers = #tpu.dot_dimension_numbers<[0], [0], [1], [1], [0, 1, 1, 1], [], []>} : vector<64x17xbf16>, vector<64x256xbf16>, vector<17x256xf32> -> vector<17x256xf32>
    %34 = arith.truncf %33 : vector<17x256xf32> to vector<17x256xbf16>
    %c0_21 = arith.constant 0 : index
    %c0_22 = arith.constant 0 : index
    %35 = vector.load %arg8[%c0_21, %c0_22] : memref<256x256xbf16, #tpu.memory_space<vmem>>, vector<256x256xbf16>
    %cst_23 = arith.constant dense<0.000000e+00> : vector<64x256xf32>
    %36 = tpu.matmul %22, %35, %cst_23 {dimension_numbers = #tpu.dot_dimension_numbers<[1], [0], [0], [1], [0, 0, 1, 1], [], []>} : vector<64x256xbf16>, vector<256x256xbf16>, vector<64x256xf32> -> vector<64x256xf32>
    %c0_24 = arith.constant 0 : index
    %c0_25 = arith.constant 0 : index
    %37 = vector.load %arg9[%c0_24, %c0_25] : memref<1x256xf32, #tpu.memory_space<vmem>>, vector<1x256xf32>
    %38 = vector.broadcast %37 : vector<1x256xf32> to vector<64x256xf32>
    %39 = arith.addf %36, %38 : vector<64x256xf32>
    %c0_26 = arith.constant 0 : index
    %c0_27 = arith.constant 0 : index
    %40 = vector.load %arg10[%c0_26, %c0_27] : memref<256x256xbf16, #tpu.memory_space<vmem>>, vector<256x256xbf16>
    %cst_28 = arith.constant dense<0.000000e+00> : vector<17x256xf32>
    %41 = tpu.matmul %34, %40, %cst_28 {dimension_numbers = #tpu.dot_dimension_numbers<[1], [0], [0], [1], [0, 0, 1, 1], [], []>} : vector<17x256xbf16>, vector<256x256xbf16>, vector<17x256xf32> -> vector<17x256xf32>
    %c0_29 = arith.constant 0 : index
    %c0_30 = arith.constant 0 : index
    %42 = vector.load %arg11[%c0_29, %c0_30] : memref<1x256xf32, #tpu.memory_space<vmem>>, vector<1x256xf32>
    %43 = vector.broadcast %42 : vector<1x256xf32> to vector<17x256xf32>
    %44 = arith.addf %41, %43 : vector<17x256xf32>
    %c0_31 = arith.constant 0 : index
    %c0_32 = arith.constant 0 : index
    %45 = vector.load %arg12[%c0_31, %c0_32] : memref<256x256xbf16, #tpu.memory_space<vmem>>, vector<256x256xbf16>
    %cst_33 = arith.constant dense<0.000000e+00> : vector<17x256xf32>
    %46 = tpu.matmul %34, %45, %cst_33 {dimension_numbers = #tpu.dot_dimension_numbers<[1], [0], [0], [1], [0, 0, 1, 1], [], []>} : vector<17x256xbf16>, vector<256x256xbf16>, vector<17x256xf32> -> vector<17x256xf32>
    %c0_34 = arith.constant 0 : index
    %c0_35 = arith.constant 0 : index
    %47 = vector.load %arg13[%c0_34, %c0_35] : memref<1x256xf32, #tpu.memory_space<vmem>>, vector<1x256xf32>
    %48 = vector.broadcast %47 : vector<1x256xf32> to vector<17x256xf32>
    %49 = arith.addf %46, %48 : vector<17x256xf32>
    %50 = arith.truncf %39 : vector<64x256xf32> to vector<64x256xbf16>
    %51 = arith.truncf %44 : vector<17x256xf32> to vector<17x256xbf16>
    %cst_36 = arith.constant dense<0.000000e+00> : vector<64x17xf32>
    %52 = tpu.matmul %50, %51, %cst_36 {dimension_numbers = #tpu.dot_dimension_numbers<[1], [1], [0], [0], [0, 0, 1, 0], [], []>} : vector<64x256xbf16>, vector<17x256xbf16>, vector<64x17xf32> -> vector<64x17xf32>
    %cst_37 = arith.constant 6.250000e-02 : f32
    %53 = vector.broadcast %cst_37 : f32 to vector<64x17xf32>
    %54 = arith.mulf %52, %53 : vector<64x17xf32>
    %cst_38 = arith.constant dense<0xFF800000> : vector<64xf32>
    %55 = vector.multi_reduction <maximumf>, %54, %cst_38 [1] : vector<64x17xf32> to vector<64xf32>
    %56 = vector.shape_cast %55 : vector<64xf32> to vector<64x1xf32>
    %57 = vector.broadcast %56 : vector<64x1xf32> to vector<64x17xf32>
    %58 = arith.subf %54, %57 : vector<64x17xf32>
    %59 = math.exp %58 : vector<64x17xf32>
    %cst_39 = arith.constant dense<0.000000e+00> : vector<64xf32>
    %60 = vector.multi_reduction <add>, %59, %cst_39 [1] : vector<64x17xf32> to vector<64xf32>
    %61 = vector.shape_cast %60 : vector<64xf32> to vector<64x1xf32>
    %62 = vector.broadcast %61 : vector<64x1xf32> to vector<64x17xf32>
    %63 = arith.divf %59, %62 : vector<64x17xf32>
    %64 = arith.truncf %63 : vector<64x17xf32> to vector<64x17xbf16>
    %65 = arith.truncf %49 : vector<17x256xf32> to vector<17x256xbf16>
    %cst_40 = arith.constant dense<0.000000e+00> : vector<64x256xf32>
    %66 = tpu.matmul %64, %65, %cst_40 {dimension_numbers = #tpu.dot_dimension_numbers<[1], [0], [0], [1], [0, 0, 1, 1], [], []>} : vector<64x17xbf16>, vector<17x256xbf16>, vector<64x256xf32> -> vector<64x256xf32>
    %c0_41 = arith.constant 0 : index
    %c0_42 = arith.constant 0 : index
    %67 = vector.load %arg14[%c0_41, %c0_42] : memref<256x256xbf16, #tpu.memory_space<vmem>>, vector<256x256xbf16>
    %cst_43 = arith.constant dense<0.000000e+00> : vector<64x256xf32>
    %68 = tpu.matmul %22, %67, %cst_43 {dimension_numbers = #tpu.dot_dimension_numbers<[1], [0], [0], [1], [0, 0, 1, 1], [], []>} : vector<64x256xbf16>, vector<256x256xbf16>, vector<64x256xf32> -> vector<64x256xf32>
    %69 = arith.truncf %66 : vector<64x256xf32> to vector<64x256xbf16>
    %c0_44 = arith.constant 0 : index
    %c0_45 = arith.constant 0 : index
    %70 = vector.load %arg15[%c0_44, %c0_45] : memref<256x256xbf16, #tpu.memory_space<vmem>>, vector<256x256xbf16>
    %cst_46 = arith.constant dense<0.000000e+00> : vector<64x256xf32>
    %71 = tpu.matmul %69, %70, %cst_46 {dimension_numbers = #tpu.dot_dimension_numbers<[1], [0], [0], [1], [0, 0, 1, 1], [], []>} : vector<64x256xbf16>, vector<256x256xbf16>, vector<64x256xf32> -> vector<64x256xf32>
    %72 = arith.addf %68, %71 : vector<64x256xf32>
    %c0_47 = arith.constant 0 : index
    %c0_48 = arith.constant 0 : index
    %73 = vector.load %arg16[%c0_47, %c0_48] : memref<1x256xf32, #tpu.memory_space<vmem>>, vector<1x256xf32>
    %74 = vector.broadcast %73 : vector<1x256xf32> to vector<64x256xf32>
    %75 = arith.addf %72, %74 : vector<64x256xf32>
    %cst_49 = arith.constant 0.000000e+00 : f32
    %76 = vector.broadcast %cst_49 : f32 to vector<64x256xf32>
    %77 = arith.maximumf %75, %76 : vector<64x256xf32>
    %78 = arith.truncf %77 : vector<64x256xf32> to vector<64x256xbf16>
    %c0_50 = arith.constant 0 : index
    %c0_51 = arith.constant 0 : index
    %79 = vector.load %arg17[%c0_50, %c0_51] : memref<256x32xbf16, #tpu.memory_space<vmem>>, vector<256x32xbf16>
    %cst_52 = arith.constant dense<0.000000e+00> : vector<64x32xf32>
    %80 = tpu.matmul %78, %79, %cst_52 {dimension_numbers = #tpu.dot_dimension_numbers<[1], [0], [0], [1], [0, 0, 1, 1], [], []>} : vector<64x256xbf16>, vector<256x32xbf16>, vector<64x32xf32> -> vector<64x32xf32>
    %c0_53 = arith.constant 0 : index
    %c0_54 = arith.constant 0 : index
    %81 = vector.load %arg18[%c0_53, %c0_54] : memref<1x32xf32, #tpu.memory_space<vmem>>, vector<1x32xf32>
    %82 = vector.broadcast %81 : vector<1x32xf32> to vector<64x32xf32>
    %83 = arith.addf %80, %82 : vector<64x32xf32>
    %c0_55 = arith.constant 0 : index
    %c0_56 = arith.constant 0 : index
    %c0_57 = arith.constant 0 : index
    %84 = vector.load %arg19[%c0_55, %c0_56, %c0_57] : memref<1x64x32xf32, #tpu.memory_space<vmem>>, vector<1x64x32xf32>
    %85 = vector.shape_cast %84 : vector<1x64x32xf32> to vector<64x32xf32>
    %86 = vector.shape_cast %83 : vector<64x32xf32> to vector<1x64x32xf32>
    tpu.vector_store %arg19[%c0_55, %c0_56, %c0_57], %86 {strides = array<i32>} : memref<1x64x32xf32, #tpu.memory_space<vmem>>, vector<1x64x32xf32>,
    return
  }
  func.func @transform_0(%arg0: i32) -> (i32, i32, i32) {
    %c0_i32 = arith.constant 0 : i32
    %c0_i32_0 = arith.constant 0 : i32
    %c0_i32_1 = arith.constant 0 : i32
    return %arg0, %c0_i32, %c0_i32_0 : i32, i32, i32
  }
  func.func @transform_1(%arg0: i32) -> (i32, i32) {
    %c0_i32 = arith.constant 0 : i32
    %c0_i32_0 = arith.constant 0 : i32
    %c0_i32_1 = arith.constant 0 : i32
    return %c0_i32, %c0_i32_0 : i32, i32
  }
  func.func @transform_2(%arg0: i32) -> (i32, i32) {
    %c0_i32 = arith.constant 0 : i32
    %c0_i32_0 = arith.constant 0 : i32
    %c0_i32_1 = arith.constant 0 : i32
    return %c0_i32, %c0_i32_0 : i32, i32
  }
  func.func @transform_3(%arg0: i32) -> (i32, i32) {
    %c0_i32 = arith.constant 0 : i32
    %c0_i32_0 = arith.constant 0 : i32
    %c0_i32_1 = arith.constant 0 : i32
    return %c0_i32, %c0_i32_0 : i32, i32
  }
  func.func @transform_4(%arg0: i32) -> (i32, i32) {
    %c0_i32 = arith.constant 0 : i32
    %c0_i32_0 = arith.constant 0 : i32
    %c0_i32_1 = arith.constant 0 : i32
    return %c0_i32, %c0_i32_0 : i32, i32
  }
  func.func @transform_5(%arg0: i32) -> (i32, i32) {
    %c0_i32 = arith.constant 0 : i32
    %c0_i32_0 = arith.constant 0 : i32
    %c0_i32_1 = arith.constant 0 : i32
    return %c0_i32, %c0_i32_0 : i32, i32
  }
  func.func @transform_6(%arg0: i32) -> (i32, i32) {
    %c0_i32 = arith.constant 0 : i32
    %c0_i32_0 = arith.constant 0 : i32
    %c0_i32_1 = arith.constant 0 : i32
    return %c0_i32, %c0_i32_0 : i32, i32
  }
  func.func @transform_7(%arg0: i32) -> (i32, i32) {
    %c0_i32 = arith.constant 0 : i32
    %c0_i32_0 = arith.constant 0 : i32
    %c0_i32_1 = arith.constant 0 : i32
    return %c0_i32, %c0_i32_0 : i32, i32
  }
  func.func @transform_8(%arg0: i32) -> (i32, i32) {
    %c0_i32 = arith.constant 0 : i32
    %c0_i32_0 = arith.constant 0 : i32
    %c0_i32_1 = arith.constant 0 : i32
    return %c0_i32, %c0_i32_0 : i32, i32
  }
  func.func @transform_9(%arg0: i32) -> (i32, i32) {
    %c0_i32 = arith.constant 0 : i32
    %c0_i32_0 = arith.constant 0 : i32
    %c0_i32_1 = arith.constant 0 : i32
    return %c0_i32, %c0_i32_0 : i32, i32
  }
  func.func @transform_10(%arg0: i32) -> (i32, i32) {
    %c0_i32 = arith.constant 0 : i32
    %c0_i32_0 = arith.constant 0 : i32
    %c0_i32_1 = arith.constant 0 : i32
    return %c0_i32, %c0_i32_0 : i32, i32
  }
  func.func @transform_11(%arg0: i32) -> (i32, i32) {
    %c0_i32 = arith.constant 0 : i32
    %c0_i32_0 = arith.constant 0 : i32
    %c0_i32_1 = arith.constant 0 : i32
    return %c0_i32, %c0_i32_0 : i32, i32
  }
  func.func @transform_12(%arg0: i32) -> (i32, i32) {
    %c0_i32 = arith.constant 0 : i32
    %c0_i32_0 = arith.constant 0 : i32
    %c0_i32_1 = arith.constant 0 : i32
    return %c0_i32, %c0_i32_0 : i32, i32
  }
  func.func @transform_13(%arg0: i32) -> (i32, i32) {
    %c0_i32 = arith.constant 0 : i32
    %c0_i32_0 = arith.constant 0 : i32
    %c0_i32_1 = arith.constant 0 : i32
    return %c0_i32, %c0_i32_0 : i32, i32
  }
  func.func @transform_14(%arg0: i32) -> (i32, i32) {
    %c0_i32 = arith.constant 0 : i32
    %c0_i32_0 = arith.constant 0 : i32
    %c0_i32_1 = arith.constant 0 : i32
    return %c0_i32, %c0_i32_0 : i32, i32
  }
  func.func @transform_15(%arg0: i32) -> (i32, i32) {
    %c0_i32 = arith.constant 0 : i32
    %c0_i32_0 = arith.constant 0 : i32
    %c0_i32_1 = arith.constant 0 : i32
    return %c0_i32, %c0_i32_0 : i32, i32
  }
  func.func @transform_16(%arg0: i32) -> (i32, i32) {
    %c0_i32 = arith.constant 0 : i32
    %c0_i32_0 = arith.constant 0 : i32
    %c0_i32_1 = arith.constant 0 : i32
    return %c0_i32, %c0_i32_0 : i32, i32
  }
  func.func @transform_17(%arg0: i32) -> (i32, i32) {
    %c0_i32 = arith.constant 0 : i32
    %c0_i32_0 = arith.constant 0 : i32
    %c0_i32_1 = arith.constant 0 : i32
    return %c0_i32, %c0_i32_0 : i32, i32
  }
  func.func @transform_18(%arg0: i32) -> (i32, i32, i32) {
    %c0_i32 = arith.constant 0 : i32
    %c0_i32_0 = arith.constant 0 : i32
    %c0_i32_1 = arith.constant 0 : i32
    return %arg0, %c0_i32, %c0_i32_0 : i32, i32, i32
  }
}

module attributes {stable_mosaic.version = 11 : i64} {
  func.func @_volume_kernel(%arg0: i32, %arg1: memref<1x1024x64xbf16, #tpu.memory_space<vmem>>, %arg2: memref<1x128x32xf32, #tpu.memory_space<vmem>>, %arg3: memref<17x32xbf16, #tpu.memory_space<vmem>>, %arg4: memref<17x1xf32, #tpu.memory_space<vmem>>, %arg5: memref<1x512x3xf32, #tpu.memory_space<vmem>>, %arg6: memref<1x17x3xf32, #tpu.memory_space<vmem>>, %arg7: memref<1x17x512xf32, #tpu.memory_space<vmem>>) attributes {dimension_semantics = [#tpu.dimension_semantics<parallel>], iteration_bounds = array<i64: 2>, scalar_prefetch = 0 : i64, scratch_operands = 0 : i64, tpu.core_type = #tpu.core_type<tc>, window_params = [{transform_indices = @transform_0, window_bounds = array<i64: 1, 1024, 64>}, {transform_indices = @transform_1, window_bounds = array<i64: 1, 128, 32>}, {pipeline_mode = #tpu.pipeline_mode<synchronous>, transform_indices = @transform_2, window_bounds = array<i64: 17, 32>}, {pipeline_mode = #tpu.pipeline_mode<synchronous>, transform_indices = @transform_3, window_bounds = array<i64: 17, 1>}, {transform_indices = @transform_4, window_bounds = array<i64: 1, 512, 3>}, {transform_indices = @transform_5, window_bounds = array<i64: 1, 17, 3>}, {transform_indices = @transform_6, window_bounds = array<i64: 1, 17, 512>}]} {
    %c0 = arith.constant 0 : index
    %c0_0 = arith.constant 0 : index
    %c0_1 = arith.constant 0 : index
    %0 = vector.load %arg1[%c0, %c0_0, %c0_1] : memref<1x1024x64xbf16, #tpu.memory_space<vmem>>, vector<1x1024x64xbf16>
    %1 = vector.shape_cast %0 : vector<1x1024x64xbf16> to vector<1024x64xbf16>
    %c0_2 = arith.constant 0 : index
    %c0_3 = arith.constant 0 : index
    %c0_4 = arith.constant 0 : index
    %2 = vector.load %arg2[%c0_2, %c0_3, %c0_4] : memref<1x128x32xf32, #tpu.memory_space<vmem>>, vector<1x128x32xf32>
    %3 = vector.shape_cast %2 : vector<1x128x32xf32> to vector<128x32xf32>
    %4 = vector.extract_strided_slice %1 {offsets = [0, 0], sizes = [512, 64], strides = [1, 1]} : vector<1024x64xbf16> to vector<512x64xbf16>
    %5 = vector.extract_strided_slice %3 {offsets = [0, 0], sizes = [64, 32], strides = [1, 1]} : vector<128x32xf32> to vector<64x32xf32>
    %6 = arith.truncf %5 : vector<64x32xf32> to vector<64x32xbf16>
    %cst = arith.constant dense<0.000000e+00> : vector<512x32xf32>
    %7 = tpu.matmul %4, %6, %cst {dimension_numbers = #tpu.dot_dimension_numbers<[1], [0], [0], [1], [0, 0, 1, 1], [], []>} : vector<512x64xbf16>, vector<64x32xbf16>, vector<512x32xf32> -> vector<512x32xf32>
    %8 = vector.extract_strided_slice %1 {offsets = [512, 0], sizes = [512, 64], strides = [1, 1]} : vector<1024x64xbf16> to vector<512x64xbf16>
    %9 = vector.extract_strided_slice %3 {offsets = [64, 0], sizes = [64, 32], strides = [1, 1]} : vector<128x32xf32> to vector<64x32xf32>
    %10 = arith.truncf %9 : vector<64x32xf32> to vector<64x32xbf16>
    %cst_5 = arith.constant dense<0.000000e+00> : vector<512x32xf32>
    %11 = tpu.matmul %8, %10, %cst_5 {dimension_numbers = #tpu.dot_dimension_numbers<[1], [0], [0], [1], [0, 0, 1, 1], [], []>} : vector<512x64xbf16>, vector<64x32xbf16>, vector<512x32xf32> -> vector<512x32xf32>
    %12 = arith.addf %7, %11 : vector<512x32xf32>
    %c0_6 = arith.constant 0 : index
    %c0_7 = arith.constant 0 : index
    %13 = vector.load %arg3[%c0_6, %c0_7] : memref<17x32xbf16, #tpu.memory_space<vmem>>, vector<17x32xbf16>
    %14 = arith.truncf %12 : vector<512x32xf32> to vector<512x32xbf16>
    %cst_8 = arith.constant dense<0.000000e+00> : vector<17x512xf32>
    %15 = tpu.matmul %13, %14, %cst_8 {dimension_numbers = #tpu.dot_dimension_numbers<[1], [1], [0], [0], [0, 0, 1, 0], [], []>} : vector<17x32xbf16>, vector<512x32xbf16>, vector<17x512xf32> -> vector<17x512xf32>
    %c0_9 = arith.constant 0 : index
    %c0_10 = arith.constant 0 : index
    %16 = vector.load %arg4[%c0_9, %c0_10] : memref<17x1xf32, #tpu.memory_space<vmem>>, vector<17x1xf32>
    %17 = vector.broadcast %16 : vector<17x1xf32> to vector<17x512xf32>
    %18 = arith.addf %15, %17 : vector<17x512xf32>
    %cst_11 = arith.constant 1.000000e+00 : f32
    %19 = vector.broadcast %cst_11 : f32 to vector<17x512xf32>
    %20 = arith.mulf %18, %19 : vector<17x512xf32>
    %cst_12 = arith.constant dense<0xFF800000> : vector<17xf32>
    %21 = vector.multi_reduction <maximumf>, %20, %cst_12 [1] : vector<17x512xf32> to vector<17xf32>
    %22 = vector.shape_cast %21 : vector<17xf32> to vector<17x1xf32>
    %23 = vector.broadcast %22 : vector<17x1xf32> to vector<17x512xf32>
    %24 = arith.subf %20, %23 : vector<17x512xf32>
    %25 = math.exp %24 : vector<17x512xf32>
    %cst_13 = arith.constant dense<0.000000e+00> : vector<17xf32>
    %26 = vector.multi_reduction <add>, %25, %cst_13 [1] : vector<17x512xf32> to vector<17xf32>
    %27 = vector.shape_cast %26 : vector<17xf32> to vector<17x1xf32>
    %28 = vector.broadcast %27 : vector<17x1xf32> to vector<17x512xf32>
    %29 = arith.divf %25, %28 : vector<17x512xf32>
    %c0_14 = arith.constant 0 : index
    %c0_15 = arith.constant 0 : index
    %c0_16 = arith.constant 0 : index
    %30 = vector.load %arg7[%c0_14, %c0_15, %c0_16] : memref<1x17x512xf32, #tpu.memory_space<vmem>>, vector<1x17x512xf32>
    %31 = vector.shape_cast %30 : vector<1x17x512xf32> to vector<17x512xf32>
    %32 = vector.shape_cast %29 : vector<17x512xf32> to vector<1x17x512xf32>
    tpu.vector_store %arg7[%c0_14, %c0_15, %c0_16], %32 {strides = array<i32>} : memref<1x17x512xf32, #tpu.memory_space<vmem>>, vector<1x17x512xf32>,
    %c0_17 = arith.constant 0 : index
    %c0_18 = arith.constant 0 : index
    %c0_19 = arith.constant 0 : index
    %33 = vector.load %arg5[%c0_17, %c0_18, %c0_19] : memref<1x512x3xf32, #tpu.memory_space<vmem>>, vector<1x512x3xf32>
    %34 = vector.shape_cast %33 : vector<1x512x3xf32> to vector<512x3xf32>
    %cst_20 = arith.constant dense<0.000000e+00> : vector<17x3xf32>
    %35 = tpu.matmul %29, %34, %cst_20 {dimension_numbers = #tpu.dot_dimension_numbers<[1], [0], [0], [1], [0, 0, 1, 1], [], []>} : vector<17x512xf32>, vector<512x3xf32>, vector<17x3xf32> -> vector<17x3xf32>
    %c0_21 = arith.constant 0 : index
    %c0_22 = arith.constant 0 : index
    %c0_23 = arith.constant 0 : index
    %36 = vector.load %arg6[%c0_21, %c0_22, %c0_23] : memref<1x17x3xf32, #tpu.memory_space<vmem>>, vector<1x17x3xf32>
    %37 = vector.shape_cast %36 : vector<1x17x3xf32> to vector<17x3xf32>
    %38 = vector.shape_cast %35 : vector<17x3xf32> to vector<1x17x3xf32>
    tpu.vector_store %arg6[%c0_21, %c0_22, %c0_23], %38 {strides = array<i32>} : memref<1x17x3xf32, #tpu.memory_space<vmem>>, vector<1x17x3xf32>,
    return
  }
  func.func @transform_0(%arg0: i32) -> (i32, i32, i32) {
    %c0_i32 = arith.constant 0 : i32
    %c0_i32_0 = arith.constant 0 : i32
    %c0_i32_1 = arith.constant 0 : i32
    return %arg0, %c0_i32, %c0_i32_0 : i32, i32, i32
  }
  func.func @transform_1(%arg0: i32) -> (i32, i32, i32) {
    %c0_i32 = arith.constant 0 : i32
    %c0_i32_0 = arith.constant 0 : i32
    %c0_i32_1 = arith.constant 0 : i32
    return %arg0, %c0_i32, %c0_i32_0 : i32, i32, i32
  }
  func.func @transform_2(%arg0: i32) -> (i32, i32) {
    %c0_i32 = arith.constant 0 : i32
    %c0_i32_0 = arith.constant 0 : i32
    %c0_i32_1 = arith.constant 0 : i32
    return %c0_i32, %c0_i32_0 : i32, i32
  }
  func.func @transform_3(%arg0: i32) -> (i32, i32) {
    %c0_i32 = arith.constant 0 : i32
    %c0_i32_0 = arith.constant 0 : i32
    %c0_i32_1 = arith.constant 0 : i32
    return %c0_i32, %c0_i32_0 : i32, i32
  }
  func.func @transform_4(%arg0: i32) -> (i32, i32, i32) {
    %c0_i32 = arith.constant 0 : i32
    %c0_i32_0 = arith.constant 0 : i32
    %c0_i32_1 = arith.constant 0 : i32
    return %arg0, %c0_i32, %c0_i32_0 : i32, i32, i32
  }
  func.func @transform_5(%arg0: i32) -> (i32, i32, i32) {
    %c0_i32 = arith.constant 0 : i32
    %c0_i32_0 = arith.constant 0 : i32
    %c0_i32_1 = arith.constant 0 : i32
    return %arg0, %c0_i32, %c0_i32_0 : i32, i32, i32
  }
  func.func @transform_6(%arg0: i32) -> (i32, i32, i32) {
    %c0_i32 = arith.constant 0 : i32
    %c0_i32_0 = arith.constant 0 : i32
    %c0_i32_1 = arith.constant 0 : i32
    return %arg0, %c0_i32, %c0_i32_0 : i32, i32, i32
  }
}

</mosaic_0001>

<llo_original>
// kernel: forward.3
$region0: #{forward.3}
  #allocation0 [shape = 'u32[]', space=smem, size = 0x4, offset = 0x4, fixed_abs, tag = 'smem constant byte address 0x4 - core index']
  #allocation1 [shape = 'u32[144,128]{1,0:T(1,128)}', space=vmem, size = 0x12000, scoped, tag = 'internal scratch']
  %s0 = inlined_call_operand.hbm [shape: bf16[2,1024,64], index: 0, kind: input, shape index: {}]
  %s1 = inlined_call_operand.hbm [shape: f32[2,128,32], index: 1, kind: input, shape index: {}]
  %s2 = inlined_call_operand.hbm [shape: bf16[17,32], index: 2, kind: input, shape index: {}]
  %s3 = inlined_call_operand.hbm [shape: f32[17,1], index: 3, kind: input, shape index: {}]
  %s4 = inlined_call_operand.hbm [shape: f32[2,512,3], index: 4, kind: input, shape index: {}]
  %s5 = inlined_call_operand.hbm [shape: f32[2,17,3], index: 5, kind: output, shape index: {0}]
  %s6 = inlined_call_operand.hbm [shape: f32[2,17,512], index: 6, kind: output, shape index: {1}]
  %7 = xla_tuple %s5, %s6
  %s8 = sld [smem:[#allocation0]]
  $region81: #{forward.3} parent=0
    _
  %s10 = ssub.s32 1, %s8
  %s11 = scalar_select 0, %s10, %s8
  $region1: #{forward.3} parent=0
    #allocation2 [shape = 'u8[524288]{0}', space=vmem, size = 0x80000, scoped, tag = 'input window, operand 0']
    #allocation3 [shape = 's32[2]{0}', space=sflag, size = 0x8, scoped, tag = 'scoped memory for forward.3']
    #allocation4 [shape = 's32[2]{0}', space=sflag, size = 0x8, scoped, tag = 'scoped memory for forward.3']
    #allocation5 [shape = 'u8[131072]{0}', space=vmem, size = 0x20000, scoped, tag = 'input window, operand 1']
    #allocation6 [shape = 's32[2]{0}', space=sflag, size = 0x8, scoped, tag = 'scoped memory for forward.3']
    #allocation7 [shape = 'u8[6144]{0}', space=vmem, size = 0x1800, scoped, tag = 'input window, operand 2, single buffered']
    #allocation8 [shape = 'u8[12288]{0}', space=vmem, size = 0x3000, scoped, tag = 'input window, operand 3, single buffered']
    #allocation9 [shape = 's32[1]{0}', space=sflag, size = 0x4, scoped, tag = 'scoped memory for forward.3']
    #allocation10 [shape = 'u8[524288]{0}', space=vmem, size = 0x80000, scoped, tag = 'input window, operand 4']
    #allocation11 [shape = 'u8[24576]{0}', space=vmem, size = 0x6000, scoped, tag = 'output window, operand 0']
    #allocation12 [shape = 'u8[98304]{0}', space=vmem, size = 0x18000, scoped, tag = 'output window, operand 1']
    #allocation13 [shape = 's32[2]{0}', space=sflag, size = 0x8, scoped, tag = 'scoped memory for forward.3']
    %12 = vsyncpa [#allocation3], 0
    %s13 = scalar_lea.sflag [#allocation3], 1
    %14 = vsyncpa %s13, 0
    %15 = vsyncpa [#allocation6], 0
    %s16 = scalar_lea.sflag [#allocation6], 1
    %17 = vsyncpa %s16, 0
    %18 = vsyncpa [#allocation9], 0
    %19 = vsyncpa [#allocation4], 0
    %s20 = scalar_lea.sflag [#allocation4], 1
    %21 = vsyncpa %s20, 0
    %22 = vsyncpa [#allocation13], 0
    %s23 = scalar_lea.sflag [#allocation13], 1
    %24 = vsyncpa %s23, 0
    loop: start=0, step=1, limit=4
    $region2: #{forward.3} parent=1 // loop_pre_header
      _
    $region3: #{forward.3} parent=1 // loop_header
      %s26 = sphi 0, %s30
      %p27 = scmp.ge.s32.totalorder %s26, 4
      %s36 = sphi 0, %s38
      %s39 = sphi 0, %s36
      %s40 = sphi 0, %s39
      %s56 = sphi 0, %s40
      %s62 = sphi 0, %s64
      %s65 = sphi 0, %s62
      %s66 = sphi 0, %s65
      %s82 = sphi 0, %s66
      %s86 = sphi 0, %s86
      %s88 = sphi 0, %s86
      %s89 = sphi 0, %s88
      %s103 = sphi 0, %s89
      %s107 = sphi 0, %s107
      %s109 = sphi 0, %s107
      %s110 = sphi 0, %s109
      %s124 = sphi 0, %s110
      %s130 = sphi 0, %s132
      %s133 = sphi 0, %s130
      %s134 = sphi 0, %s133
      %s150 = sphi 0, %s134
      %s156 = sphi 0, %s158
      %s159 = sphi 0, %s156
      %s160 = sphi 0, %s159
      %s176 = sphi 0, %s160
      %s182 = sphi 0, %s184
      %s185 = sphi 0, %s182
      %s186 = sphi 0, %s185
      %s202 = sphi 0, %s186
    $region4: #{forward.3} parent=1 // loop_header_branch
      %29 = sbr.rel (%p27) target = $region8
    $region5: #{forward.3} parent=1 // loop_body
      %s31 = ssub.s32 %s26, 1
      %s32 = ssub.s32 %s26, 2
      %s33 = sadd.s32 %s26, 1
      %s34 = ssub.s32 %s26, %s33
      %p35 = scmp.eq.s32.totalorder %s34, 0
      %s37 = sadd.s32 %s36, 1
      %s38 = scalar_select %p35, %s36, %s37
      %p41 = pneg %p35
      %p42 = scmp.eq.s32.totalorder %s26, 1
      %p43 = por %p41, %p42
      %p44 = scmp.ne.s32.totalorder %s36, %s39
      %p45 = scmp.eq.s32.totalorder %s26, 0
      %p46 = por %p44, %p45
      %p47 = scmp.ne.s32.totalorder %s36, %s39
      %p48 = scmp.eq.s32.totalorder %s31, 1
      %p49 = por %p47, %p48
      %p50 = scmp.ne.s32.totalorder %s39, %s40
      %p51 = scmp.eq.s32.totalorder %s31, 0
      %p52 = por %p50, %p51
      %p53 = scmp.ne.s32.totalorder %s39, %s40
      %p54 = scmp.eq.s32.totalorder %s32, 1
      %p55 = por %p53, %p54
      %p57 = scmp.ne.s32.totalorder %s40, %s56
      %p58 = scmp.eq.s32.totalorder %s32, 0
      %p59 = por %p57, %p58
      %s60 = ssub.s32 %s26, %s33
      %p61 = scmp.eq.s32.totalorder %s60, 0
      %s63 = sadd.s32 %s62, 1
      %s64 = scalar_select %p61, %s62, %s63
      %p67 = pneg %p61
      %p68 = scmp.eq.s32.totalorder %s26, 1
      %p69 = por %p67, %p68
      %p70 = scmp.ne.s32.totalorder %s62, %s65
      %p71 = scmp.eq.s32.totalorder %s26, 0
      %p72 = por %p70, %p71
      %p73 = scmp.ne.s32.totalorder %s62, %s65
      %p74 = scmp.eq.s32.totalorder %s31, 1
      %p75 = por %p73, %p74
      %p76 = scmp.ne.s32.totalorder %s65, %s66
      %p77 = scmp.eq.s32.totalorder %s31, 0
      %p78 = por %p76, %p77
      %p79 = scmp.ne.s32.totalorder %s65, %s66
      %p80 = scmp.eq.s32.totalorder %s32, 1
      %p81 = por %p79, %p80
      %p83 = scmp.ne.s32.totalorder %s66, %s82
      %p84 = scmp.eq.s32.totalorder %s32, 0
      %p85 = por %p83, %p84
      %s87 = sadd.s32 %s86, 1
      %p90 = scmp.eq.s32.totalorder %s26, 1
      %p91 = scmp.ne.s32.totalorder %s86, %s88
      %p92 = scmp.eq.s32.totalorder %s26, 0
      %p93 = por %p91, %p92
      %p94 = scmp.ne.s32.totalorder %s86, %s88
      %p95 = scmp.eq.s32.totalorder %s31, 1
      %p96 = por %p94, %p95
      %p97 = scmp.ne.s32.totalorder %s88, %s89
      %p98 = scmp.eq.s32.totalorder %s31, 0
      %p99 = por %p97, %p98
      %p100 = scmp.ne.s32.totalorder %s88, %s89
      %p101 = scmp.eq.s32.totalorder %s32, 1
      %p102 = por %p100, %p101
      %p104 = scmp.ne.s32.totalorder %s89, %s103
      %p105 = scmp.eq.s32.totalorder %s32, 0
      %p106 = por %p104, %p105
      %s108 = sadd.s32 %s107, 1
      %p111 = scmp.eq.s32.totalorder %s26, 1
      %p112 = scmp.ne.s32.totalorder %s107, %s109
      %p113 = scmp.eq.s32.totalorder %s26, 0
      %p114 = por %p112, %p113
      %p115 = scmp.ne.s32.totalorder %s107, %s109
      %p116 = scmp.eq.s32.totalorder %s31, 1
      %p117 = por %p115, %p116
      %p118 = scmp.ne.s32.totalorder %s109, %s110
      %p119 = scmp.eq.s32.totalorder %s31, 0
      %p120 = por %p118, %p119
      %p121 = scmp.ne.s32.totalorder %s109, %s110
      %p122 = scmp.eq.s32.totalorder %s32, 1
      %p123 = por %p121, %p122
      %p125 = scmp.ne.s32.totalorder %s110, %s124
      %p126 = scmp.eq.s32.totalorder %s32, 0
      %p127 = por %p125, %p126
      %s128 = ssub.s32 %s26, %s33
      %p129 = scmp.eq.s32.totalorder %s128, 0
      %s131 = sadd.s32 %s130, 1
      %s132 = scalar_select %p129, %s130, %s131
      %p135 = pneg %p129
      %p136 = scmp.eq.s32.totalorder %s26, 1
      %p137 = por %p135, %p136
      %p138 = scmp.ne.s32.totalorder %s130, %s133
      %p139 = scmp.eq.s32.totalorder %s26, 0
      %p140 = por %p138, %p139
      %p141 = scmp.ne.s32.totalorder %s130, %s133
      %p142 = scmp.eq.s32.totalorder %s31, 1
      %p143 = por %p141, %p142
      %p144 = scmp.ne.s32.totalorder %s133, %s134
      %p145 = scmp.eq.s32.totalorder %s31, 0
      %p146 = por %p144, %p145
      %p147 = scmp.ne.s32.totalorder %s133, %s134
      %p148 = scmp.eq.s32.totalorder %s32, 1
      %p149 = por %p147, %p148
      %p151 = scmp.ne.s32.totalorder %s134, %s150
      %p152 = scmp.eq.s32.totalorder %s32, 0
      %p153 = por %p151, %p152
      %s154 = ssub.s32 %s26, %s33
      %p155 = scmp.eq.s32.totalorder %s154, 0
      %s157 = sadd.s32 %s156, 1
      %s158 = scalar_select %p155, %s156, %s157
      %p161 = pneg %p155
      %p162 = scmp.eq.s32.totalorder %s26, 1
      %p163 = por %p161, %p162
      %p164 = scmp.ne.s32.totalorder %s156, %s159
      %p165 = scmp.eq.s32.totalorder %s26, 0
      %p166 = por %p164, %p165
      %p167 = scmp.ne.s32.totalorder %s156, %s159
      %p168 = scmp.eq.s32.totalorder %s31, 1
      %p169 = por %p167, %p168
      %p170 = scmp.ne.s32.totalorder %s159, %s160
      %p171 = scmp.eq.s32.totalorder %s31, 0
      %p172 = por %p170, %p171
      %p173 = scmp.ne.s32.totalorder %s159, %s160
      %p174 = scmp.eq.s32.totalorder %s32, 1
      %p175 = por %p173, %p174
      %p177 = scmp.ne.s32.totalorder %s160, %s176
      %p178 = scmp.eq.s32.totalorder %s32, 0
      %p179 = por %p177, %p178
      %s180 = ssub.s32 %s26, %s33
      %p181 = scmp.eq.s32.totalorder %s180, 0
      %s183 = sadd.s32 %s182, 1
      %s184 = scalar_select %p181, %s182, %s183
      %p187 = pneg %p181
      %p188 = scmp.eq.s32.totalorder %s26, 1
      %p189 = por %p187, %p188
      %p190 = scmp.ne.s32.totalorder %s182, %s185
      %p191 = scmp.eq.s32.totalorder %s26, 0
      %p192 = por %p190, %p191
      %p193 = scmp.ne.s32.totalorder %s182, %s185
      %p194 = scmp.eq.s32.totalorder %s31, 1
      %p195 = por %p193, %p194
      %p196 = scmp.ne.s32.totalorder %s185, %s186
      %p197 = scmp.eq.s32.totalorder %s31, 0
      %p198 = por %p196, %p197
      %p199 = scmp.ne.s32.totalorder %s185, %s186
      %p200 = scmp.eq.s32.totalorder %s32, 1
      %p201 = por %p199, %p200
      %p203 = scmp.ne.s32.totalorder %s186, %s202
      %p204 = scmp.eq.s32.totalorder %s32, 0
      %p205 = por %p203, %p204
      %p206 = scmp.le.s32.totalorder 1, %s26
      %p207 = scmp.lt.s32.totalorder %s26, 3
      %p208 = pnand %p206, %p207
      %p209 = pneg %p208
      // Predicated region
      $region9: #{forward.3} parent=5 // pred_check
        _
      $region10: #{forward.3} parent=5 // pred_check_branch
        %211 = sbr.rel (%p208) target = $region12
      $region11: #{forward.3} parent=5 // pred_region
        %s212 = ssub.s32 %s26, 1
        // Predicated region
        $region13: #{forward.3} parent=11 // pred_check
          %p213 = pneg %p99
        $region14: #{forward.3} parent=11 // pred_check_branch
          %215 = sbr.rel (%p213) target = $region16
        $region15: #{forward.3} parent=11 // pred_region
          %s217 = ssub.s32 192, 192
          %218 = vsyncadd [#allocation6], %s217
          %s219 = sshll.u32 [#allocation7], 4
          %s220 = int_to_ptr.vmem [resolvable:$true] %s219
          %225 = dma.hbm_to_vmem [thread:$0]  %s2, 192, %s220, [#allocation6], 64, 64, 4
        $region16: #{forward.3} parent=11 // pred_fallthru
          _
        // Predicated region
        $region17: #{forward.3} parent=11 // pred_check
          %p226 = pneg %p120
        $region18: #{forward.3} parent=11 // pred_check_branch
          %228 = sbr.rel (%p226) target = $region20
        $region19: #{forward.3} parent=11 // pred_region
          %s230 = ssub.s32 384, 384
          %231 = vsyncadd [#allocation9], %s230
          %s232 = sshll.u32 [#allocation8], 4
          %s233 = int_to_ptr.vmem [resolvable:$true] %s232
          %238 = dma.hbm_to_vmem [thread:$0]  %s3, 384, %s233, [#allocation9], 128, 128, 8
        $region20: #{forward.3} parent=11 // pred_fallthru
          _
      $region12: #{forward.3} parent=5 // pred_fallthru
        _
      %p239 = scmp.lt.s32.totalorder %s26, 2
      // Predicated region
      $region21: #{forward.3} parent=5 // pred_check
        %p240 = pneg %p239
      $region22: #{forward.3} parent=5 // pred_check_branch
        %242 = sbr.rel (%p240) target = $region24
      $region23: #{forward.3} parent=5 // pred_region
        // Predicated region
        $region25: #{forward.3} parent=23 // pred_check
          %p243 = pneg %p46
        $region26: #{forward.3} parent=23 // pred_check_branch
          %245 = sbr.rel (%p243) target = $region28
        $region27: #{forward.3} parent=23 // pred_region
          %s246 = sand.u32 %s26, 1
          %s247 = scalar_lea.sflag [#allocation3], %s246
          %s248 = sand.u32 %s36, 1
          %s249 = smul.addr %s248, 512
          %s250 = scalar_lea.vmem [#allocation2], %s249
          %s252 = ssub.s32 8192, 8192
          %253 = vsyncadd %s247, %s252
          %s254 = smul.addr %s26, 128
          %s255 = smul.addr %s254, 64
          %s256 = scalar_lea.hbm %s0, %s255
          %s257 = sshll.u32 %s250, 4
          %s258 = int_to_ptr.vmem [resolvable:$true] %s257
          %263 = dma.hbm_to_vmem [thread:$0]  %s256, 8192, %s258, %s247, 64, 64, 4
        $region28: #{forward.3} parent=23 // pred_fallthru
          _
        // Predicated region
        $region29: #{forward.3} parent=23 // pred_check
          %p264 = pneg %p72
        $region30: #{forward.3} parent=23 // pred_check_branch
          %266 = sbr.rel (%p264) target = $region32
        $region31: #{forward.3} parent=23 // pred_region
          %s267 = sand.u32 %s26, 1
          %s268 = scalar_lea.sflag [#allocation6], %s267
          %s269 = sand.u32 %s62, 1
          %s270 = smul.addr %s269, 128
          %s271 = scalar_lea.vmem [#allocation5], %s270
          %s273 = ssub.s32 2048, 2048
          %274 = vsyncadd %s268, %s273
          %s275 = smul.addr %s26, 16
          %s276 = smul.addr %s275, 128
          %s277 = scalar_lea.hbm %s1, %s276
          %s278 = sshll.u32 %s271, 4
          %s279 = int_to_ptr.vmem [resolvable:$true] %s278
          %284 = dma.hbm_to_vmem [thread:$0]  %s277, 2048, %s279, %s268, 128, 128, 8
        $region32: #{forward.3} parent=23 // pred_fallthru
          _
        // Predicated region
        $region33: #{forward.3} parent=23 // pred_check
          %p285 = pneg %p140
        $region34: #{forward.3} parent=23 // pred_check_branch
          %287 = sbr.rel (%p285) target = $region36
        $region35: #{forward.3} parent=23 // pred_region
          %s288 = sand.u32 %s26, 1
          %s289 = scalar_lea.sflag [#allocation3], %s288
          %s290 = sand.u32 %s130, 1
          %s291 = smul.addr %s290, 512
          %s292 = scalar_lea.vmem [#allocation10], %s291
          %s294 = ssub.s32 8192, 8192
          %295 = vsyncadd %s289, %s294
          %s296 = smul.addr %s26, 64
          %s297 = smul.addr %s296, 128
          %s298 = scalar_lea.hbm %s4, %s297
          %s299 = sshll.u32 %s292, 4
          %s300 = int_to_ptr.vmem [resolvable:$true] %s299
          %305 = dma.hbm_to_vmem [thread:$0]  %s298, 8192, %s300, %s289, 128, 128, 8
        $region36: #{forward.3} parent=23 // pred_fallthru
          _
      $region24: #{forward.3} parent=5 // pred_fallthru
        _
      %p306 = scmp.le.s32.totalorder 1, %s26
      %p307 = scmp.lt.s32.totalorder %s26, 3
      %p308 = pnand %p306, %p307
      %p309 = pneg %p308
      // Predicated region
      $region37: #{forward.3} parent=5 // pred_check
        _
      $region38: #{forward.3} parent=5 // pred_check_branch
        %311 = sbr.rel (%p308) target = $region40
      $region39: #{forward.3} parent=5 // pred_region
        %s312 = ssub.s32 %s26, 1
        %s313 = sand.u32 %s31, 1
        %s314 = scalar_lea.sflag [#allocation3], %s313
        %s315 = sand.u32 %s39, 1
        %s316 = smul.addr %s315, 512
        %s317 = scalar_lea.vmem [#allocation2], %s316
        // Predicated region
        $region41: #{forward.3} parent=39 // pred_check
          %p318 = pneg %p52
        $region42: #{forward.3} parent=39 // pred_check_branch
          %320 = sbr.rel (%p318) target = $region44
        $region43: #{forward.3} parent=39 // pred_region
          %321 = dma.done %s314, 8192
        $region44: #{forward.3} parent=39 // pred_fallthru
          _
        %s322 = sand.u32 %s31, 1
        %s323 = scalar_lea.sflag [#allocation6], %s322
        %s324 = sand.u32 %s65, 1
        %s325 = smul.addr %s324, 128
        %s326 = scalar_lea.vmem [#allocation5], %s325
        // Predicated region
        $region45: #{forward.3} parent=39 // pred_check
          %p327 = pneg %p78
        $region46: #{forward.3} parent=39 // pred_check_branch
          %329 = sbr.rel (%p327) target = $region48
        $region47: #{forward.3} parent=39 // pred_region
          %330 = dma.done %s323, 2048
        $region48: #{forward.3} parent=39 // pred_fallthru
          _
        // Predicated region
        $region49: #{forward.3} parent=39 // pred_check
          %p331 = pneg %p99
        $region50: #{forward.3} parent=39 // pred_check_branch
          %333 = sbr.rel (%p331) target = $region52
        $region51: #{forward.3} parent=39 // pred_region
          %334 = dma.done [#allocation6], 192
        $region52: #{forward.3} parent=39 // pred_fallthru
          _
        // Predicated region
        $region53: #{forward.3} parent=39 // pred_check
          %p335 = pneg %p120
        $region54: #{forward.3} parent=39 // pred_check_branch
          %337 = sbr.rel (%p335) target = $region56
        $region55: #{forward.3} parent=39 // pred_region
          %338 = dma.done [#allocation9], 384
        $region56: #{forward.3} parent=39 // pred_fallthru
          _
        %s339 = sand.u32 %s31, 1
        %s340 = scalar_lea.sflag [#allocation3], %s339
        %s341 = sand.u32 %s133, 1
        %s342 = smul.addr %s341, 512
        %s343 = scalar_lea.vmem [#allocation10], %s342
        // Predicated region
        $region57: #{forward.3} parent=39 // pred_check
          %p344 = pneg %p146
        $region58: #{forward.3} parent=39 // pred_check_branch
          %346 = sbr.rel (%p344) target = $region60
        $region59: #{forward.3} parent=39 // pred_region
          %347 = dma.done %s340, 8192
        $region60: #{forward.3} parent=39 // pred_fallthru
          _
        %s348 = sand.u32 %s31, 1
        %s349 = scalar_lea.sflag [#allocation3], %s348
        %s350 = sand.u32 %s39, 1
        %s351 = smul.addr %s350, 512
        %s352 = scalar_lea.vmem [#allocation2], %s351
        %p353 = pneg %p52
        %p354 = pneg %p49
        %s355 = sand.u32 %s31, 1
        %s356 = scalar_lea.sflag [#allocation6], %s355
        %s357 = sand.u32 %s65, 1
        %s358 = smul.addr %s357, 128
        %s359 = scalar_lea.vmem [#allocation5], %s358
        %p360 = pneg %p78
        %p361 = pneg %p75
        %p362 = pneg %p99
        %p363 = pneg %p96
        %p364 = pneg %p120
        %p365 = pneg %p117
        %s366 = sand.u32 %s31, 1
        %s367 = scalar_lea.sflag [#allocation3], %s366
        %s368 = sand.u32 %s133, 1
        %s369 = smul.addr %s368, 512
        %s370 = scalar_lea.vmem [#allocation10], %s369
        %p371 = pneg %p146
        %p372 = pneg %p143
        %p373 = pneg %p172
        %p374 = pneg %p169
        %s375 = sand.u32 %s159, 1
        %s376 = scalar_lea.sflag [#allocation4], %s375
        %s377 = sand.u32 %s159, 1
        %s378 = smul.addr %s377, 24
        %s379 = scalar_lea.vmem [#allocation11], %s378
        %p380 = pneg %p198
        %p381 = pneg %p195
        %s382 = sand.u32 %s185, 1
        %s383 = scalar_lea.sflag [#allocation13], %s382
        %s384 = sand.u32 %s185, 1
        %s385 = smul.addr %s384, 96
        %s386 = scalar_lea.vmem [#allocation12], %s385
        %v388 = vld [vmem:[%s317] sm:$0xf]
        %v389 = vld [vmem:[%s317 + $0x4] sm:$0xf]
        %v390 = vld [vmem:[%s317 + $0x8] sm:$0xf]
        %v391 = vld [vmem:[%s317 + $0xc] sm:$0xf]
        %v392 = vld [vmem:[%s317 + $0x10] sm:$0xf]
        %v393 = vld [vmem:[%s317 + $0x14] sm:$0xf]
        %v394 = vld [vmem:[%s317 + $0x18] sm:$0xf]
        %v395 = vld [vmem:[%s317 + $0x1c] sm:$0xf]
        %v396 = vld [vmem:[%s317 + $0x20] sm:$0xf]
        %v397 = vld [vmem:[%s317 + $0x24] sm:$0xf]
        %v398 = vld [vmem:[%s317 + $0x28] sm:$0xf]
        %v399 = vld [vmem:[%s317 + $0x2c] sm:$0xf]
        %v400 = vld [vmem:[%s317 + $0x30] sm:$0xf]
        %v401 = vld [vmem:[%s317 + $0x34] sm:$0xf]
        %v402 = vld [vmem:[%s317 + $0x38] sm:$0xf]
        %v403 = vld [vmem:[%s317 + $0x3c] sm:$0xf]
        %v404 = vld [vmem:[%s317 + $0x40] sm:$0xf]
        %v405 = vld [vmem:[%s317 + $0x44] sm:$0xf]
        %v406 = vld [vmem:[%s317 + $0x48] sm:$0xf]
        %v407 = vld [vmem:[%s317 + $0x4c] sm:$0xf]
        %v408 = vld [vmem:[%s317 + $0x50] sm:$0xf]
        %v409 = vld [vmem:[%s317 + $0x54] sm:$0xf]
        %v410 = vld [vmem:[%s317 + $0x58] sm:$0xf]
        %v411 = vld [vmem:[%s317 + $0x5c] sm:$0xf]
        %v412 = vld [vmem:[%s317 + $0x60] sm:$0xf]
        %v413 = vld [vmem:[%s317 + $0x64] sm:$0xf]
        %v414 = vld [vmem:[%s317 + $0x68] sm:$0xf]
        %v415 = vld [vmem:[%s317 + $0x6c] sm:$0xf]
        %v416 = vld [vmem:[%s317 + $0x70] sm:$0xf]
        %v417 = vld [vmem:[%s317 + $0x74] sm:$0xf]
        %v418 = vld [vmem:[%s317 + $0x78] sm:$0xf]
        %v419 = vld [vmem:[%s317 + $0x7c] sm:$0xf]
        %v420 = vld [vmem:[%s317 + $0x80] sm:$0xf]
        %v421 = vld [vmem:[%s317 + $0x84] sm:$0xf]
        %v422 = vld [vmem:[%s317 + $0x88] sm:$0xf]
        %v423 = vld [vmem:[%s317 + $0x8c] sm:$0xf]
        %v424 = vld [vmem:[%s317 + $0x90] sm:$0xf]
        %v425 = vld [vmem:[%s317 + $0x94] sm:$0xf]
        %v426 = vld [vmem:[%s317 + $0x98] sm:$0xf]
        %v427 = vld [vmem:[%s317 + $0x9c] sm:$0xf]
        %v428 = vld [vmem:[%s317 + $0xa0] sm:$0xf]
        %v429 = vld [vmem:[%s317 + $0xa4] sm:$0xf]
        %v430 = vld [vmem:[%s317 + $0xa8] sm:$0xf]
        %v431 = vld [vmem:[%s317 + $0xac] sm:$0xf]
        %v432 = vld [vmem:[%s317 + $0xb0] sm:$0xf]
        %v433 = vld [vmem:[%s317 + $0xb4] sm:$0xf]
        %v434 = vld [vmem:[%s317 + $0xb8] sm:$0xf]
        %v435 = vld [vmem:[%s317 + $0xbc] sm:$0xf]
        %v436 = vld [vmem:[%s317 + $0xc0] sm:$0xf]
        %v437 = vld [vmem:[%s317 + $0xc4] sm:$0xf]
        %v438 = vld [vmem:[%s317 + $0xc8] sm:$0xf]
        %v439 = vld [vmem:[%s317 + $0xcc] sm:$0xf]
        %v440 = vld [vmem:[%s317 + $0xd0] sm:$0xf]
        %v441 = vld [vmem:[%s317 + $0xd4] sm:$0xf]
        %v442 = vld [vmem:[%s317 + $0xd8] sm:$0xf]
        %v443 = vld [vmem:[%s317 + $0xdc] sm:$0xf]
        %v444 = vld [vmem:[%s317 + $0xe0] sm:$0xf]
        %v445 = vld [vmem:[%s317 + $0xe4] sm:$0xf]
        %v446 = vld [vmem:[%s317 + $0xe8] sm:$0xf]
        %v447 = vld [vmem:[%s317 + $0xec] sm:$0xf]
        %v448 = vld [vmem:[%s317 + $0xf0] sm:$0xf]
        %v449 = vld [vmem:[%s317 + $0xf4] sm:$0xf]
        %v450 = vld [vmem:[%s317 + $0xf8] sm:$0xf]
        %v451 = vld [vmem:[%s317 + $0xfc] sm:$0xf]
        %v452 = vld [vmem:[%s317 + $0x100] sm:$0xf]
        %v453 = vld [vmem:[%s317 + $0x104] sm:$0xf]
        %v454 = vld [vmem:[%s317 + $0x108] sm:$0xf]
        %v455 = vld [vmem:[%s317 + $0x10c] sm:$0xf]
        %v456 = vld [vmem:[%s317 + $0x110] sm:$0xf]
        %v457 = vld [vmem:[%s317 + $0x114] sm:$0xf]
        %v458 = vld [vmem:[%s317 + $0x118] sm:$0xf]
        %v459 = vld [vmem:[%s317 + $0x11c] sm:$0xf]
        %v460 = vld [vmem:[%s317 + $0x120] sm:$0xf]
        %v461 = vld [vmem:[%s317 + $0x124] sm:$0xf]
        %v462 = vld [vmem:[%s317 + $0x128] sm:$0xf]
        %v463 = vld [vmem:[%s317 + $0x12c] sm:$0xf]
        %v464 = vld [vmem:[%s317 + $0x130] sm:$0xf]
        %v465 = vld [vmem:[%s317 + $0x134] sm:$0xf]
        %v466 = vld [vmem:[%s317 + $0x138] sm:$0xf]
        %v467 = vld [vmem:[%s317 + $0x13c] sm:$0xf]
        %v468 = vld [vmem:[%s317 + $0x140] sm:$0xf]
        %v469 = vld [vmem:[%s317 + $0x144] sm:$0xf]
        %v470 = vld [vmem:[%s317 + $0x148] sm:$0xf]
        %v471 = vld [vmem:[%s317 + $0x14c] sm:$0xf]
        %v472 = vld [vmem:[%s317 + $0x150] sm:$0xf]
        %v473 = vld [vmem:[%s317 + $0x154] sm:$0xf]
        %v474 = vld [vmem:[%s317 + $0x158] sm:$0xf]
        %v475 = vld [vmem:[%s317 + $0x15c] sm:$0xf]
        %v476 = vld [vmem:[%s317 + $0x160] sm:$0xf]
        %v477 = vld [vmem:[%s317 + $0x164] sm:$0xf]
        %v478 = vld [vmem:[%s317 + $0x168] sm:$0xf]
        %v479 = vld [vmem:[%s317 + $0x16c] sm:$0xf]
        %v480 = vld [vmem:[%s317 + $0x170] sm:$0xf]
        %v481 = vld [vmem:[%s317 + $0x174] sm:$0xf]
        %v482 = vld [vmem:[%s317 + $0x178] sm:$0xf]
        %v483 = vld [vmem:[%s317 + $0x17c] sm:$0xf]
        %v484 = vld [vmem:[%s317 + $0x180] sm:$0xf]
        %v485 = vld [vmem:[%s317 + $0x184] sm:$0xf]
        %v486 = vld [vmem:[%s317 + $0x188] sm:$0xf]
        %v487 = vld [vmem:[%s317 + $0x18c] sm:$0xf]
        %v488 = vld [vmem:[%s317 + $0x190] sm:$0xf]
        %v489 = vld [vmem:[%s317 + $0x194] sm:$0xf]
        %v490 = vld [vmem:[%s317 + $0x198] sm:$0xf]
        %v491 = vld [vmem:[%s317 + $0x19c] sm:$0xf]
        %v492 = vld [vmem:[%s317 + $0x1a0] sm:$0xf]
        %v493 = vld [vmem:[%s317 + $0x1a4] sm:$0xf]
        %v494 = vld [vmem:[%s317 + $0x1a8] sm:$0xf]
        %v495 = vld [vmem:[%s317 + $0x1ac] sm:$0xf]
        %v496 = vld [vmem:[%s317 + $0x1b0] sm:$0xf]
        %v497 = vld [vmem:[%s317 + $0x1b4] sm:$0xf]
        %v498 = vld [vmem:[%s317 + $0x1b8] sm:$0xf]
        %v499 = vld [vmem:[%s317 + $0x1bc] sm:$0xf]
        %v500 = vld [vmem:[%s317 + $0x1c0] sm:$0xf]
        %v501 = vld [vmem:[%s317 + $0x1c4] sm:$0xf]
        %v502 = vld [vmem:[%s317 + $0x1c8] sm:$0xf]
        %v503 = vld [vmem:[%s317 + $0x1cc] sm:$0xf]
        %v504 = vld [vmem:[%s317 + $0x1d0] sm:$0xf]
        %v505 = vld [vmem:[%s317 + $0x1d4] sm:$0xf]
        %v506 = vld [vmem:[%s317 + $0x1d8] sm:$0xf]
        %v507 = vld [vmem:[%s317 + $0x1dc] sm:$0xf]
        %v508 = vld [vmem:[%s317 + $0x1e0] sm:$0xf]
        %v509 = vld [vmem:[%s317 + $0x1e4] sm:$0xf]
        %v510 = vld [vmem:[%s317 + $0x1e8] sm:$0xf]
        %v511 = vld [vmem:[%s317 + $0x1ec] sm:$0xf]
        %v512 = vld [vmem:[%s317 + $0x1f0] sm:$0xf]
        %v513 = vld [vmem:[%s317 + $0x1f4] sm:$0xf]
        %v514 = vld [vmem:[%s317 + $0x1f8] sm:$0xf]
        %v515 = vld [vmem:[%s317 + $0x1fc] sm:$0xf]
        %v516 = vld [vmem:[%s326] sm:$0xff]
        %v517 = vld [vmem:[%s326 + $0x8] sm:$0xff]
        %v518 = vld [vmem:[%s326 + $0x10] sm:$0xff]
        %v519 = vld [vmem:[%s326 + $0x18] sm:$0xff]
        %v520 = vld [vmem:[%s326 + $0x20] sm:$0xff]
        %v521 = vld [vmem:[%s326 + $0x28] sm:$0xff]
        %v522 = vld [vmem:[%s326 + $0x30] sm:$0xff]
        %v523 = vld [vmem:[%s326 + $0x38] sm:$0xff]
        %v524 = vld [vmem:[%s326 + $0x40] sm:$0xff]
        %v525 = vld [vmem:[%s326 + $0x48] sm:$0xff]
        %v526 = vld [vmem:[%s326 + $0x50] sm:$0xff]
        %v527 = vld [vmem:[%s326 + $0x58] sm:$0xff]
        %v528 = vld [vmem:[%s326 + $0x60] sm:$0xff]
        %v529 = vld [vmem:[%s326 + $0x68] sm:$0xff]
        %v530 = vld [vmem:[%s326 + $0x70] sm:$0xff]
        %v531 = vld [vmem:[%s326 + $0x78] sm:$0xff]
        %v532 = vpack.c.bf16 %v517, %v516
        %v533 = vpack.c.bf16 %v519, %v518
        %v534 = vpack.c.bf16 %v521, %v520
        %v535 = vpack.c.bf16 %v523, %v522
        %v536 = vpack.c.bf16 %v525, %v524
        %v537 = vpack.c.bf16 %v527, %v526
        %v538 = vpack.c.bf16 %v529, %v528
        %v539 = vpack.c.bf16 %v531, %v530
        %v604 = vunpack.c.l.b16 %v452
        %v605 = vunpack.c.l.b16 %v453
        %v606 = vunpack.c.l.b16 %v454
        %v607 = vunpack.c.l.b16 %v455
        %v608 = vunpack.c.l.b16 %v456
        %v609 = vunpack.c.l.b16 %v457
        %v610 = vunpack.c.l.b16 %v458
        %v611 = vunpack.c.l.b16 %v459
        %v612 = vunpack.c.l.b16 %v460
        %v613 = vunpack.c.l.b16 %v461
        %v614 = vunpack.c.l.b16 %v462
        %v615 = vunpack.c.l.b16 %v463
        %v616 = vunpack.c.l.b16 %v464
        %v617 = vunpack.c.l.b16 %v465
        %v618 = vunpack.c.l.b16 %v466
        %v619 = vunpack.c.l.b16 %v467
        %v620 = vunpack.c.l.b16 %v468
        %v621 = vunpack.c.l.b16 %v469
        %v622 = vunpack.c.l.b16 %v470
        %v623 = vunpack.c.l.b16 %v471
        %v624 = vunpack.c.l.b16 %v472
        %v625 = vunpack.c.l.b16 %v473
        %v626 = vunpack.c.l.b16 %v474
        %v627 = vunpack.c.l.b16 %v475
        %v628 = vunpack.c.l.b16 %v476
        %v629 = vunpack.c.l.b16 %v477
        %v630 = vunpack.c.l.b16 %v478
        %v631 = vunpack.c.l.b16 %v479
        %v632 = vunpack.c.l.b16 %v480
        %v633 = vunpack.c.l.b16 %v481
        %v634 = vunpack.c.l.b16 %v482
        %v635 = vunpack.c.l.b16 %v483
        %v636 = vunpack.c.l.b16 %v484
        %v637 = vunpack.c.l.b16 %v485
        %v638 = vunpack.c.l.b16 %v486
        %v639 = vunpack.c.l.b16 %v487
        %v640 = vunpack.c.l.b16 %v488
        %v641 = vunpack.c.l.b16 %v489
        %v642 = vunpack.c.l.b16 %v490
        %v643 = vunpack.c.l.b16 %v491
        %v644 = vunpack.c.l.b16 %v492
        %v645 = vunpack.c.l.b16 %v493
        %v646 = vunpack.c.l.b16 %v494
        %v647 = vunpack.c.l.b16 %v495
        %v648 = vunpack.c.l.b16 %v496
        %v649 = vunpack.c.l.b16 %v497
        %v650 = vunpack.c.l.b16 %v498
        %v651 = vunpack.c.l.b16 %v499
        %v652 = vunpack.c.l.b16 %v500
        %v653 = vunpack.c.l.b16 %v501
        %v654 = vunpack.c.l.b16 %v502
        %v655 = vunpack.c.l.b16 %v503
        %v656 = vunpack.c.l.b16 %v504
        %v657 = vunpack.c.l.b16 %v505
        %v658 = vunpack.c.l.b16 %v506
        %v659 = vunpack.c.l.b16 %v507
        %v660 = vunpack.c.l.b16 %v508
        %v661 = vunpack.c.l.b16 %v509
        %v662 = vunpack.c.l.b16 %v510
        %v663 = vunpack.c.l.b16 %v511
        %v664 = vunpack.c.l.b16 %v512
        %v665 = vunpack.c.l.b16 %v513
        %v666 = vunpack.c.l.b16 %v514
        %v667 = vunpack.c.l.b16 %v515
        %v668 = vpack.c.b16 %v605, %v604
        %v669 = vpack.c.b16 %v607, %v606
        %v670 = vpack.c.b16 %v609, %v608
        %v671 = vpack.c.b16 %v611, %v610
        %v672 = vpack.c.b16 %v613, %v612
        %v673 = vpack.c.b16 %v615, %v614
        %v674 = vpack.c.b16 %v617, %v616
        %v675 = vpack.c.b16 %v619, %v618
        %v676 = vpack.c.b16 %v621, %v620
        %v677 = vpack.c.b16 %v623, %v622
        %v678 = vpack.c.b16 %v625, %v624
        %v679 = vpack.c.b16 %v627, %v626
        %v680 = vpack.c.b16 %v629, %v628
        %v681 = vpack.c.b16 %v631, %v630
        %v682 = vpack.c.b16 %v633, %v632
        %v683 = vpack.c.b16 %v635, %v634
        %v684 = vpack.c.b16 %v637, %v636
        %v685 = vpack.c.b16 %v639, %v638
        %v686 = vpack.c.b16 %v641, %v640
        %v687 = vpack.c.b16 %v643, %v642
        %v688 = vpack.c.b16 %v645, %v644
        %v689 = vpack.c.b16 %v647, %v646
        %v690 = vpack.c.b16 %v649, %v648
        %v691 = vpack.c.b16 %v651, %v650
        %v692 = vpack.c.b16 %v653, %v652
        %v693 = vpack.c.b16 %v655, %v654
        %v694 = vpack.c.b16 %v657, %v656
        %v695 = vpack.c.b16 %v659, %v658
        %v696 = vpack.c.b16 %v661, %v660
        %v697 = vpack.c.b16 %v663, %v662
        %v698 = vpack.c.b16 %v665, %v664
        %v699 = vpack.c.b16 %v667, %v666
        %vm700 = vcmask 523264
        %v702 = vsel %vm700, %v668, 0
        %v705 = vsel %vm700, %v669, 0
        %v708 = vsel %vm700, %v670, 0
        %v711 = vsel %vm700, %v671, 0
        %v714 = vsel %vm700, %v672, 0
        %v717 = vsel %vm700, %v673, 0
        %v720 = vsel %vm700, %v674, 0
        %v723 = vsel %vm700, %v675, 0
        %v726 = vsel %vm700, %v676, 0
        %v729 = vsel %vm700, %v677, 0
        %v732 = vsel %vm700, %v678, 0
        %v735 = vsel %vm700, %v679, 0
        %v738 = vsel %vm700, %v680, 0
        %v741 = vsel %vm700, %v681, 0
        %v744 = vsel %vm700, %v682, 0
        %v747 = vsel %vm700, %v683, 0
        %v750 = vsel %vm700, %v684, 0
        %v753 = vsel %vm700, %v685, 0
        %v756 = vsel %vm700, %v686, 0
        %v759 = vsel %vm700, %v687, 0
        %v762 = vsel %vm700, %v688, 0
        %v765 = vsel %vm700, %v689, 0
        %v768 = vsel %vm700, %v690, 0
        %v771 = vsel %vm700, %v691, 0
        %v774 = vsel %vm700, %v692, 0
        %v777 = vsel %vm700, %v693, 0
        %v780 = vsel %vm700, %v694, 0
        %v783 = vsel %vm700, %v695, 0
        %v786 = vsel %vm700, %v696, 0
        %v789 = vsel %vm700, %v697, 0
        %v792 = vsel %vm700, %v698, 0
        %v795 = vsel %vm700, %v699, 0
        %797 = vmatprep.subr.bf16.mxu0 0
        %798 = vmatpush1.bf16.msra.mxu0 %v536
        %799 = vmatprep.subr.bf16.mxu0 0
        %800 = vmatpush1.bf16.msra.mxu0 %v537
        %801 = vmatprep.subr.bf16.mxu0 0
        %802 = vmatpush1.bf16.msra.mxu0 %v538
        %803 = vmatprep.subr.bf16.mxu0 0
        %804 = vmatpush1.bf16.msra.mxu0 %v539
        %805 = vmatprep.subr.bf16.mxu0 0
        %806 = vmatpush1.bf16.msra.mxu0 0
        %807 = vmatprep.subr.bf16.mxu0 0
        %808 = vmatpush1.bf16.msra.mxu0 0
        %809 = vmatprep.subr.bf16.mxu0 0
        %810 = vmatpush1.bf16.msra.mxu0 0
        %811 = vmatprep.subr.bf16.mxu0 0
        %812 = vmatpush1.bf16.msra.mxu0 0
        %813 = vmatprep.subr.bf16.mxu0 0
        %814 = vmatpush1.bf16.msra.mxu0 0
        %815 = vmatprep.subr.bf16.mxu0 0
        %816 = vmatpush1.bf16.msra.mxu0 0
        %817 = vmatprep.subr.bf16.mxu0 0
        %818 = vmatpush1.bf16.msra.mxu0 0
        %819 = vmatprep.subr.bf16.mxu0 0
        %820 = vmatpush1.bf16.msra.mxu0 0
        %821 = vmatprep.subr.bf16.mxu0 0
        %822 = vmatpush1.bf16.msra.mxu0 0
        %823 = vmatprep.subr.bf16.mxu0 0
        %824 = vmatpush1.bf16.msra.mxu0 0
        %825 = vmatprep.subr.bf16.mxu0 0
        %826 = vmatpush1.bf16.msra.mxu0 0
        %827 = vmatprep.subr.bf16.mxu0 0
        %828 = vmatpush1.bf16.msra.mxu0 0
        %829 = vmatprep.mubr.bf16.mxu0 0
        %830 = vmatmul.mubr.bf16.gmra.mrb[0].mxu0 %v702
        %v831 = vpop.f32.mrb[0].mxu0
        %v832 = vadd.f32 0.0, %v831
        %v833 = vpop.f32.mrb[0].mxu0
        %v834 = vpop.f32.mrb[0].mxu0
        %v835 = vadd.f32 0.0, %v834
        %v836 = vpop.f32.mrb[0].mxu0
        %837 = vmatprep.mubr.bf16.mxu0 0
        %838 = vmatmul.mubr.bf16.gmra.mrb[0].mxu0 %v705
        %v839 = vpop.f32.mrb[0].mxu0
        %v840 = vadd.f32 0.0, %v839
        %v841 = vpop.f32.mrb[0].mxu0
        %v842 = vpop.f32.mrb[0].mxu0
        %v843 = vadd.f32 0.0, %v842
        %v844 = vpop.f32.mrb[0].mxu0
        %845 = vmatprep.mubr.bf16.mxu0 0
        %846 = vmatmul.mubr.bf16.gmra.mrb[0].mxu0 %v708
        %v847 = vpop.f32.mrb[0].mxu0
        %v848 = vadd.f32 0.0, %v847
        %v849 = vpop.f32.mrb[0].mxu0
        %v850 = vpop.f32.mrb[0].mxu0
        %v851 = vadd.f32 0.0, %v850
        %v852 = vpop.f32.mrb[0].mxu0
        %853 = vmatprep.mubr.bf16.mxu0 0
        %854 = vmatmul.mubr.bf16.gmra.mrb[0].mxu0 %v711
        %v855 = vpop.f32.mrb[0].mxu0
        %v856 = vadd.f32 0.0, %v855
        %v857 = vpop.f32.mrb[0].mxu0
        %v858 = vpop.f32.mrb[0].mxu0
        %v859 = vadd.f32 0.0, %v858
        %v860 = vpop.f32.mrb[0].mxu0
        %861 = vmatprep.mubr.bf16.mxu0 0
        %862 = vmatmul.mubr.bf16.gmra.mrb[0].mxu0 %v714
        %v863 = vpop.f32.mrb[0].mxu0
        %v864 = vadd.f32 0.0, %v863
        %v865 = vpop.f32.mrb[0].mxu0
        %v866 = vpop.f32.mrb[0].mxu0
        %v867 = vadd.f32 0.0, %v866
        %v868 = vpop.f32.mrb[0].mxu0
        %869 = vmatprep.mubr.bf16.mxu0 0
        %870 = vmatmul.mubr.bf16.gmra.mrb[0].mxu0 %v717
        %v871 = vpop.f32.mrb[0].mxu0
        %v872 = vadd.f32 0.0, %v871
        %v873 = vpop.f32.mrb[0].mxu0
        %v874 = vpop.f32.mrb[0].mxu0
        %v875 = vadd.f32 0.0, %v874
        %v876 = vpop.f32.mrb[0].mxu0
        %877 = vmatprep.mubr.bf16.mxu0 0
        %878 = vmatmul.mubr.bf16.gmra.mrb[0].mxu0 %v720
        %v879 = vpop.f32.mrb[0].mxu0
        %v880 = vadd.f32 0.0, %v879
        %v881 = vpop.f32.mrb[0].mxu0
        %v882 = vpop.f32.mrb[0].mxu0
        %v883 = vadd.f32 0.0, %v882
        %v884 = vpop.f32.mrb[0].mxu0
        %885 = vmatprep.mubr.bf16.mxu0 0
        %886 = vmatmul.mubr.bf16.gmra.mrb[0].mxu0 %v723
        %v887 = vpop.f32.mrb[0].mxu0
        %v888 = vadd.f32 0.0, %v887
        %v889 = vpop.f32.mrb[0].mxu0
        %v890 = vpop.f32.mrb[0].mxu0
        %v891 = vadd.f32 0.0, %v890
        %v892 = vpop.f32.mrb[0].mxu0
        %893 = vmatprep.mubr.bf16.mxu0 0
        %894 = vmatmul.mubr.bf16.gmra.mrb[0].mxu0 %v726
        %v895 = vpop.f32.mrb[0].mxu0
        %v896 = vadd.f32 0.0, %v895
        %v897 = vpop.f32.mrb[0].mxu0
        %v898 = vpop.f32.mrb[0].mxu0
        %v899 = vadd.f32 0.0, %v898
        %v900 = vpop.f32.mrb[0].mxu0
        %901 = vmatprep.mubr.bf16.mxu0 0
        %902 = vmatmul.mubr.bf16.gmra.mrb[0].mxu0 %v729
        %v903 = vpop.f32.mrb[0].mxu0
        %v904 = vadd.f32 0.0, %v903
        %v905 = vpop.f32.mrb[0].mxu0
        %v906 = vpop.f32.mrb[0].mxu0
        %v907 = vadd.f32 0.0, %v906
        %v908 = vpop.f32.mrb[0].mxu0
        %909 = vmatprep.mubr.bf16.mxu0 0
        %910 = vmatmul.mubr.bf16.gmra.mrb[0].mxu0 %v732
        %v911 = vpop.f32.mrb[0].mxu0
        %v912 = vadd.f32 0.0, %v911
        %v913 = vpop.f32.mrb[0].mxu0
        %v914 = vpop.f32.mrb[0].mxu0
        %v915 = vadd.f32 0.0, %v914
        %v916 = vpop.f32.mrb[0].mxu0
        %917 = vmatprep.mubr.bf16.mxu0 0
        %918 = vmatmul.mubr.bf16.gmra.mrb[0].mxu0 %v735
        %v919 = vpop.f32.mrb[0].mxu0
        %v920 = vadd.f32 0.0, %v919
        %v921 = vpop.f32.mrb[0].mxu0
        %v922 = vpop.f32.mrb[0].mxu0
        %v923 = vadd.f32 0.0, %v922
        %v924 = vpop.f32.mrb[0].mxu0
        %925 = vmatprep.mubr.bf16.mxu0 0
        %926 = vmatmul.mubr.bf16.gmra.mrb[0].mxu0 %v738
        %v927 = vpop.f32.mrb[0].mxu0
        %v928 = vadd.f32 0.0, %v927
        %v929 = vpop.f32.mrb[0].mxu0
        %v930 = vpop.f32.mrb[0].mxu0
        %v931 = vadd.f32 0.0, %v930
        %v932 = vpop.f32.mrb[0].mxu0
        %933 = vmatprep.mubr.bf16.mxu0 0
        %934 = vmatmul.mubr.bf16.gmra.mrb[0].mxu0 %v741
        %v935 = vpop.f32.mrb[0].mxu0
        %v936 = vadd.f32 0.0, %v935
        %v937 = vpop.f32.mrb[0].mxu0
        %v938 = vpop.f32.mrb[0].mxu0
        %v939 = vadd.f32 0.0, %v938
        %v940 = vpop.f32.mrb[0].mxu0
        %941 = vmatprep.mubr.bf16.mxu0 0
        %942 = vmatmul.mubr.bf16.gmra.mrb[0].mxu0 %v744
        %v943 = vpop.f32.mrb[0].mxu0
        %v944 = vadd.f32 0.0, %v943
        %v945 = vpop.f32.mrb[0].mxu0
        %v946 = vpop.f32.mrb[0].mxu0
        %v947 = vadd.f32 0.0, %v946
        %v948 = vpop.f32.mrb[0].mxu0
        %949 = vmatprep.mubr.bf16.mxu0 0
        %950 = vmatmul.mubr.bf16.gmra.mrb[0].mxu0 %v747
        %v951 = vpop.f32.mrb[0].mxu0
        %v952 = vadd.f32 0.0, %v951
        %v953 = vpop.f32.mrb[0].mxu0
        %v954 = vpop.f32.mrb[0].mxu0
        %v955 = vadd.f32 0.0, %v954
        %v956 = vpop.f32.mrb[0].mxu0
        %957 = vmatprep.mubr.bf16.mxu0 0
        %958 = vmatmul.mubr.bf16.gmra.mrb[0].mxu0 %v750
        %v959 = vpop.f32.mrb[0].mxu0
        %v960 = vadd.f32 0.0, %v959
        %v961 = vpop.f32.mrb[0].mxu0
        %v962 = vpop.f32.mrb[0].mxu0
        %v963 = vadd.f32 0.0, %v962
        %v964 = vpop.f32.mrb[0].mxu0
        %965 = vmatprep.mubr.bf16.mxu0 0
        %966 = vmatmul.mubr.bf16.gmra.mrb[0].mxu0 %v753
        %v967 = vpop.f32.mrb[0].mxu0
        %v968 = vadd.f32 0.0, %v967
        %v969 = vpop.f32.mrb[0].mxu0
        %v970 = vpop.f32.mrb[0].mxu0
        %v971 = vadd.f32 0.0, %v970
        %v972 = vpop.f32.mrb[0].mxu0
        %973 = vmatprep.mubr.bf16.mxu0 0
        %974 = vmatmul.mubr.bf16.gmra.mrb[0].mxu0 %v756
        %v975 = vpop.f32.mrb[0].mxu0
        %v976 = vadd.f32 0.0, %v975
        %v977 = vpop.f32.mrb[0].mxu0
        %v978 = vpop.f32.mrb[0].mxu0
        %v979 = vadd.f32 0.0, %v978
        %v980 = vpop.f32.mrb[0].mxu0
        %981 = vmatprep.mubr.bf16.mxu0 0
        %982 = vmatmul.mubr.bf16.gmra.mrb[0].mxu0 %v759
        %v983 = vpop.f32.mrb[0].mxu0
        %v984 = vadd.f32 0.0, %v983
        %v985 = vpop.f32.mrb[0].mxu0
        %v986 = vpop.f32.mrb[0].mxu0
        %v987 = vadd.f32 0.0, %v986
        %v988 = vpop.f32.mrb[0].mxu0
        %989 = vmatprep.mubr.bf16.mxu0 0
        %990 = vmatmul.mubr.bf16.gmra.mrb[0].mxu0 %v762
        %v991 = vpop.f32.mrb[0].mxu0
        %v992 = vadd.f32 0.0, %v991
        %v993 = vpop.f32.mrb[0].mxu0
        %v994 = vpop.f32.mrb[0].mxu0
        %v995 = vadd.f32 0.0, %v994
        %v996 = vpop.f32.mrb[0].mxu0
        %997 = vmatprep.mubr.bf16.mxu0 0
        %998 = vmatmul.mubr.bf16.gmra.mrb[0].mxu0 %v765
        %v999 = vpop.f32.mrb[0].mxu0
        %v1000 = vadd.f32 0.0, %v999
        %v1001 = vpop.f32.mrb[0].mxu0
        %v1002 = vpop.f32.mrb[0].mxu0
        %v1003 = vadd.f32 0.0, %v1002
        %v1004 = vpop.f32.mrb[0].mxu0
        %1005 = vmatprep.mubr.bf16.mxu0 0
        %1006 = vmatmul.mubr.bf16.gmra.mrb[0].mxu0 %v768
        %v1007 = vpop.f32.mrb[0].mxu0
        %v1008 = vadd.f32 0.0, %v1007
        %v1009 = vpop.f32.mrb[0].mxu0
        %v1010 = vpop.f32.mrb[0].mxu0
        %v1011 = vadd.f32 0.0, %v1010
        %v1012 = vpop.f32.mrb[0].mxu0
        %1013 = vmatprep.mubr.bf16.mxu0 0
        %1014 = vmatmul.mubr.bf16.gmra.mrb[0].mxu0 %v771
        %v1015 = vpop.f32.mrb[0].mxu0
        %v1016 = vadd.f32 0.0, %v1015
        %v1017 = vpop.f32.mrb[0].mxu0
        %v1018 = vpop.f32.mrb[0].mxu0
        %v1019 = vadd.f32 0.0, %v1018
        %v1020 = vpop.f32.mrb[0].mxu0
        %1021 = vmatprep.mubr.bf16.mxu0 0
        %1022 = vmatmul.mubr.bf16.gmra.mrb[0].mxu0 %v774
        %v1023 = vpop.f32.mrb[0].mxu0
        %v1024 = vadd.f32 0.0, %v1023
        %v1025 = vpop.f32.mrb[0].mxu0
        %v1026 = vpop.f32.mrb[0].mxu0
        %v1027 = vadd.f32 0.0, %v1026
        %v1028 = vpop.f32.mrb[0].mxu0
        %1029 = vmatprep.mubr.bf16.mxu0 0
        %1030 = vmatmul.mubr.bf16.gmra.mrb[0].mxu0 %v777
        %v1031 = vpop.f32.mrb[0].mxu0
        %v1032 = vadd.f32 0.0, %v1031
        %v1033 = vpop.f32.mrb[0].mxu0
        %v1034 = vpop.f32.mrb[0].mxu0
        %v1035 = vadd.f32 0.0, %v1034
        %v1036 = vpop.f32.mrb[0].mxu0
        %1037 = vmatprep.mubr.bf16.mxu0 0
        %1038 = vmatmul.mubr.bf16.gmra.mrb[0].mxu0 %v780
        %v1039 = vpop.f32.mrb[0].mxu0
        %v1040 = vadd.f32 0.0, %v1039
        %v1041 = vpop.f32.mrb[0].mxu0
        %v1042 = vpop.f32.mrb[0].mxu0
        %v1043 = vadd.f32 0.0, %v1042
        %v1044 = vpop.f32.mrb[0].mxu0
        %1045 = vmatprep.mubr.bf16.mxu0 0
        %1046 = vmatmul.mubr.bf16.gmra.mrb[0].mxu0 %v783
        %v1047 = vpop.f32.mrb[0].mxu0
        %v1048 = vadd.f32 0.0, %v1047
        %v1049 = vpop.f32.mrb[0].mxu0
        %v1050 = vpop.f32.mrb[0].mxu0
        %v1051 = vadd.f32 0.0, %v1050
        %v1052 = vpop.f32.mrb[0].mxu0
        %1053 = vmatprep.mubr.bf16.mxu0 0
        %1054 = vmatmul.mubr.bf16.gmra.mrb[0].mxu0 %v786
        %v1055 = vpop.f32.mrb[0].mxu0
        %v1056 = vadd.f32 0.0, %v1055
        %v1057 = vpop.f32.mrb[0].mxu0
        %v1058 = vpop.f32.mrb[0].mxu0
        %v1059 = vadd.f32 0.0, %v1058
        %v1060 = vpop.f32.mrb[0].mxu0
        %1061 = vmatprep.mubr.bf16.mxu0 0
        %1062 = vmatmul.mubr.bf16.gmra.mrb[0].mxu0 %v789
        %v1063 = vpop.f32.mrb[0].mxu0
        %v1064 = vadd.f32 0.0, %v1063
        %v1065 = vpop.f32.mrb[0].mxu0
        %v1066 = vpop.f32.mrb[0].mxu0
        %v1067 = vadd.f32 0.0, %v1066
        %v1068 = vpop.f32.mrb[0].mxu0
        %1069 = vmatprep.mubr.bf16.mxu0 0
        %1070 = vmatmul.mubr.bf16.gmra.mrb[0].mxu0 %v792
        %v1071 = vpop.f32.mrb[0].mxu0
        %v1072 = vadd.f32 0.0, %v1071
        %v1073 = vpop.f32.mrb[0].mxu0
        %v1074 = vpop.f32.mrb[0].mxu0
        %v1075 = vadd.f32 0.0, %v1074
        %v1076 = vpop.f32.mrb[0].mxu0
        %1077 = vmatprep.mubr.bf16.mxu0 0
        %1078 = vmatmul.mubr.bf16.gmra.mrb[0].mxu0 %v795
        %v1079 = vpop.f32.mrb[0].mxu0
        %v1080 = vadd.f32 0.0, %v1079
        %v1081 = vpop.f32.mrb[0].mxu0
        %v1082 = vpop.f32.mrb[0].mxu0
        %v1083 = vadd.f32 0.0, %v1082
        %v1084 = vpop.f32.mrb[0].mxu0
        %1085 = vdwg.mxu0
        %v1150 = vunpack.c.l.b16 %v388
        %v1151 = vunpack.c.l.b16 %v389
        %v1152 = vunpack.c.l.b16 %v390
        %v1153 = vunpack.c.l.b16 %v391
        %v1154 = vunpack.c.l.b16 %v392
        %v1155 = vunpack.c.l.b16 %v393
        %v1156 = vunpack.c.l.b16 %v394
        %v1157 = vunpack.c.l.b16 %v395
        %v1158 = vunpack.c.l.b16 %v396
        %v1159 = vunpack.c.l.b16 %v397
        %v1160 = vunpack.c.l.b16 %v398
        %v1161 = vunpack.c.l.b16 %v399
        %v1162 = vunpack.c.l.b16 %v400
        %v1163 = vunpack.c.l.b16 %v401
        %v1164 = vunpack.c.l.b16 %v402
        %v1165 = vunpack.c.l.b16 %v403
        %v1166 = vunpack.c.l.b16 %v404
        %v1167 = vunpack.c.l.b16 %v405
        %v1168 = vunpack.c.l.b16 %v406
        %v1169 = vunpack.c.l.b16 %v407
        %v1170 = vunpack.c.l.b16 %v408
        %v1171 = vunpack.c.l.b16 %v409
        %v1172 = vunpack.c.l.b16 %v410
        %v1173 = vunpack.c.l.b16 %v411
        %v1174 = vunpack.c.l.b16 %v412
        %v1175 = vunpack.c.l.b16 %v413
        %v1176 = vunpack.c.l.b16 %v414
        %v1177 = vunpack.c.l.b16 %v415
        %v1178 = vunpack.c.l.b16 %v416
        %v1179 = vunpack.c.l.b16 %v417
        %v1180 = vunpack.c.l.b16 %v418
        %v1181 = vunpack.c.l.b16 %v419
        %v1182 = vunpack.c.l.b16 %v420
        %v1183 = vunpack.c.l.b16 %v421
        %v1184 = vunpack.c.l.b16 %v422
        %v1185 = vunpack.c.l.b16 %v423
        %v1186 = vunpack.c.l.b16 %v424
        %v1187 = vunpack.c.l.b16 %v425
        %v1188 = vunpack.c.l.b16 %v426
        %v1189 = vunpack.c.l.b16 %v427
        %v1190 = vunpack.c.l.b16 %v428
        %v1191 = vunpack.c.l.b16 %v429
        %v1192 = vunpack.c.l.b16 %v430
        %v1193 = vunpack.c.l.b16 %v431
        %v1194 = vunpack.c.l.b16 %v432
        %v1195 = vunpack.c.l.b16 %v433
        %v1196 = vunpack.c.l.b16 %v434
        %v1197 = vunpack.c.l.b16 %v435
        %v1198 = vunpack.c.l.b16 %v436
        %v1199 = vunpack.c.l.b16 %v437
        %v1200 = vunpack.c.l.b16 %v438
        %v1201 = vunpack.c.l.b16 %v439
        %v1202 = vunpack.c.l.b16 %v440
        %v1203 = vunpack.c.l.b16 %v441
        %v1204 = vunpack.c.l.b16 %v442
        %v1205 = vunpack.c.l.b16 %v443
        %v1206 = vunpack.c.l.b16 %v444
        %v1207 = vunpack.c.l.b16 %v445
        %v1208 = vunpack.c.l.b16 %v446
        %v1209 = vunpack.c.l.b16 %v447
        %v1210 = vunpack.c.l.b16 %v448
        %v1211 = vunpack.c.l.b16 %v449
        %v1212 = vunpack.c.l.b16 %v450
        %v1213 = vunpack.c.l.b16 %v451
        %v1214 = vpack.c.b16 %v1151, %v1150
        %v1215 = vpack.c.b16 %v1153, %v1152
        %v1216 = vpack.c.b16 %v1155, %v1154
        %v1217 = vpack.c.b16 %v1157, %v1156
        %v1218 = vpack.c.b16 %v1159, %v1158
        %v1219 = vpack.c.b16 %v1161, %v1160
        %v1220 = vpack.c.b16 %v1163, %v1162
        %v1221 = vpack.c.b16 %v1165, %v1164
        %v1222 = vpack.c.b16 %v1167, %v1166
        %v1223 = vpack.c.b16 %v1169, %v1168
        %v1224 = vpack.c.b16 %v1171, %v1170
        %v1225 = vpack.c.b16 %v1173, %v1172
        %v1226 = vpack.c.b16 %v1175, %v1174
        %v1227 = vpack.c.b16 %v1177, %v1176
        %v1228 = vpack.c.b16 %v1179, %v1178
        %v1229 = vpack.c.b16 %v1181, %v1180
        %v1230 = vpack.c.b16 %v1183, %v1182
        %v1231 = vpack.c.b16 %v1185, %v1184
        %v1232 = vpack.c.b16 %v1187, %v1186
        %v1233 = vpack.c.b16 %v1189, %v1188
        %v1234 = vpack.c.b16 %v1191, %v1190
        %v1235 = vpack.c.b16 %v1193, %v1192
        %v1236 = vpack.c.b16 %v1195, %v1194
        %v1237 = vpack.c.b16 %v1197, %v1196
        %v1238 = vpack.c.b16 %v1199, %v1198
        %v1239 = vpack.c.b16 %v1201, %v1200
        %v1240 = vpack.c.b16 %v1203, %v1202
        %v1241 = vpack.c.b16 %v1205, %v1204
        %v1242 = vpack.c.b16 %v1207, %v1206
        %v1243 = vpack.c.b16 %v1209, %v1208
        %v1244 = vpack.c.b16 %v1211, %v1210
        %v1245 = vpack.c.b16 %v1213, %v1212
        %v1247 = vsel %vm700, %v1214, 0
        %v1250 = vsel %vm700, %v1215, 0
        %v1253 = vsel %vm700, %v1216, 0
        %v1256 = vsel %vm700, %v1217, 0
        %v1259 = vsel %vm700, %v1218, 0
        %v1262 = vsel %vm700, %v1219, 0
        %v1265 = vsel %vm700, %v1220, 0
        %v1268 = vsel %vm700, %v1221, 0
        %v1271 = vsel %vm700, %v1222, 0
        %v1274 = vsel %vm700, %v1223, 0
        %v1277 = vsel %vm700, %v1224, 0
        %v1280 = vsel %vm700, %v1225, 0
        %v1283 = vsel %vm700, %v1226, 0
        %v1286 = vsel %vm700, %v1227, 0
        %v1289 = vsel %vm700, %v1228, 0
        %v1292 = vsel %vm700, %v1229, 0
        %v1295 = vsel %vm700, %v1230, 0
        %v1298 = vsel %vm700, %v1231, 0
        %v1301 = vsel %vm700, %v1232, 0
        %v1304 = vsel %vm700, %v1233, 0
        %v1307 = vsel %vm700, %v1234, 0
        %v1310 = vsel %vm700, %v1235, 0
        %v1313 = vsel %vm700, %v1236, 0
        %v1316 = vsel %vm700, %v1237, 0
        %v1319 = vsel %vm700, %v1238, 0
        %v1322 = vsel %vm700, %v1239, 0
        %v1325 = vsel %vm700, %v1240, 0
        %v1328 = vsel %vm700, %v1241, 0
        %v1331 = vsel %vm700, %v1242, 0
        %v1334 = vsel %vm700, %v1243, 0
        %v1337 = vsel %vm700, %v1244, 0
        %v1340 = vsel %vm700, %v1245, 0
        %1342 = vmatprep.subr.bf16.mxu0 0
        %1343 = vmatpush1.bf16.msra.mxu0 %v532
        %1344 = vmatprep.subr.bf16.mxu0 0
        %1345 = vmatpush1.bf16.msra.mxu0 %v533
        %1346 = vmatprep.subr.bf16.mxu0 0
        %1347 = vmatpush1.bf16.msra.mxu0 %v534
        %1348 = vmatprep.subr.bf16.mxu0 0
        %1349 = vmatpush1.bf16.msra.mxu0 %v535
        %1350 = vmatprep.subr.bf16.mxu0 0
        %1351 = vmatpush1.bf16.msra.mxu0 0
        %1352 = vmatprep.subr.bf16.mxu0 0
        %1353 = vmatpush1.bf16.msra.mxu0 0
        %1354 = vmatprep.subr.bf16.mxu0 0
        %1355 = vmatpush1.bf16.msra.mxu0 0
        %1356 = vmatprep.subr.bf16.mxu0 0
        %1357 = vmatpush1.bf16.msra.mxu0 0
        %1358 = vmatprep.subr.bf16.mxu0 0
        %1359 = vmatpush1.bf16.msra.mxu0 0
        %1360 = vmatprep.subr.bf16.mxu0 0
        %1361 = vmatpush1.bf16.msra.mxu0 0
        %1362 = vmatprep.subr.bf16.mxu0 0
        %1363 = vmatpush1.bf16.msra.mxu0 0
        %1364 = vmatprep.subr.bf16.mxu0 0
        %1365 = vmatpush1.bf16.msra.mxu0 0
        %1366 = vmatprep.subr.bf16.mxu0 0
        %1367 = vmatpush1.bf16.msra.mxu0 0
        %1368 = vmatprep.subr.bf16.mxu0 0
        %1369 = vmatpush1.bf16.msra.mxu0 0
        %1370 = vmatprep.subr.bf16.mxu0 0
        %1371 = vmatpush1.bf16.msra.mxu0 0
        %1372 = vmatprep.subr.bf16.mxu0 0
        %1373 = vmatpush1.bf16.msra.mxu0 0
        %1374 = vmatprep.mubr.bf16.mxu0 0
        %1375 = vmatmul.mubr.bf16.gmra.mrb[0].mxu0 %v1247
        %v1376 = vpop.f32.mrb[0].mxu0
        %v1377 = vadd.f32 %v832, %v1376
        %v1378 = vpop.f32.mrb[0].mxu0
        %v1379 = vpop.f32.mrb[0].mxu0
        %v1380 = vadd.f32 %v835, %v1379
        %v1381 = vpop.f32.mrb[0].mxu0
        %1382 = vmatprep.mubr.bf16.mxu0 0
        %1383 = vmatmul.mubr.bf16.gmra.mrb[0].mxu0 %v1250
        %v1384 = vpop.f32.mrb[0].mxu0
        %v1385 = vadd.f32 %v840, %v1384
        %v1386 = vpop.f32.mrb[0].mxu0
        %v1387 = vpop.f32.mrb[0].mxu0
        %v1388 = vadd.f32 %v843, %v1387
        %v1389 = vpop.f32.mrb[0].mxu0
        %1390 = vmatprep.mubr.bf16.mxu0 0
        %1391 = vmatmul.mubr.bf16.gmra.mrb[0].mxu0 %v1253
        %v1392 = vpop.f32.mrb[0].mxu0
        %v1393 = vadd.f32 %v848, %v1392
        %v1394 = vpop.f32.mrb[0].mxu0
        %v1395 = vpop.f32.mrb[0].mxu0
        %v1396 = vadd.f32 %v851, %v1395
        %v1397 = vpop.f32.mrb[0].mxu0
        %1398 = vmatprep.mubr.bf16.mxu0 0
        %1399 = vmatmul.mubr.bf16.gmra.mrb[0].mxu0 %v1256
        %v1400 = vpop.f32.mrb[0].mxu0
        %v1401 = vadd.f32 %v856, %v1400
        %v1402 = vpop.f32.mrb[0].mxu0
        %v1403 = vpop.f32.mrb[0].mxu0
        %v1404 = vadd.f32 %v859, %v1403
        %v1405 = vpop.f32.mrb[0].mxu0
        %1406 = vmatprep.mubr.bf16.mxu0 0
        %1407 = vmatmul.mubr.bf16.gmra.mrb[0].mxu0 %v1259
        %v1408 = vpop.f32.mrb[0].mxu0
        %v1409 = vadd.f32 %v864, %v1408
        %v1410 = vpop.f32.mrb[0].mxu0
        %v1411 = vpop.f32.mrb[0].mxu0
        %v1412 = vadd.f32 %v867, %v1411
        %v1413 = vpop.f32.mrb[0].mxu0
        %1414 = vmatprep.mubr.bf16.mxu0 0
        %1415 = vmatmul.mubr.bf16.gmra.mrb[0].mxu0 %v1262
        %v1416 = vpop.f32.mrb[0].mxu0
        %v1417 = vadd.f32 %v872, %v1416
        %v1418 = vpop.f32.mrb[0].mxu0
        %v1419 = vpop.f32.mrb[0].mxu0
        %v1420 = vadd.f32 %v875, %v1419
        %v1421 = vpop.f32.mrb[0].mxu0
        %1422 = vmatprep.mubr.bf16.mxu0 0
        %1423 = vmatmul.mubr.bf16.gmra.mrb[0].mxu0 %v1265
        %v1424 = vpop.f32.mrb[0].mxu0
        %v1425 = vadd.f32 %v880, %v1424
        %v1426 = vpop.f32.mrb[0].mxu0
        %v1427 = vpop.f32.mrb[0].mxu0
        %v1428 = vadd.f32 %v883, %v1427
        %v1429 = vpop.f32.mrb[0].mxu0
        %1430 = vmatprep.mubr.bf16.mxu0 0
        %1431 = vmatmul.mubr.bf16.gmra.mrb[0].mxu0 %v1268
        %v1432 = vpop.f32.mrb[0].mxu0
        %v1433 = vadd.f32 %v888, %v1432
        %v1434 = vpop.f32.mrb[0].mxu0
        %v1435 = vpop.f32.mrb[0].mxu0
        %v1436 = vadd.f32 %v891, %v1435
        %v1437 = vpop.f32.mrb[0].mxu0
        %1438 = vmatprep.mubr.bf16.mxu0 0
        %1439 = vmatmul.mubr.bf16.gmra.mrb[0].mxu0 %v1271
        %v1440 = vpop.f32.mrb[0].mxu0
        %v1441 = vadd.f32 %v896, %v1440
        %v1442 = vpop.f32.mrb[0].mxu0
        %v1443 = vpop.f32.mrb[0].mxu0
        %v1444 = vadd.f32 %v899, %v1443
        %v1445 = vpop.f32.mrb[0].mxu0
        %1446 = vmatprep.mubr.bf16.mxu0 0
        %1447 = vmatmul.mubr.bf16.gmra.mrb[0].mxu0 %v1274
        %v1448 = vpop.f32.mrb[0].mxu0
        %v1449 = vadd.f32 %v904, %v1448
        %v1450 = vpop.f32.mrb[0].mxu0
        %v1451 = vpop.f32.mrb[0].mxu0
        %v1452 = vadd.f32 %v907, %v1451
        %v1453 = vpop.f32.mrb[0].mxu0
        %1454 = vmatprep.mubr.bf16.mxu0 0
        %1455 = vmatmul.mubr.bf16.gmra.mrb[0].mxu0 %v1277
        %v1456 = vpop.f32.mrb[0].mxu0
        %v1457 = vadd.f32 %v912, %v1456
        %v1458 = vpop.f32.mrb[0].mxu0
        %v1459 = vpop.f32.mrb[0].mxu0
        %v1460 = vadd.f32 %v915, %v1459
        %v1461 = vpop.f32.mrb[0].mxu0
        %1462 = vmatprep.mubr.bf16.mxu0 0
        %1463 = vmatmul.mubr.bf16.gmra.mrb[0].mxu0 %v1280
        %v1464 = vpop.f32.mrb[0].mxu0
        %v1465 = vadd.f32 %v920, %v1464
        %v1466 = vpop.f32.mrb[0].mxu0
        %v1467 = vpop.f32.mrb[0].mxu0
        %v1468 = vadd.f32 %v923, %v1467
        %v1469 = vpop.f32.mrb[0].mxu0
        %1470 = vmatprep.mubr.bf16.mxu0 0
        %1471 = vmatmul.mubr.bf16.gmra.mrb[0].mxu0 %v1283
        %v1472 = vpop.f32.mrb[0].mxu0
        %v1473 = vadd.f32 %v928, %v1472
        %v1474 = vpop.f32.mrb[0].mxu0
        %v1475 = vpop.f32.mrb[0].mxu0
        %v1476 = vadd.f32 %v931, %v1475
        %v1477 = vpop.f32.mrb[0].mxu0
        %1478 = vmatprep.mubr.bf16.mxu0 0
        %1479 = vmatmul.mubr.bf16.gmra.mrb[0].mxu0 %v1286
        %v1480 = vpop.f32.mrb[0].mxu0
        %v1481 = vadd.f32 %v936, %v1480
        %v1482 = vpop.f32.mrb[0].mxu0
        %v1483 = vpop.f32.mrb[0].mxu0
        %v1484 = vadd.f32 %v939, %v1483
        %v1485 = vpop.f32.mrb[0].mxu0
        %1486 = vmatprep.mubr.bf16.mxu0 0
        %1487 = vmatmul.mubr.bf16.gmra.mrb[0].mxu0 %v1289
        %v1488 = vpop.f32.mrb[0].mxu0
        %v1489 = vadd.f32 %v944, %v1488
        %v1490 = vpop.f32.mrb[0].mxu0
        %v1491 = vpop.f32.mrb[0].mxu0
        %v1492 = vadd.f32 %v947, %v1491
        %v1493 = vpop.f32.mrb[0].mxu0
        %1494 = vmatprep.mubr.bf16.mxu0 0
        %1495 = vmatmul.mubr.bf16.gmra.mrb[0].mxu0 %v1292
        %v1496 = vpop.f32.mrb[0].mxu0
        %v1497 = vadd.f32 %v952, %v1496
        %v1498 = vpop.f32.mrb[0].mxu0
        %v1499 = vpop.f32.mrb[0].mxu0
        %v1500 = vadd.f32 %v955, %v1499
        %v1501 = vpop.f32.mrb[0].mxu0
        %1502 = vmatprep.mubr.bf16.mxu0 0
        %1503 = vmatmul.mubr.bf16.gmra.mrb[0].mxu0 %v1295
        %v1504 = vpop.f32.mrb[0].mxu0
        %v1505 = vadd.f32 %v960, %v1504
        %v1506 = vpop.f32.mrb[0].mxu0
        %v1507 = vpop.f32.mrb[0].mxu0
        %v1508 = vadd.f32 %v963, %v1507
        %v1509 = vpop.f32.mrb[0].mxu0
        %1510 = vmatprep.mubr.bf16.mxu0 0
        %1511 = vmatmul.mubr.bf16.gmra.mrb[0].mxu0 %v1298
        %v1512 = vpop.f32.mrb[0].mxu0
        %v1513 = vadd.f32 %v968, %v1512
        %v1514 = vpop.f32.mrb[0].mxu0
        %v1515 = vpop.f32.mrb[0].mxu0
        %v1516 = vadd.f32 %v971, %v1515
        %v1517 = vpop.f32.mrb[0].mxu0
        %1518 = vmatprep.mubr.bf16.mxu0 0
        %1519 = vmatmul.mubr.bf16.gmra.mrb[0].mxu0 %v1301
        %v1520 = vpop.f32.mrb[0].mxu0
        %v1521 = vadd.f32 %v976, %v1520
        %v1522 = vpop.f32.mrb[0].mxu0
        %v1523 = vpop.f32.mrb[0].mxu0
        %v1524 = vadd.f32 %v979, %v1523
        %v1525 = vpop.f32.mrb[0].mxu0
        %1526 = vmatprep.mubr.bf16.mxu0 0
        %1527 = vmatmul.mubr.bf16.gmra.mrb[0].mxu0 %v1304
        %v1528 = vpop.f32.mrb[0].mxu0
        %v1529 = vadd.f32 %v984, %v1528
        %v1530 = vpop.f32.mrb[0].mxu0
        %v1531 = vpop.f32.mrb[0].mxu0
        %v1532 = vadd.f32 %v987, %v1531
        %v1533 = vpop.f32.mrb[0].mxu0
        %1534 = vmatprep.mubr.bf16.mxu0 0
        %1535 = vmatmul.mubr.bf16.gmra.mrb[0].mxu0 %v1307
        %v1536 = vpop.f32.mrb[0].mxu0
        %v1537 = vadd.f32 %v992, %v1536
        %v1538 = vpop.f32.mrb[0].mxu0
        %v1539 = vpop.f32.mrb[0].mxu0
        %v1540 = vadd.f32 %v995, %v1539
        %v1541 = vpop.f32.mrb[0].mxu0
        %1542 = vmatprep.mubr.bf16.mxu0 0
        %1543 = vmatmul.mubr.bf16.gmra.mrb[0].mxu0 %v1310
        %v1544 = vpop.f32.mrb[0].mxu0
        %v1545 = vadd.f32 %v1000, %v1544
        %v1546 = vpop.f32.mrb[0].mxu0
        %v1547 = vpop.f32.mrb[0].mxu0
        %v1548 = vadd.f32 %v1003, %v1547
        %v1549 = vpop.f32.mrb[0].mxu0
        %1550 = vmatprep.mubr.bf16.mxu0 0
        %1551 = vmatmul.mubr.bf16.gmra.mrb[0].mxu0 %v1313
        %v1552 = vpop.f32.mrb[0].mxu0
        %v1553 = vadd.f32 %v1008, %v1552
        %v1554 = vpop.f32.mrb[0].mxu0
        %v1555 = vpop.f32.mrb[0].mxu0
        %v1556 = vadd.f32 %v1011, %v1555
        %v1557 = vpop.f32.mrb[0].mxu0
        %1558 = vmatprep.mubr.bf16.mxu0 0
        %1559 = vmatmul.mubr.bf16.gmra.mrb[0].mxu0 %v1316
        %v1560 = vpop.f32.mrb[0].mxu0
        %v1561 = vadd.f32 %v1016, %v1560
        %v1562 = vpop.f32.mrb[0].mxu0
        %v1563 = vpop.f32.mrb[0].mxu0
        %v1564 = vadd.f32 %v1019, %v1563
        %v1565 = vpop.f32.mrb[0].mxu0
        %1566 = vmatprep.mubr.bf16.mxu0 0
        %1567 = vmatmul.mubr.bf16.gmra.mrb[0].mxu0 %v1319
        %v1568 = vpop.f32.mrb[0].mxu0
        %v1569 = vadd.f32 %v1024, %v1568
        %v1570 = vpop.f32.mrb[0].mxu0
        %v1571 = vpop.f32.mrb[0].mxu0
        %v1572 = vadd.f32 %v1027, %v1571
        %v1573 = vpop.f32.mrb[0].mxu0
        %1574 = vmatprep.mubr.bf16.mxu0 0
        %1575 = vmatmul.mubr.bf16.gmra.mrb[0].mxu0 %v1322
        %v1576 = vpop.f32.mrb[0].mxu0
        %v1577 = vadd.f32 %v1032, %v1576
        %v1578 = vpop.f32.mrb[0].mxu0
        %v1579 = vpop.f32.mrb[0].mxu0
        %v1580 = vadd.f32 %v1035, %v1579
        %v1581 = vpop.f32.mrb[0].mxu0
        %1582 = vmatprep.mubr.bf16.mxu0 0
        %1583 = vmatmul.mubr.bf16.gmra.mrb[0].mxu0 %v1325
        %v1584 = vpop.f32.mrb[0].mxu0
        %v1585 = vadd.f32 %v1040, %v1584
        %v1586 = vpop.f32.mrb[0].mxu0
        %v1587 = vpop.f32.mrb[0].mxu0
        %v1588 = vadd.f32 %v1043, %v1587
        %v1589 = vpop.f32.mrb[0].mxu0
        %1590 = vmatprep.mubr.bf16.mxu0 0
        %1591 = vmatmul.mubr.bf16.gmra.mrb[0].mxu0 %v1328
        %v1592 = vpop.f32.mrb[0].mxu0
        %v1593 = vadd.f32 %v1048, %v1592
        %v1594 = vpop.f32.mrb[0].mxu0
        %v1595 = vpop.f32.mrb[0].mxu0
        %v1596 = vadd.f32 %v1051, %v1595
        %v1597 = vpop.f32.mrb[0].mxu0
        %1598 = vmatprep.mubr.bf16.mxu0 0
        %1599 = vmatmul.mubr.bf16.gmra.mrb[0].mxu0 %v1331
        %v1600 = vpop.f32.mrb[0].mxu0
        %v1601 = vadd.f32 %v1056, %v1600
        %v1602 = vpop.f32.mrb[0].mxu0
        %v1603 = vpop.f32.mrb[0].mxu0
        %v1604 = vadd.f32 %v1059, %v1603
        %v1605 = vpop.f32.mrb[0].mxu0
        %1606 = vmatprep.mubr.bf16.mxu0 0
        %1607 = vmatmul.mubr.bf16.gmra.mrb[0].mxu0 %v1334
        %v1608 = vpop.f32.mrb[0].mxu0
        %v1609 = vadd.f32 %v1064, %v1608
        %v1610 = vpop.f32.mrb[0].mxu0
        %v1611 = vpop.f32.mrb[0].mxu0
        %v1612 = vadd.f32 %v1067, %v1611
        %v1613 = vpop.f32.mrb[0].mxu0
        %1614 = vmatprep.mubr.bf16.mxu0 0
        %1615 = vmatmul.mubr.bf16.gmra.mrb[0].mxu0 %v1337
        %v1616 = vpop.f32.mrb[0].mxu0
        %v1617 = vadd.f32 %v1072, %v1616
        %v1618 = vpop.f32.mrb[0].mxu0
        %v1619 = vpop.f32.mrb[0].mxu0
        %v1620 = vadd.f32 %v1075, %v1619
        %v1621 = vpop.f32.mrb[0].mxu0
        %1622 = vmatprep.mubr.bf16.mxu0 0
        %1623 = vmatmul.mubr.bf16.gmra.mrb[0].mxu0 %v1340
        %v1624 = vpop.f32.mrb[0].mxu0
        %v1625 = vadd.f32 %v1080, %v1624
        %v1626 = vpop.f32.mrb[0].mxu0
        %v1627 = vpop.f32.mrb[0].mxu0
        %v1628 = vadd.f32 %v1083, %v1627
        %v1629 = vpop.f32.mrb[0].mxu0
        %1630 = vdwg.mxu0
        %v1631 = vld [vmem:[#allocation7] sm:$0xf]
        %v1632 = vld [vmem:[#allocation7 + $0x4] sm:$0xf]
        %v1633 = vld [vmem:[#allocation7 + $0x8] sm:$0x1]
        %v1634 = vpack.c.bf16 %v1380, %v1377
        %v1635 = vpack.c.bf16 %v1388, %v1385
        %v1636 = vpack.c.bf16 %v1396, %v1393
        %v1637 = vpack.c.bf16 %v1404, %v1401
        %v1638 = vpack.c.bf16 %v1412, %v1409
        %v1639 = vpack.c.bf16 %v1420, %v1417
        %v1640 = vpack.c.bf16 %v1428, %v1425
        %v1641 = vpack.c.bf16 %v1436, %v1433
        %v1642 = vpack.c.bf16 %v1444, %v1441
        %v1643 = vpack.c.bf16 %v1452, %v1449
        %v1644 = vpack.c.bf16 %v1460, %v1457
        %v1645 = vpack.c.bf16 %v1468, %v1465
        %v1646 = vpack.c.bf16 %v1476, %v1473
        %v1647 = vpack.c.bf16 %v1484, %v1481
        %v1648 = vpack.c.bf16 %v1492, %v1489
        %v1649 = vpack.c.bf16 %v1500, %v1497
        %v1650 = vpack.c.bf16 %v1508, %v1505
        %v1651 = vpack.c.bf16 %v1516, %v1513
        %v1652 = vpack.c.bf16 %v1524, %v1521
        %v1653 = vpack.c.bf16 %v1532, %v1529
        %v1654 = vpack.c.bf16 %v1540, %v1537
        %v1655 = vpack.c.bf16 %v1548, %v1545
        %v1656 = vpack.c.bf16 %v1556, %v1553
        %v1657 = vpack.c.bf16 %v1564, %v1561
        %v1658 = vpack.c.bf16 %v1572, %v1569
        %v1659 = vpack.c.bf16 %v1580, %v1577
        %v1660 = vpack.c.bf16 %v1588, %v1585
        %v1661 = vpack.c.bf16 %v1596, %v1593
        %v1662 = vpack.c.bf16 %v1604, %v1601
        %v1663 = vpack.c.bf16 %v1612, %v1609
        %v1664 = vpack.c.bf16 %v1620, %v1617
        %v1665 = vpack.c.bf16 %v1628, %v1625
        %v1666 = vld [vmem:[#allocation8] sm:$0xff]
        %v1667 = vld [vmem:[#allocation8 + $0x8] sm:$0xff]
        %v1668 = vld [vmem:[#allocation8 + $0x10] sm:$0x1]
        %1670 = vset.pattern.permute.xlu0 0
        %1671 = vperm.xlu0 %1670, %v1666
        %v1672 = vpop.permute.xlu0 %1671
        %1675 = vset.pattern.permute.xlu0 0
        %1676 = vperm.xlu0 %1675, %v1667
        %v1677 = vpop.permute.xlu0 %1676
        %1680 = vset.pattern.permute.xlu0 0
        %1681 = vperm.xlu0 %1680, %v1668
        %v1682 = vpop.permute.xlu0 %1681
        %v1687 = vunpack.c.l.b16 %v1631
        %v1688 = vunpack.c.l.b16 %v1632
        %v1689 = vunpack.c.l.b16 %v1633
        %v1690 = vpack.c.b16 %v1688, %v1687
        %v1691 = vpack.c.b16 %v1689, %v1689
        %vm1692 = vcmask 261120
        %v1694 = vsel %vm1692, %v1690, 0
        %v1697 = vsel %vm1692, %v1691, 0
        %v1700 = vsel %vm1692, %v1634, 0
        %v1703 = vsel %vm1692, %v1635, 0
        %v1706 = vsel %vm1692, %v1636, 0
        %v1709 = vsel %vm1692, %v1637, 0
        %v1712 = vsel %vm1692, %v1638, 0
        %v1715 = vsel %vm1692, %v1639, 0
        %v1718 = vsel %vm1692, %v1640, 0
        %v1721 = vsel %vm1692, %v1641, 0
        %v1724 = vsel %vm1692, %v1642, 0
        %v1727 = vsel %vm1692, %v1643, 0
        %v1730 = vsel %vm1692, %v1644, 0
        %v1733 = vsel %vm1692, %v1645, 0
        %v1736 = vsel %vm1692, %v1646, 0
        %v1739 = vsel %vm1692, %v1647, 0
        %v1742 = vsel %vm1692, %v1648, 0
        %v1745 = vsel %vm1692, %v1649, 0
        %v1748 = vsel %vm1692, %v1650, 0
        %v1751 = vsel %vm1692, %v1651, 0
        %v1754 = vsel %vm1692, %v1652, 0
        %v1757 = vsel %vm1692, %v1653, 0
        %v1760 = vsel %vm1692, %v1654, 0
        %v1763 = vsel %vm1692, %v1655, 0
        %v1766 = vsel %vm1692, %v1656, 0
        %v1769 = vsel %vm1692, %v1657, 0
        %v1772 = vsel %vm1692, %v1658, 0
        %v1775 = vsel %vm1692, %v1659, 0
        %v1778 = vsel %vm1692, %v1660, 0
        %v1781 = vsel %vm1692, %v1661, 0
        %v1784 = vsel %vm1692, %v1662, 0
        %v1787 = vsel %vm1692, %v1663, 0
        %v1790 = vsel %vm1692, %v1664, 0
        %v1793 = vsel %vm1692, %v1665, 0
        %1795 = vmatprep.subr.bf16.mxu0 0
        %1796 = vmatpush1.bf16.xpose.msra.mxu0 %v1700
        %1797 = vmatprep.subr.bf16.mxu0 0
        %1798 = vmatpush1.bf16.xpose.msra.mxu0 %v1703
        %1799 = vmatprep.subr.bf16.mxu0 0
        %1800 = vmatpush1.bf16.xpose.msra.mxu0 %v1706
        %1801 = vmatprep.subr.bf16.mxu0 0
        %1802 = vmatpush1.bf16.xpose.msra.mxu0 %v1709
        %1803 = vmatprep.subr.bf16.mxu0 0
        %1804 = vmatpush1.bf16.xpose.msra.mxu0 %v1712
        %1805 = vmatprep.subr.bf16.mxu0 0
        %1806 = vmatpush1.bf16.xpose.msra.mxu0 %v1715
        %1807 = vmatprep.subr.bf16.mxu0 0
        %1808 = vmatpush1.bf16.xpose.msra.mxu0 %v1718
        %1809 = vmatprep.subr.bf16.mxu0 0
        %1810 = vmatpush1.bf16.xpose.msra.mxu0 %v1721
        %1811 = vmatprep.subr.bf16.mxu0 0
        %1812 = vmatpush1.bf16.xpose.msra.mxu0 %v1724
        %1813 = vmatprep.subr.bf16.mxu0 0
        %1814 = vmatpush1.bf16.xpose.msra.mxu0 %v1727
        %1815 = vmatprep.subr.bf16.mxu0 0
        %1816 = vmatpush1.bf16.xpose.msra.mxu0 %v1730
        %1817 = vmatprep.subr.bf16.mxu0 0
        %1818 = vmatpush1.bf16.xpose.msra.mxu0 %v1733
        %1819 = vmatprep.subr.bf16.mxu0 0
        %1820 = vmatpush1.bf16.xpose.msra.mxu0 %v1736
        %1821 = vmatprep.subr.bf16.mxu0 0
        %1822 = vmatpush1.bf16.xpose.msra.mxu0 %v1739
        %1823 = vmatprep.subr.bf16.mxu0 0
        %1824 = vmatpush1.bf16.xpose.msra.mxu0 %v1742
        %1825 = vmatprep.subr.bf16.mxu0 0
        %1826 = vmatpush1.bf16.xpose.msra.mxu0 %v1745
        %1827 = vmatprep.mubr.bf16.mxu0 0
        %1828 = vmatmul.mubr.bf16.gmra.mrb[0].mxu0 %v1694
        %v1829 = vpop.f32.mrb[0].mxu0
        %v1830 = vadd.f32 %v1672, %v1829
        %v1831 = vpop.f32.mrb[0].mxu0
        %v1832 = vadd.f32 %v1672, %v1831
        %v1833 = vpop.f32.mrb[0].mxu0
        %v1834 = vadd.f32 %v1677, %v1833
        %v1835 = vpop.f32.mrb[0].mxu0
        %v1836 = vadd.f32 %v1677, %v1835
        %1837 = vmatprep.mubr.bf16.mxu0 0
        %1838 = vmatmul.mubr.bf16.gmra.mrb[0].mxu0 %v1697
        %v1839 = vpop.f32.mrb[0].mxu0
        %v1840 = vadd.f32 %v1682, %v1839
        %v1841 = vpop.f32.mrb[0].mxu0
        %v1842 = vadd.f32 %v1682, %v1841
        %v1843 = vpop.f32.mrb[0].mxu0
        %v1844 = vpop.f32.mrb[0].mxu0
        %1845 = vdwg.mxu0
        %1846 = vmatprep.subr.bf16.mxu0 0
        %1847 = vmatpush1.bf16.xpose.msra.mxu0 %v1748
        %1848 = vmatprep.subr.bf16.mxu0 0
        %1849 = vmatpush1.bf16.xpose.msra.mxu0 %v1751
        %1850 = vmatprep.subr.bf16.mxu0 0
        %1851 = vmatpush1.bf16.xpose.msra.mxu0 %v1754
        %1852 = vmatprep.subr.bf16.mxu0 0
        %1853 = vmatpush1.bf16.xpose.msra.mxu0 %v1757
        %1854 = vmatprep.subr.bf16.mxu0 0
        %1855 = vmatpush1.bf16.xpose.msra.mxu0 %v1760
        %1856 = vmatprep.subr.bf16.mxu0 0
        %1857 = vmatpush1.bf16.xpose.msra.mxu0 %v1763
        %1858 = vmatprep.subr.bf16.mxu0 0
        %1859 = vmatpush1.bf16.xpose.msra.mxu0 %v1766
        %1860 = vmatprep.subr.bf16.mxu0 0
        %1861 = vmatpush1.bf16.xpose.msra.mxu0 %v1769
        %1862 = vmatprep.subr.bf16.mxu0 0
        %1863 = vmatpush1.bf16.xpose.msra.mxu0 %v1772
        %1864 = vmatprep.subr.bf16.mxu0 0
        %1865 = vmatpush1.bf16.xpose.msra.mxu0 %v1775
        %1866 = vmatprep.subr.bf16.mxu0 0
        %1867 = vmatpush1.bf16.xpose.msra.mxu0 %v1778
        %1868 = vmatprep.subr.bf16.mxu0 0
        %1869 = vmatpush1.bf16.xpose.msra.mxu0 %v1781
        %1870 = vmatprep.subr.bf16.mxu0 0
        %1871 = vmatpush1.bf16.xpose.msra.mxu0 %v1784
        %1872 = vmatprep.subr.bf16.mxu0 0
        %1873 = vmatpush1.bf16.xpose.msra.mxu0 %v1787
        %1874 = vmatprep.subr.bf16.mxu0 0
        %1875 = vmatpush1.bf16.xpose.msra.mxu0 %v1790
        %1876 = vmatprep.subr.bf16.mxu0 0
        %1877 = vmatpush1.bf16.xpose.msra.mxu0 %v1793
        %1878 = vmatprep.mubr.bf16.mxu0 0
        %1879 = vmatmul.mubr.bf16.gmra.mrb[0].mxu0 %v1694
        %v1880 = vpop.f32.mrb[0].mxu0
        %v1881 = vadd.f32 %v1672, %v1880
        %v1882 = vpop.f32.mrb[0].mxu0
        %v1883 = vadd.f32 %v1672, %v1882
        %v1884 = vpop.f32.mrb[0].mxu0
        %v1885 = vadd.f32 %v1677, %v1884
        %v1886 = vpop.f32.mrb[0].mxu0
        %v1887 = vadd.f32 %v1677, %v1886
        %1888 = vmatprep.mubr.bf16.mxu0 0
        %1889 = vmatmul.mubr.bf16.gmra.mrb[0].mxu0 %v1697
        %v1890 = vpop.f32.mrb[0].mxu0
        %v1891 = vadd.f32 %v1682, %v1890
        %v1892 = vpop.f32.mrb[0].mxu0
        %v1893 = vadd.f32 %v1682, %v1892
        %v1894 = vpop.f32.mrb[0].mxu0
        %v1895 = vpop.f32.mrb[0].mxu0
        %1896 = vdwg.mxu0
        %v1897 = vmax.f32 %v1830, %v1881
        %v1898 = vmax.f32 %v1832, %v1883
        %v1899 = vmax.f32 %v1897, %v1898
        %1900 = vmax.xlane.f32.xlu0 %v1899
        %v1901 = vpop.xlane.xlu0 %1900
        %v1902 = vmax.f32 %v1834, %v1885
        %v1903 = vmax.f32 %v1836, %v1887
        %v1904 = vmax.f32 %v1902, %v1903
        %1905 = vmax.xlane.f32.xlu0 %v1904
        %v1906 = vpop.xlane.xlu0 %1905
        %vm1907 = vcmask 1040384
        %v1908 = vsel %vm1907, %v1840, -inf
        %v1909 = vsel %vm1907, %v1842, -inf
        %v1910 = vsel %vm1907, %v1891, -inf
        %v1911 = vmax.f32 %v1908, %v1910
        %v1912 = vsel %vm1907, %v1893, -inf
        %v1913 = vmax.f32 %v1909, %v1912
        %v1914 = vmax.f32 %v1911, %v1913
        %1915 = vmax.xlane.f32.xlu0 %v1914
        %v1916 = vpop.xlane.xlu0 %1915
        %v1917 = vsub.f32 %v1830, %v1901
        %v1918 = vsub.f32 %v1832, %v1901
        %v1919 = vsub.f32 %v1881, %v1901
        %v1920 = vsub.f32 %v1883, %v1901
        %v1921 = vsub.f32 %v1834, %v1906
        %v1922 = vsub.f32 %v1836, %v1906
        %v1923 = vsub.f32 %v1885, %v1906
        %v1924 = vsub.f32 %v1887, %v1906
        %v1925 = vsub.f32 %v1840, %v1916
        %v1926 = vsub.f32 %v1842, %v1916
        %v1927 = vsub.f32 %v1891, %v1916
        %v1928 = vsub.f32 %v1893, %v1916
        %v1929 = vmul.f32 %v1917, 1.442695
        %v1930 = vpow.pop %v1929
        %v1931 = vmul.f32 %v1918, 1.442695
        %v1932 = vpow.pop %v1931
        %v1933 = vmul.f32 %v1919, 1.442695
        %v1934 = vpow.pop %v1933
        %v1935 = vmul.f32 %v1920, 1.442695
        %v1936 = vpow.pop %v1935
        %v1937 = vmul.f32 %v1921, 1.442695
        %v1938 = vpow.pop %v1937
        %v1939 = vmul.f32 %v1922, 1.442695
        %v1940 = vpow.pop %v1939
        %v1941 = vmul.f32 %v1923, 1.442695
        %v1942 = vpow.pop %v1941
        %v1943 = vmul.f32 %v1924, 1.442695
        %v1944 = vpow.pop %v1943
        %v1945 = vmul.f32 %v1925, 1.442695
        %v1946 = vpow.pop %v1945
        %v1947 = vmul.f32 %v1926, 1.442695
        %v1948 = vpow.pop %v1947
        %v1949 = vmul.f32 %v1927, 1.442695
        %v1950 = vpow.pop %v1949
        %v1951 = vmul.f32 %v1928, 1.442695
        %v1952 = vpow.pop %v1951
        %v1953 = vadd.f32 %v1930, %v1932
        %v1954 = vadd.f32 %v1953, %v1934
        %v1955 = vadd.f32 %v1954, %v1936
        %1956 = vadd.xlane.f32.xlu0 %v1955
        %v1957 = vpop.xlane.xlu0 %1956
        %v1958 = vadd.f32 %v1938, %v1940
        %v1959 = vadd.f32 %v1958, %v1942
        %v1960 = vadd.f32 %v1959, %v1944
        %1961 = vadd.xlane.f32.xlu0 %v1960
        %v1962 = vpop.xlane.xlu0 %1961
        %v1963 = vsel %vm1907, %v1946, 0.0
        %v1964 = vsel %vm1907, %v1948, 0.0
        %v1965 = vadd.f32 %v1963, %v1964
        %v1966 = vsel %vm1907, %v1950, 0.0
        %v1967 = vadd.f32 %v1965, %v1966
        %v1968 = vsel %vm1907, %v1952, 0.0
        %v1969 = vadd.f32 %v1967, %v1968
        %1970 = vadd.xlane.f32.xlu0 %v1969
        %v1971 = vpop.xlane.xlu0 %1970
        %v1972 = vrcp.pop %v1957
        %v1973 = vmul.f32 %v1930, %v1972
        %v1974 = vmul.f32 %v1932, %v1972
        %v1975 = vmul.f32 %v1934, %v1972
        %v1976 = vmul.f32 %v1936, %v1972
        %v1977 = vrcp.pop %v1962
        %v1978 = vmul.f32 %v1938, %v1977
        %v1979 = vmul.f32 %v1940, %v1977
        %v1980 = vmul.f32 %v1942, %v1977
        %v1981 = vmul.f32 %v1944, %v1977
        %v1982 = vrcp.pop %v1971
        %v1983 = vmul.f32 %v1946, %v1982
        %v1984 = vmul.f32 %v1948, %v1982
        %v1985 = vmul.f32 %v1950, %v1982
        %v1986 = vmul.f32 %v1952, %v1982
        %1987 = vst [vmem:[%s386] sm:$0xff] %v1973
        %1988 = vst [vmem:[%s386 + $0x8] sm:$0xff] %v1974
        %1989 = vst [vmem:[%s386 + $0x10] sm:$0xff] %v1975
        %1990 = vst [vmem:[%s386 + $0x18] sm:$0xff] %v1976
        %1991 = vst [vmem:[%s386 + $0x20] sm:$0xff] %v1978
        %1992 = vst [vmem:[%s386 + $0x28] sm:$0xff] %v1979
        %1993 = vst [vmem:[%s386 + $0x30] sm:$0xff] %v1980
        %1994 = vst [vmem:[%s386 + $0x38] sm:$0xff] %v1981
        %1995 = vst [vmem:[%s386 + $0x40] sm:$0x1] %v1983
        %1996 = vst [vmem:[%s386 + $0x48] sm:$0x1] %v1984
        %1997 = vst [vmem:[%s386 + $0x50] sm:$0x1] %v1985
        %1998 = vst [vmem:[%s386 + $0x58] sm:$0x1] %v1986
        %v1999 = vld [vmem:[%s343] sm:$0xff]
        %v2000 = vld [vmem:[%s343 + $0x8] sm:$0xff]
        %v2001 = vld [vmem:[%s343 + $0x10] sm:$0xff]
        %v2002 = vld [vmem:[%s343 + $0x18] sm:$0xff]
        %v2003 = vld [vmem:[%s343 + $0x20] sm:$0xff]
        %v2004 = vld [vmem:[%s343 + $0x28] sm:$0xff]
        %v2005 = vld [vmem:[%s343 + $0x30] sm:$0xff]
        %v2006 = vld [vmem:[%s343 + $0x38] sm:$0xff]
        %v2007 = vld [vmem:[%s343 + $0x40] sm:$0xff]
        %v2008 = vld [vmem:[%s343 + $0x48] sm:$0xff]
        %v2009 = vld [vmem:[%s343 + $0x50] sm:$0xff]
        %v2010 = vld [vmem:[%s343 + $0x58] sm:$0xff]
        %v2011 = vld [vmem:[%s343 + $0x60] sm:$0xff]
        %v2012 = vld [vmem:[%s343 + $0x68] sm:$0xff]
        %v2013 = vld [vmem:[%s343 + $0x70] sm:$0xff]
        %v2014 = vld [vmem:[%s343 + $0x78] sm:$0xff]
        %v2015 = vld [vmem:[%s343 + $0x80] sm:$0xff]
        %v2016 = vld [vmem:[%s343 + $0x88] sm:$0xff]
        %v2017 = vld [vmem:[%s343 + $0x90] sm:$0xff]
        %v2018 = vld [vmem:[%s343 + $0x98] sm:$0xff]
        %v2019 = vld [vmem:[%s343 + $0xa0] sm:$0xff]
        %v2020 = vld [vmem:[%s343 + $0xa8] sm:$0xff]
        %v2021 = vld [vmem:[%s343 + $0xb0] sm:$0xff]
        %v2022 = vld [vmem:[%s343 + $0xb8] sm:$0xff]
        %v2023 = vld [vmem:[%s343 + $0xc0] sm:$0xff]
        %v2024 = vld [vmem:[%s343 + $0xc8] sm:$0xff]
        %v2025 = vld [vmem:[%s343 + $0xd0] sm:$0xff]
        %v2026 = vld [vmem:[%s343 + $0xd8] sm:$0xff]
        %v2027 = vld [vmem:[%s343 + $0xe0] sm:$0xff]
        %v2028 = vld [vmem:[%s343 + $0xe8] sm:$0xff]
        %v2029 = vld [vmem:[%s343 + $0xf0] sm:$0xff]
        %v2030 = vld [vmem:[%s343 + $0xf8] sm:$0xff]
        %v2031 = vld [vmem:[%s343 + $0x100] sm:$0xff]
        %v2032 = vld [vmem:[%s343 + $0x108] sm:$0xff]
        %v2033 = vld [vmem:[%s343 + $0x110] sm:$0xff]
        %v2034 = vld [vmem:[%s343 + $0x118] sm:$0xff]
        %v2035 = vld [vmem:[%s343 + $0x120] sm:$0xff]
        %v2036 = vld [vmem:[%s343 + $0x128] sm:$0xff]
        %v2037 = vld [vmem:[%s343 + $0x130] sm:$0xff]
        %v2038 = vld [vmem:[%s343 + $0x138] sm:$0xff]
        %v2039 = vld [vmem:[%s343 + $0x140] sm:$0xff]
        %v2040 = vld [vmem:[%s343 + $0x148] sm:$0xff]
        %v2041 = vld [vmem:[%s343 + $0x150] sm:$0xff]
        %v2042 = vld [vmem:[%s343 + $0x158] sm:$0xff]
        %v2043 = vld [vmem:[%s343 + $0x160] sm:$0xff]
        %v2044 = vld [vmem:[%s343 + $0x168] sm:$0xff]
        %v2045 = vld [vmem:[%s343 + $0x170] sm:$0xff]
        %v2046 = vld [vmem:[%s343 + $0x178] sm:$0xff]
        %v2047 = vld [vmem:[%s343 + $0x180] sm:$0xff]
        %v2048 = vld [vmem:[%s343 + $0x188] sm:$0xff]
        %v2049 = vld [vmem:[%s343 + $0x190] sm:$0xff]
        %v2050 = vld [vmem:[%s343 + $0x198] sm:$0xff]
        %v2051 = vld [vmem:[%s343 + $0x1a0] sm:$0xff]
        %v2052 = vld [vmem:[%s343 + $0x1a8] sm:$0xff]
        %v2053 = vld [vmem:[%s343 + $0x1b0] sm:$0xff]
        %v2054 = vld [vmem:[%s343 + $0x1b8] sm:$0xff]
        %v2055 = vld [vmem:[%s343 + $0x1c0] sm:$0xff]
        %v2056 = vld [vmem:[%s343 + $0x1c8] sm:$0xff]
        %v2057 = vld [vmem:[%s343 + $0x1d0] sm:$0xff]
        %v2058 = vld [vmem:[%s343 + $0x1d8] sm:$0xff]
        %v2059 = vld [vmem:[%s343 + $0x1e0] sm:$0xff]
        %v2060 = vld [vmem:[%s343 + $0x1e8] sm:$0xff]
        %v2061 = vld [vmem:[%s343 + $0x1f0] sm:$0xff]
        %v2062 = vld [vmem:[%s343 + $0x1f8] sm:$0xff]
        %2063 = vmatprep.subr.mxu0 0.0
        %2064 = vmatpush1.msra.mxu0 %v1999
        %2065 = vmatprep.subr.mxu0 0.0
        %2066 = vmatpush1.msra.mxu0 %v2000
        %2067 = vmatprep.subr.mxu0 0.0
        %2068 = vmatpush1.msra.mxu0 %v2001
        %2069 = vmatprep.subr.mxu0 0.0
        %2070 = vmatpush1.msra.mxu0 %v2002
        %2071 = vmatprep.subr.mxu0 0.0
        %2072 = vmatpush1.msra.mxu0 %v2003
        %2073 = vmatprep.subr.mxu0 0.0
        %2074 = vmatpush1.msra.mxu0 %v2004
        %2075 = vmatprep.subr.mxu0 0.0
        %2076 = vmatpush1.msra.mxu0 %v2005
        %2077 = vmatprep.subr.mxu0 0.0
        %2078 = vmatpush1.msra.mxu0 %v2006
        %2079 = vmatprep.subr.mxu0 0.0
        %2080 = vmatpush1.msra.mxu0 %v2007
        %2081 = vmatprep.subr.mxu0 0.0
        %2082 = vmatpush1.msra.mxu0 %v2008
        %2083 = vmatprep.subr.mxu0 0.0
        %2084 = vmatpush1.msra.mxu0 %v2009
        %2085 = vmatprep.subr.mxu0 0.0
        %2086 = vmatpush1.msra.mxu0 %v2010
        %2087 = vmatprep.subr.mxu0 0.0
        %2088 = vmatpush1.msra.mxu0 %v2011
        %2089 = vmatprep.subr.mxu0 0.0
        %2090 = vmatpush1.msra.mxu0 %v2012
        %2091 = vmatprep.subr.mxu0 0.0
        %2092 = vmatpush1.msra.mxu0 %v2013
        %2093 = vmatprep.subr.mxu0 0.0
        %2094 = vmatpush1.msra.mxu0 %v2014
        %2095 = vmatprep.subr.mxu0 0.0
        %2096 = vmatpush1.msra.mxu0 %v2015
        %2097 = vmatprep.subr.mxu0 0.0
        %2098 = vmatpush1.msra.mxu0 %v2016
        %2099 = vmatprep.subr.mxu0 0.0
        %2100 = vmatpush1.msra.mxu0 %v2017
        %2101 = vmatprep.subr.mxu0 0.0
        %2102 = vmatpush1.msra.mxu0 %v2018
        %2103 = vmatprep.subr.mxu0 0.0
        %2104 = vmatpush1.msra.mxu0 %v2019
        %2105 = vmatprep.subr.mxu0 0.0
        %2106 = vmatpush1.msra.mxu0 %v2020
        %2107 = vmatprep.subr.mxu0 0.0
        %2108 = vmatpush1.msra.mxu0 %v2021
        %2109 = vmatprep.subr.mxu0 0.0
        %2110 = vmatpush1.msra.mxu0 %v2022
        %2111 = vmatprep.subr.mxu0 0.0
        %2112 = vmatpush1.msra.mxu0 %v2023
        %2113 = vmatprep.subr.mxu0 0.0
        %2114 = vmatpush1.msra.mxu0 %v2024
        %2115 = vmatprep.subr.mxu0 0.0
        %2116 = vmatpush1.msra.mxu0 %v2025
        %2117 = vmatprep.subr.mxu0 0.0
        %2118 = vmatpush1.msra.mxu0 %v2026
        %2119 = vmatprep.subr.mxu0 0.0
        %2120 = vmatpush1.msra.mxu0 %v2027
        %2121 = vmatprep.subr.mxu0 0.0
        %2122 = vmatpush1.msra.mxu0 %v2028
        %2123 = vmatprep.subr.mxu0 0.0
        %2124 = vmatpush1.msra.mxu0 %v2029
        %2125 = vmatprep.subr.mxu0 0.0
        %2126 = vmatpush1.msra.mxu0 %v2030
        %2127 = vmatprep.mubr.f32.mxu0 %v1974
        %2128 = vmatmul.mubr.f32.gmra.mrb[0].mxu0 %v1973
        %v2129 = vpop.f32.mrb[0].mxu0
        %v2130 = vadd.f32 0.0, %v2129
        %v2131 = vpop.f32.mrb[0].mxu0
        %2132 = vmatprep.mubr.f32.mxu0 %v1979
        %2133 = vmatmul.mubr.f32.gmra.mrb[0].mxu0 %v1978
        %v2134 = vpop.f32.mrb[0].mxu0
        %v2135 = vadd.f32 0.0, %v2134
        %v2136 = vpop.f32.mrb[0].mxu0
        %2137 = vmatprep.mubr.f32.mxu0 %v1984
        %2138 = vmatmul.mubr.f32.gmra.mrb[0].mxu0 %v1983
        %v2139 = vpop.f32.mrb[0].mxu0
        %v2140 = vadd.f32 0.0, %v2139
        %v2141 = vpop.f32.mrb[0].mxu0
        %2142 = vdwg.mxu0
        %2143 = vmatprep.subr.mxu0 0.0
        %2144 = vmatpush1.msra.mxu0 %v2031
        %2145 = vmatprep.subr.mxu0 0.0
        %2146 = vmatpush1.msra.mxu0 %v2032
        %2147 = vmatprep.subr.mxu0 0.0
        %2148 = vmatpush1.msra.mxu0 %v2033
        %2149 = vmatprep.subr.mxu0 0.0
        %2150 = vmatpush1.msra.mxu0 %v2034
        %2151 = vmatprep.subr.mxu0 0.0
        %2152 = vmatpush1.msra.mxu0 %v2035
        %2153 = vmatprep.subr.mxu0 0.0
        %2154 = vmatpush1.msra.mxu0 %v2036
        %2155 = vmatprep.subr.mxu0 0.0
        %2156 = vmatpush1.msra.mxu0 %v2037
        %2157 = vmatprep.subr.mxu0 0.0
        %2158 = vmatpush1.msra.mxu0 %v2038
        %2159 = vmatprep.subr.mxu0 0.0
        %2160 = vmatpush1.msra.mxu0 %v2039
        %2161 = vmatprep.subr.mxu0 0.0
        %2162 = vmatpush1.msra.mxu0 %v2040
        %2163 = vmatprep.subr.mxu0 0.0
        %2164 = vmatpush1.msra.mxu0 %v2041
        %2165 = vmatprep.subr.mxu0 0.0
        %2166 = vmatpush1.msra.mxu0 %v2042
        %2167 = vmatprep.subr.mxu0 0.0
        %2168 = vmatpush1.msra.mxu0 %v2043
        %2169 = vmatprep.subr.mxu0 0.0
        %2170 = vmatpush1.msra.mxu0 %v2044
        %2171 = vmatprep.subr.mxu0 0.0
        %2172 = vmatpush1.msra.mxu0 %v2045
        %2173 = vmatprep.subr.mxu0 0.0
        %2174 = vmatpush1.msra.mxu0 %v2046
        %2175 = vmatprep.subr.mxu0 0.0
        %2176 = vmatpush1.msra.mxu0 %v2047
        %2177 = vmatprep.subr.mxu0 0.0
        %2178 = vmatpush1.msra.mxu0 %v2048
        %2179 = vmatprep.subr.mxu0 0.0
        %2180 = vmatpush1.msra.mxu0 %v2049
        %2181 = vmatprep.subr.mxu0 0.0
        %2182 = vmatpush1.msra.mxu0 %v2050
        %2183 = vmatprep.subr.mxu0 0.0
        %2184 = vmatpush1.msra.mxu0 %v2051
        %2185 = vmatprep.subr.mxu0 0.0
        %2186 = vmatpush1.msra.mxu0 %v2052
        %2187 = vmatprep.subr.mxu0 0.0
        %2188 = vmatpush1.msra.mxu0 %v2053
        %2189 = vmatprep.subr.mxu0 0.0
        %2190 = vmatpush1.msra.mxu0 %v2054
        %2191 = vmatprep.subr.mxu0 0.0
        %2192 = vmatpush1.msra.mxu0 %v2055
        %2193 = vmatprep.subr.mxu0 0.0
        %2194 = vmatpush1.msra.mxu0 %v2056
        %2195 = vmatprep.subr.mxu0 0.0
        %2196 = vmatpush1.msra.mxu0 %v2057
        %2197 = vmatprep.subr.mxu0 0.0
        %2198 = vmatpush1.msra.mxu0 %v2058
        %2199 = vmatprep.subr.mxu0 0.0
        %2200 = vmatpush1.msra.mxu0 %v2059
        %2201 = vmatprep.subr.mxu0 0.0
        %2202 = vmatpush1.msra.mxu0 %v2060
        %2203 = vmatprep.subr.mxu0 0.0
        %2204 = vmatpush1.msra.mxu0 %v2061
        %2205 = vmatprep.subr.mxu0 0.0
        %2206 = vmatpush1.msra.mxu0 %v2062
        %2207 = vmatprep.mubr.f32.mxu0 %v1976
        %2208 = vmatmul.mubr.f32.gmra.mrb[0].mxu0 %v1975
        %v2209 = vpop.f32.mrb[0].mxu0
        %v2210 = vadd.f32 %v2130, %v2209
        %v2211 = vpop.f32.mrb[0].mxu0
        %2212 = vmatprep.mubr.f32.mxu0 %v1981
        %2213 = vmatmul.mubr.f32.gmra.mrb[0].mxu0 %v1980
        %v2214 = vpop.f32.mrb[0].mxu0
        %v2215 = vadd.f32 %v2135, %v2214
        %v2216 = vpop.f32.mrb[0].mxu0
        %2217 = vmatprep.mubr.f32.mxu0 %v1986
        %2218 = vmatmul.mubr.f32.gmra.mrb[0].mxu0 %v1985
        %v2219 = vpop.f32.mrb[0].mxu0
        %v2220 = vadd.f32 %v2140, %v2219
        %v2221 = vpop.f32.mrb[0].mxu0
        %2222 = vdwg.mxu0
        %vm2223 = vcmask 23552
        %2224 = vst.msk [vmem:[%s379] sm:$0xff] %vm2223, %v2210
        %2225 = vst.msk [vmem:[%s379 + $0x8] sm:$0xff] %vm2223, %v2215
        %vm2226 = vcmask 16384
        %2227 = vst.msk [vmem:[%s379 + $0x10] sm:$0x1] %vm2226, %v2220
        %s2228 = sand.u32 %s159, 1
        %s2229 = scalar_lea.sflag [#allocation4], %s2228
        %s2230 = sand.u32 %s159, 1
        %s2231 = smul.addr %s2230, 24
        %s2232 = scalar_lea.vmem [#allocation11], %s2231
        %s2233 = sand.u32 %s185, 1
        %s2234 = scalar_lea.sflag [#allocation13], %s2233
        %s2235 = sand.u32 %s185, 1
        %s2236 = smul.addr %s2235, 96
        %s2237 = scalar_lea.vmem [#allocation12], %s2236
        // Predicated region
        $region61: #{forward.3} parent=39 // pred_check
          %p2238 = pneg %p169
        $region62: #{forward.3} parent=39 // pred_check_branch
          %2240 = sbr.rel (%p2238) target = $region64
        $region63: #{forward.3} parent=39 // pred_region
          %s2242 = ssub.s32 384, 384
          %2243 = vsyncadd %s2229, %s2242
          %s2244 = smul.addr %s31, 3
          %s2245 = smul.addr %s2244, 128
          %s2246 = scalar_lea.hbm %s5, %s2245
          %s2247 = sshll.u32 %s2232, 4
          %s2248 = int_to_ptr.vmem [resolvable:$true] %s2247
          %2253 = dma.vmem_to_hbm [thread:$0]  %s2248, 384, %s2246, %s2229, 128, 128, 8
        $region64: #{forward.3} parent=39 // pred_fallthru
          _
        // Predicated region
        $region65: #{forward.3} parent=39 // pred_check
          %p2254 = pneg %p195
        $region66: #{forward.3} parent=39 // pred_check_branch
          %2256 = sbr.rel (%p2254) target = $region68
        $region67: #{forward.3} parent=39 // pred_region
          %s2258 = ssub.s32 1536, 1536
          %2259 = vsyncadd %s2234, %s2258
          %s2260 = smul.addr %s31, 12
          %s2261 = smul.addr %s2260, 128
          %s2262 = scalar_lea.hbm %s6, %s2261
          %s2263 = sshll.u32 %s2237, 4
          %s2264 = int_to_ptr.vmem [resolvable:$true] %s2263
          %2269 = dma.vmem_to_hbm [thread:$0]  %s2264, 1536, %s2262, %s2234, 512, 512, 32
        $region68: #{forward.3} parent=39 // pred_fallthru
          _
      $region40: #{forward.3} parent=5 // pred_fallthru
        _
      %p2270 = scmp.le.s32.totalorder 2, %s26
      // Predicated region
      $region69: #{forward.3} parent=5 // pred_check
        %p2271 = pneg %p2270
      $region70: #{forward.3} parent=5 // pred_check_branch
        %2273 = sbr.rel (%p2271) target = $region72
      $region71: #{forward.3} parent=5 // pred_region
        %s2274 = ssub.s32 %s26, 2
        // Predicated region
        $region73: #{forward.3} parent=71 // pred_check
          %p2275 = pneg %p175
        $region74: #{forward.3} parent=71 // pred_check_branch
          %2277 = sbr.rel (%p2275) target = $region76
        $region75: #{forward.3} parent=71 // pred_region
          %s2278 = sand.u32 %s160, 1
          %s2279 = scalar_lea.sflag [#allocation4], %s2278
          %s2280 = sand.u32 %s160, 1
          %s2281 = smul.addr %s2280, 24
          %s2282 = scalar_lea.vmem [#allocation11], %s2281
          %2283 = dma.done %s2279, 384
        $region76: #{forward.3} parent=71 // pred_fallthru
          _
        // Predicated region
        $region77: #{forward.3} parent=71 // pred_check
          %p2284 = pneg %p201
        $region78: #{forward.3} parent=71 // pred_check_branch
          %2286 = sbr.rel (%p2284) target = $region80
        $region79: #{forward.3} parent=71 // pred_region
          %s2287 = sand.u32 %s186, 1
          %s2288 = scalar_lea.sflag [#allocation13], %s2287
          %s2289 = sand.u32 %s186, 1
          %s2290 = smul.addr %s2289, 96
          %s2291 = scalar_lea.vmem [#allocation12], %s2290
          %2292 = dma.done %s2288, 1536
        $region80: #{forward.3} parent=71 // pred_fallthru
          _
      $region72: #{forward.3} parent=5 // pred_fallthru
        _
    $region6: #{forward.3} parent=1 // loop_footer
      %s30 = sadd.s32 1, %s26
    $region7: #{forward.3} parent=1 // loop_footer_branch
      %25 = sbr.rel target = $region3
    $region8: #{forward.3} parent=1 // loop_exit
      _
    %2293 = vsyncpa [#allocation3], 1
    %s2294 = scalar_lea.sflag [#allocation3], 1
    %2295 = vsyncpa %s2294, 1
    %2296 = vsyncpa [#allocation6], 1
    %s2297 = scalar_lea.sflag [#allocation6], 1
    %2298 = vsyncpa %s2297, 1
    %2299 = vsyncpa [#allocation9], 1
    %2300 = vsyncpa [#allocation4], 1
    %s2301 = scalar_lea.sflag [#allocation4], 1
    %2302 = vsyncpa %s2301, 1
    %2303 = vsyncpa [#allocation13], 1
    %s2304 = scalar_lea.sflag [#allocation13], 1
    %2305 = vsyncpa %s2304, 1

// kernel: forward.2
$region0: #{forward.2}
  #allocation0 [shape = 'u32[]', space=smem, size = 0x4, offset = 0x4, fixed_abs, tag = 'smem constant byte address 0x4 - core index']
  #allocation1 [shape = 'u32[144,128]{1,0:T(1,128)}', space=vmem, size = 0x12000, scoped, tag = 'internal scratch']
  %s0 = inlined_call_operand.hbm [shape: f32[4,64,3], index: 0, kind: input, shape index: {}]
  %s1 = inlined_call_operand.hbm [shape: f32[3,256], index: 1, kind: input, shape index: {}]
  %s2 = inlined_call_operand.hbm [shape: f32[1,256], index: 2, kind: input, shape index: {}]
  %s3 = inlined_call_operand.hbm [shape: bf16[256,17], index: 3, kind: input, shape index: {}]
  %s4 = inlined_call_operand.hbm [shape: f32[1,17], index: 4, kind: input, shape index: {}]
  %s5 = inlined_call_operand.hbm [shape: bf16[256,256], index: 5, kind: input, shape index: {}]
  %s6 = inlined_call_operand.hbm [shape: f32[1,256], index: 6, kind: input, shape index: {}]
  %s7 = inlined_call_operand.hbm [shape: bf16[256,256], index: 7, kind: input, shape index: {}]
  %s8 = inlined_call_operand.hbm [shape: f32[1,256], index: 8, kind: input, shape index: {}]
  %s9 = inlined_call_operand.hbm [shape: bf16[256,256], index: 9, kind: input, shape index: {}]
  %s10 = inlined_call_operand.hbm [shape: f32[1,256], index: 10, kind: input, shape index: {}]
  %s11 = inlined_call_operand.hbm [shape: bf16[256,256], index: 11, kind: input, shape index: {}]
  %s12 = inlined_call_operand.hbm [shape: f32[1,256], index: 12, kind: input, shape index: {}]
  %s13 = inlined_call_operand.hbm [shape: bf16[256,256], index: 13, kind: input, shape index: {}]
  %s14 = inlined_call_operand.hbm [shape: bf16[256,256], index: 14, kind: input, shape index: {}]
  %s15 = inlined_call_operand.hbm [shape: f32[1,256], index: 15, kind: input, shape index: {}]
  %s16 = inlined_call_operand.hbm [shape: bf16[256,32], index: 16, kind: input, shape index: {}]
  %s17 = inlined_call_operand.hbm [shape: f32[1,32], index: 17, kind: input, shape index: {}]
  %s18 = inlined_call_operand.hbm [shape: f32[4,64,32], index: 18, kind: output, shape index: {}]
  %s19 = sld [smem:[#allocation0]]
  $region177: #{forward.2} parent=0
    _
  %s21 = ssub.s32 1, %s19
  %s22 = scalar_select 0, %s21, %s19
  $region1: #{forward.2} parent=0
    #allocation2 [shape = 'u8[65536]{0}', space=vmem, size = 0x10000, scoped, tag = 'input window, operand 0']
    #allocation3 [shape = 's32[2]{0}', space=sflag, size = 0x8, scoped, tag = 'scoped memory for forward.2']
    #allocation4 [shape = 's32[2]{0}', space=sflag, size = 0x8, scoped, tag = 'scoped memory for forward.2']
    #allocation5 [shape = 'u8[4096]{0}', space=vmem, size = 0x1000, scoped, tag = 'input window, operand 1, single buffered']
    #allocation6 [shape = 's32[1]{0}', space=sflag, size = 0x4, scoped, tag = 'scoped memory for forward.2']
    #allocation7 [shape = 'u8[1024]{0}', space=vmem, size = 0x400, scoped, tag = 'input window, operand 2, single buffered']
    #allocation8 [shape = 'u8[65536]{0}', space=vmem, size = 0x10000, scoped, tag = 'input window, operand 3, single buffered']
    #allocation9 [shape = 's32[1]{0}', space=sflag, size = 0x4, scoped, tag = 'scoped memory for forward.2']
    #allocation10 [shape = 'u8[512]{0}', space=vmem, size = 0x400, scoped, tag = 'input window, operand 4, single buffered']
    #allocation11 [shape = 'u8[131072]{0}', space=vmem, size = 0x20000, scoped, tag = 'input window, operand 5, single buffered']
    #allocation12 [shape = 's32[1]{0}', space=sflag, size = 0x4, scoped, tag = 'scoped memory for forward.2']
    #allocation13 [shape = 'u8[1024]{0}', space=vmem, size = 0x400, scoped, tag = 'input window, operand 6, single buffered']
    #allocation14 [shape = 'u8[131072]{0}', space=vmem, size = 0x20000, scoped, tag = 'input window, operand 7, single buffered']
    #allocation15 [shape = 's32[1]{0}', space=sflag, size = 0x4, scoped, tag = 'scoped memory for forward.2']
    #allocation16 [shape = 'u8[1024]{0}', space=vmem, size = 0x400, scoped, tag = 'input window, operand 8, single buffered']
    #allocation17 [shape = 'u8[131072]{0}', space=vmem, size = 0x20000, scoped, tag = 'input window, operand 9, single buffered']
    #allocation18 [shape = 's32[1]{0}', space=sflag, size = 0x4, scoped, tag = 'scoped memory for forward.2']
    #allocation19 [shape = 'u8[1024]{0}', space=vmem, size = 0x400, scoped, tag = 'input window, operand 10, single buffered']
    #allocation20 [shape = 'u8[131072]{0}', space=vmem, size = 0x20000, scoped, tag = 'input window, operand 11, single buffered']
    #allocation21 [shape = 's32[1]{0}', space=sflag, size = 0x4, scoped, tag = 'scoped memory for forward.2']
    #allocation22 [shape = 'u8[1024]{0}', space=vmem, size = 0x400, scoped, tag = 'input window, operand 12, single buffered']
    #allocation23 [shape = 'u8[131072]{0}', space=vmem, size = 0x20000, scoped, tag = 'input window, operand 13, single buffered']
    #allocation24 [shape = 's32[1]{0}', space=sflag, size = 0x4, scoped, tag = 'scoped memory for forward.2']
    #allocation25 [shape = 'u8[131072]{0}', space=vmem, size = 0x20000, scoped, tag = 'input window, operand 14, single buffered']
    #allocation26 [shape = 'u8[1024]{0}', space=vmem, size = 0x400, scoped, tag = 'input window, operand 15, single buffered']
    #allocation27 [shape = 's32[1]{0}', space=sflag, size = 0x4, scoped, tag = 'scoped memory for forward.2']
    #allocation28 [shape = 'u8[65536]{0}', space=vmem, size = 0x10000, scoped, tag = 'input window, operand 16, single buffered']
    #allocation29 [shape = 'u8[512]{0}', space=vmem, size = 0x400, scoped, tag = 'input window, operand 17, single buffered']
    #allocation30 [shape = 's32[1]{0}', space=sflag, size = 0x4, scoped, tag = 'scoped memory for forward.2']
    #allocation31 [shape = 'u8[65536]{0}', space=vmem, size = 0x10000, scoped, tag = 'output window, operand 0']
    %23 = vsyncpa [#allocation3], 0
    %s24 = scalar_lea.sflag [#allocation3], 1
    %25 = vsyncpa %s24, 0
    %26 = vsyncpa [#allocation6], 0
    %27 = vsyncpa [#allocation9], 0
    %28 = vsyncpa [#allocation12], 0
    %29 = vsyncpa [#allocation15], 0
    %30 = vsyncpa [#allocation18], 0
    %31 = vsyncpa [#allocation21], 0
    %32 = vsyncpa [#allocation24], 0
    %33 = vsyncpa [#allocation27], 0
    %34 = vsyncpa [#allocation30], 0
    %35 = vsyncpa [#allocation4], 0
    %s36 = scalar_lea.sflag [#allocation4], 1
    %37 = vsyncpa %s36, 0
    loop: start=0, step=1, limit=6
    $region2: #{forward.2} parent=1 // loop_pre_header
      _
    $region3: #{forward.2} parent=1 // loop_header
      %s39 = sphi 0, %s43
      %p40 = scmp.ge.s32.totalorder %s39, 6
      %s49 = sphi 0, %s51
      %s52 = sphi 0, %s49
      %s53 = sphi 0, %s52
      %s69 = sphi 0, %s53
      %s73 = sphi 0, %s73
      %s75 = sphi 0, %s73
      %s76 = sphi 0, %s75
      %s90 = sphi 0, %s76
      %s94 = sphi 0, %s94
      %s96 = sphi 0, %s94
      %s97 = sphi 0, %s96
      %s111 = sphi 0, %s97
      %s115 = sphi 0, %s115
      %s117 = sphi 0, %s115
      %s118 = sphi 0, %s117
      %s132 = sphi 0, %s118
      %s136 = sphi 0, %s136
      %s138 = sphi 0, %s136
      %s139 = sphi 0, %s138
      %s153 = sphi 0, %s139
      %s157 = sphi 0, %s157
      %s159 = sphi 0, %s157
      %s160 = sphi 0, %s159
      %s174 = sphi 0, %s160
      %s178 = sphi 0, %s178
      %s180 = sphi 0, %s178
      %s181 = sphi 0, %s180
      %s195 = sphi 0, %s181
      %s199 = sphi 0, %s199
      %s201 = sphi 0, %s199
      %s202 = sphi 0, %s201
      %s216 = sphi 0, %s202
      %s220 = sphi 0, %s220
      %s222 = sphi 0, %s220
      %s223 = sphi 0, %s222
      %s237 = sphi 0, %s223
      %s241 = sphi 0, %s241
      %s243 = sphi 0, %s241
      %s244 = sphi 0, %s243
      %s258 = sphi 0, %s244
      %s262 = sphi 0, %s262
      %s264 = sphi 0, %s262
      %s265 = sphi 0, %s264
      %s279 = sphi 0, %s265
      %s283 = sphi 0, %s283
      %s285 = sphi 0, %s283
      %s286 = sphi 0, %s285
      %s300 = sphi 0, %s286
      %s304 = sphi 0, %s304
      %s306 = sphi 0, %s304
      %s307 = sphi 0, %s306
      %s321 = sphi 0, %s307
      %s325 = sphi 0, %s325
      %s327 = sphi 0, %s325
      %s328 = sphi 0, %s327
      %s342 = sphi 0, %s328
      %s346 = sphi 0, %s346
      %s348 = sphi 0, %s346
      %s349 = sphi 0, %s348
      %s363 = sphi 0, %s349
      %s367 = sphi 0, %s367
      %s369 = sphi 0, %s367
      %s370 = sphi 0, %s369
      %s384 = sphi 0, %s370
      %s388 = sphi 0, %s388
      %s390 = sphi 0, %s388
      %s391 = sphi 0, %s390
      %s405 = sphi 0, %s391
      %s409 = sphi 0, %s409
      %s411 = sphi 0, %s409
      %s412 = sphi 0, %s411
      %s426 = sphi 0, %s412
      %s432 = sphi 0, %s434
      %s435 = sphi 0, %s432
      %s436 = sphi 0, %s435
      %s452 = sphi 0, %s436
    $region4: #{forward.2} parent=1 // loop_header_branch
      %42 = sbr.rel (%p40) target = $region8
    $region5: #{forward.2} parent=1 // loop_body
      %s44 = ssub.s32 %s39, 1
      %s45 = ssub.s32 %s39, 2
      %s46 = sadd.s32 %s39, 1
      %s47 = ssub.s32 %s39, %s46
      %p48 = scmp.eq.s32.totalorder %s47, 0
      %s50 = sadd.s32 %s49, 1
      %s51 = scalar_select %p48, %s49, %s50
      %p54 = pneg %p48
      %p55 = scmp.eq.s32.totalorder %s39, 3
      %p56 = por %p54, %p55
      %p57 = scmp.ne.s32.totalorder %s49, %s52
      %p58 = scmp.eq.s32.totalorder %s39, 0
      %p59 = por %p57, %p58
      %p60 = scmp.ne.s32.totalorder %s49, %s52
      %p61 = scmp.eq.s32.totalorder %s44, 3
      %p62 = por %p60, %p61
      %p63 = scmp.ne.s32.totalorder %s52, %s53
      %p64 = scmp.eq.s32.totalorder %s44, 0
      %p65 = por %p63, %p64
      %p66 = scmp.ne.s32.totalorder %s52, %s53
      %p67 = scmp.eq.s32.totalorder %s45, 3
      %p68 = por %p66, %p67
      %p70 = scmp.ne.s32.totalorder %s53, %s69
      %p71 = scmp.eq.s32.totalorder %s45, 0
      %p72 = por %p70, %p71
      %s74 = sadd.s32 %s73, 1
      %p77 = scmp.eq.s32.totalorder %s39, 3
      %p78 = scmp.ne.s32.totalorder %s73, %s75
      %p79 = scmp.eq.s32.totalorder %s39, 0
      %p80 = por %p78, %p79
      %p81 = scmp.ne.s32.totalorder %s73, %s75
      %p82 = scmp.eq.s32.totalorder %s44, 3
      %p83 = por %p81, %p82
      %p84 = scmp.ne.s32.totalorder %s75, %s76
      %p85 = scmp.eq.s32.totalorder %s44, 0
      %p86 = por %p84, %p85
      %p87 = scmp.ne.s32.totalorder %s75, %s76
      %p88 = scmp.eq.s32.totalorder %s45, 3
      %p89 = por %p87, %p88
      %p91 = scmp.ne.s32.totalorder %s76, %s90
      %p92 = scmp.eq.s32.totalorder %s45, 0
      %p93 = por %p91, %p92
      %s95 = sadd.s32 %s94, 1
      %p98 = scmp.eq.s32.totalorder %s39, 3
      %p99 = scmp.ne.s32.totalorder %s94, %s96
      %p100 = scmp.eq.s32.totalorder %s39, 0
      %p101 = por %p99, %p100
      %p102 = scmp.ne.s32.totalorder %s94, %s96
      %p103 = scmp.eq.s32.totalorder %s44, 3
      %p104 = por %p102, %p103
      %p105 = scmp.ne.s32.totalorder %s96, %s97
      %p106 = scmp.eq.s32.totalorder %s44, 0
      %p107 = por %p105, %p106
      %p108 = scmp.ne.s32.totalorder %s96, %s97
      %p109 = scmp.eq.s32.totalorder %s45, 3
      %p110 = por %p108, %p109
      %p112 = scmp.ne.s32.totalorder %s97, %s111
      %p113 = scmp.eq.s32.totalorder %s45, 0
      %p114 = por %p112, %p113
      %s116 = sadd.s32 %s115, 1
      %p119 = scmp.eq.s32.totalorder %s39, 3
      %p120 = scmp.ne.s32.totalorder %s115, %s117
      %p121 = scmp.eq.s32.totalorder %s39, 0
      %p122 = por %p120, %p121
      %p123 = scmp.ne.s32.totalorder %s115, %s117
      %p124 = scmp.eq.s32.totalorder %s44, 3
      %p125 = por %p123, %p124
      %p126 = scmp.ne.s32.totalorder %s117, %s118
      %p127 = scmp.eq.s32.totalorder %s44, 0
      %p128 = por %p126, %p127
      %p129 = scmp.ne.s32.totalorder %s117, %s118
      %p130 = scmp.eq.s32.totalorder %s45, 3
      %p131 = por %p129, %p130
      %p133 = scmp.ne.s32.totalorder %s118, %s132
      %p134 = scmp.eq.s32.totalorder %s45, 0
      %p135 = por %p133, %p134
      %s137 = sadd.s32 %s136, 1
      %p140 = scmp.eq.s32.totalorder %s39, 3
      %p141 = scmp.ne.s32.totalorder %s136, %s138
      %p142 = scmp.eq.s32.totalorder %s39, 0
      %p143 = por %p141, %p142
      %p144 = scmp.ne.s32.totalorder %s136, %s138
      %p145 = scmp.eq.s32.totalorder %s44, 3
      %p146 = por %p144, %p145
      %p147 = scmp.ne.s32.totalorder %s138, %s139
      %p148 = scmp.eq.s32.totalorder %s44, 0
      %p149 = por %p147, %p148
      %p150 = scmp.ne.s32.totalorder %s138, %s139
      %p151 = scmp.eq.s32.totalorder %s45, 3
      %p152 = por %p150, %p151
      %p154 = scmp.ne.s32.totalorder %s139, %s153
      %p155 = scmp.eq.s32.totalorder %s45, 0
      %p156 = por %p154, %p155
      %s158 = sadd.s32 %s157, 1
      %p161 = scmp.eq.s32.totalorder %s39, 3
      %p162 = scmp.ne.s32.totalorder %s157, %s159
      %p163 = scmp.eq.s32.totalorder %s39, 0
      %p164 = por %p162, %p163
      %p165 = scmp.ne.s32.totalorder %s157, %s159
      %p166 = scmp.eq.s32.totalorder %s44, 3
      %p167 = por %p165, %p166
      %p168 = scmp.ne.s32.totalorder %s159, %s160
      %p169 = scmp.eq.s32.totalorder %s44, 0
      %p170 = por %p168, %p169
      %p171 = scmp.ne.s32.totalorder %s159, %s160
      %p172 = scmp.eq.s32.totalorder %s45, 3
      %p173 = por %p171, %p172
      %p175 = scmp.ne.s32.totalorder %s160, %s174
      %p176 = scmp.eq.s32.totalorder %s45, 0
      %p177 = por %p175, %p176
      %s179 = sadd.s32 %s178, 1
      %p182 = scmp.eq.s32.totalorder %s39, 3
      %p183 = scmp.ne.s32.totalorder %s178, %s180
      %p184 = scmp.eq.s32.totalorder %s39, 0
      %p185 = por %p183, %p184
      %p186 = scmp.ne.s32.totalorder %s178, %s180
      %p187 = scmp.eq.s32.totalorder %s44, 3
      %p188 = por %p186, %p187
      %p189 = scmp.ne.s32.totalorder %s180, %s181
      %p190 = scmp.eq.s32.totalorder %s44, 0
      %p191 = por %p189, %p190
      %p192 = scmp.ne.s32.totalorder %s180, %s181
      %p193 = scmp.eq.s32.totalorder %s45, 3
      %p194 = por %p192, %p193
      %p196 = scmp.ne.s32.totalorder %s181, %s195
      %p197 = scmp.eq.s32.totalorder %s45, 0
      %p198 = por %p196, %p197
      %s200 = sadd.s32 %s199, 1
      %p203 = scmp.eq.s32.totalorder %s39, 3
      %p204 = scmp.ne.s32.totalorder %s199, %s201
      %p205 = scmp.eq.s32.totalorder %s39, 0
      %p206 = por %p204, %p205
      %p207 = scmp.ne.s32.totalorder %s199, %s201
      %p208 = scmp.eq.s32.totalorder %s44, 3
      %p209 = por %p207, %p208
      %p210 = scmp.ne.s32.totalorder %s201, %s202
      %p211 = scmp.eq.s32.totalorder %s44, 0
      %p212 = por %p210, %p211
      %p213 = scmp.ne.s32.totalorder %s201, %s202
      %p214 = scmp.eq.s32.totalorder %s45, 3
      %p215 = por %p213, %p214
      %p217 = scmp.ne.s32.totalorder %s202, %s216
      %p218 = scmp.eq.s32.totalorder %s45, 0
      %p219 = por %p217, %p218
      %s221 = sadd.s32 %s220, 1
      %p224 = scmp.eq.s32.totalorder %s39, 3
      %p225 = scmp.ne.s32.totalorder %s220, %s222
      %p226 = scmp.eq.s32.totalorder %s39, 0
      %p227 = por %p225, %p226
      %p228 = scmp.ne.s32.totalorder %s220, %s222
      %p229 = scmp.eq.s32.totalorder %s44, 3
      %p230 = por %p228, %p229
      %p231 = scmp.ne.s32.totalorder %s222, %s223
      %p232 = scmp.eq.s32.totalorder %s44, 0
      %p233 = por %p231, %p232
      %p234 = scmp.ne.s32.totalorder %s222, %s223
      %p235 = scmp.eq.s32.totalorder %s45, 3
      %p236 = por %p234, %p235
      %p238 = scmp.ne.s32.totalorder %s223, %s237
      %p239 = scmp.eq.s32.totalorder %s45, 0
      %p240 = por %p238, %p239
      %s242 = sadd.s32 %s241, 1
      %p245 = scmp.eq.s32.totalorder %s39, 3
      %p246 = scmp.ne.s32.totalorder %s241, %s243
      %p247 = scmp.eq.s32.totalorder %s39, 0
      %p248 = por %p246, %p247
      %p249 = scmp.ne.s32.totalorder %s241, %s243
      %p250 = scmp.eq.s32.totalorder %s44, 3
      %p251 = por %p249, %p250
      %p252 = scmp.ne.s32.totalorder %s243, %s244
      %p253 = scmp.eq.s32.totalorder %s44, 0
      %p254 = por %p252, %p253
      %p255 = scmp.ne.s32.totalorder %s243, %s244
      %p256 = scmp.eq.s32.totalorder %s45, 3
      %p257 = por %p255, %p256
      %p259 = scmp.ne.s32.totalorder %s244, %s258
      %p260 = scmp.eq.s32.totalorder %s45, 0
      %p261 = por %p259, %p260
      %s263 = sadd.s32 %s262, 1
      %p266 = scmp.eq.s32.totalorder %s39, 3
      %p267 = scmp.ne.s32.totalorder %s262, %s264
      %p268 = scmp.eq.s32.totalorder %s39, 0
      %p269 = por %p267, %p268
      %p270 = scmp.ne.s32.totalorder %s262, %s264
      %p271 = scmp.eq.s32.totalorder %s44, 3
      %p272 = por %p270, %p271
      %p273 = scmp.ne.s32.totalorder %s264, %s265
      %p274 = scmp.eq.s32.totalorder %s44, 0
      %p275 = por %p273, %p274
      %p276 = scmp.ne.s32.totalorder %s264, %s265
      %p277 = scmp.eq.s32.totalorder %s45, 3
      %p278 = por %p276, %p277
      %p280 = scmp.ne.s32.totalorder %s265, %s279
      %p281 = scmp.eq.s32.totalorder %s45, 0
      %p282 = por %p280, %p281
      %s284 = sadd.s32 %s283, 1
      %p287 = scmp.eq.s32.totalorder %s39, 3
      %p288 = scmp.ne.s32.totalorder %s283, %s285
      %p289 = scmp.eq.s32.totalorder %s39, 0
      %p290 = por %p288, %p289
      %p291 = scmp.ne.s32.totalorder %s283, %s285
      %p292 = scmp.eq.s32.totalorder %s44, 3
      %p293 = por %p291, %p292
      %p294 = scmp.ne.s32.totalorder %s285, %s286
      %p295 = scmp.eq.s32.totalorder %s44, 0
      %p296 = por %p294, %p295
      %p297 = scmp.ne.s32.totalorder %s285, %s286
      %p298 = scmp.eq.s32.totalorder %s45, 3
      %p299 = por %p297, %p298
      %p301 = scmp.ne.s32.totalorder %s286, %s300
      %p302 = scmp.eq.s32.totalorder %s45, 0
      %p303 = por %p301, %p302
      %s305 = sadd.s32 %s304, 1
      %p308 = scmp.eq.s32.totalorder %s39, 3
      %p309 = scmp.ne.s32.totalorder %s304, %s306
      %p310 = scmp.eq.s32.totalorder %s39, 0
      %p311 = por %p309, %p310
      %p312 = scmp.ne.s32.totalorder %s304, %s306
      %p313 = scmp.eq.s32.totalorder %s44, 3
      %p314 = por %p312, %p313
      %p315 = scmp.ne.s32.totalorder %s306, %s307
      %p316 = scmp.eq.s32.totalorder %s44, 0
      %p317 = por %p315, %p316
      %p318 = scmp.ne.s32.totalorder %s306, %s307
      %p319 = scmp.eq.s32.totalorder %s45, 3
      %p320 = por %p318, %p319
      %p322 = scmp.ne.s32.totalorder %s307, %s321
      %p323 = scmp.eq.s32.totalorder %s45, 0
      %p324 = por %p322, %p323
      %s326 = sadd.s32 %s325, 1
      %p329 = scmp.eq.s32.totalorder %s39, 3
      %p330 = scmp.ne.s32.totalorder %s325, %s327
      %p331 = scmp.eq.s32.totalorder %s39, 0
      %p332 = por %p330, %p331
      %p333 = scmp.ne.s32.totalorder %s325, %s327
      %p334 = scmp.eq.s32.totalorder %s44, 3
      %p335 = por %p333, %p334
      %p336 = scmp.ne.s32.totalorder %s327, %s328
      %p337 = scmp.eq.s32.totalorder %s44, 0
      %p338 = por %p336, %p337
      %p339 = scmp.ne.s32.totalorder %s327, %s328
      %p340 = scmp.eq.s32.totalorder %s45, 3
      %p341 = por %p339, %p340
      %p343 = scmp.ne.s32.totalorder %s328, %s342
      %p344 = scmp.eq.s32.totalorder %s45, 0
      %p345 = por %p343, %p344
      %s347 = sadd.s32 %s346, 1
      %p350 = scmp.eq.s32.totalorder %s39, 3
      %p351 = scmp.ne.s32.totalorder %s346, %s348
      %p352 = scmp.eq.s32.totalorder %s39, 0
      %p353 = por %p351, %p352
      %p354 = scmp.ne.s32.totalorder %s346, %s348
      %p355 = scmp.eq.s32.totalorder %s44, 3
      %p356 = por %p354, %p355
      %p357 = scmp.ne.s32.totalorder %s348, %s349
      %p358 = scmp.eq.s32.totalorder %s44, 0
      %p359 = por %p357, %p358
      %p360 = scmp.ne.s32.totalorder %s348, %s349
      %p361 = scmp.eq.s32.totalorder %s45, 3
      %p362 = por %p360, %p361
      %p364 = scmp.ne.s32.totalorder %s349, %s363
      %p365 = scmp.eq.s32.totalorder %s45, 0
      %p366 = por %p364, %p365
      %s368 = sadd.s32 %s367, 1
      %p371 = scmp.eq.s32.totalorder %s39, 3
      %p372 = scmp.ne.s32.totalorder %s367, %s369
      %p373 = scmp.eq.s32.totalorder %s39, 0
      %p374 = por %p372, %p373
      %p375 = scmp.ne.s32.totalorder %s367, %s369
      %p376 = scmp.eq.s32.totalorder %s44, 3
      %p377 = por %p375, %p376
      %p378 = scmp.ne.s32.totalorder %s369, %s370
      %p379 = scmp.eq.s32.totalorder %s44, 0
      %p380 = por %p378, %p379
      %p381 = scmp.ne.s32.totalorder %s369, %s370
      %p382 = scmp.eq.s32.totalorder %s45, 3
      %p383 = por %p381, %p382
      %p385 = scmp.ne.s32.totalorder %s370, %s384
      %p386 = scmp.eq.s32.totalorder %s45, 0
      %p387 = por %p385, %p386
      %s389 = sadd.s32 %s388, 1
      %p392 = scmp.eq.s32.totalorder %s39, 3
      %p393 = scmp.ne.s32.totalorder %s388, %s390
      %p394 = scmp.eq.s32.totalorder %s39, 0
      %p395 = por %p393, %p394
      %p396 = scmp.ne.s32.totalorder %s388, %s390
      %p397 = scmp.eq.s32.totalorder %s44, 3
      %p398 = por %p396, %p397
      %p399 = scmp.ne.s32.totalorder %s390, %s391
      %p400 = scmp.eq.s32.totalorder %s44, 0
      %p401 = por %p399, %p400
      %p402 = scmp.ne.s32.totalorder %s390, %s391
      %p403 = scmp.eq.s32.totalorder %s45, 3
      %p404 = por %p402, %p403
      %p406 = scmp.ne.s32.totalorder %s391, %s405
      %p407 = scmp.eq.s32.totalorder %s45, 0
      %p408 = por %p406, %p407
      %s410 = sadd.s32 %s409, 1
      %p413 = scmp.eq.s32.totalorder %s39, 3
      %p414 = scmp.ne.s32.totalorder %s409, %s411
      %p415 = scmp.eq.s32.totalorder %s39, 0
      %p416 = por %p414, %p415
      %p417 = scmp.ne.s32.totalorder %s409, %s411
      %p418 = scmp.eq.s32.totalorder %s44, 3
      %p419 = por %p417, %p418
      %p420 = scmp.ne.s32.totalorder %s411, %s412
      %p421 = scmp.eq.s32.totalorder %s44, 0
      %p422 = por %p420, %p421
      %p423 = scmp.ne.s32.totalorder %s411, %s412
      %p424 = scmp.eq.s32.totalorder %s45, 3
      %p425 = por %p423, %p424
      %p427 = scmp.ne.s32.totalorder %s412, %s426
      %p428 = scmp.eq.s32.totalorder %s45, 0
      %p429 = por %p427, %p428
      %s430 = ssub.s32 %s39, %s46
      %p431 = scmp.eq.s32.totalorder %s430, 0
      %s433 = sadd.s32 %s432, 1
      %s434 = scalar_select %p431, %s432, %s433
      %p437 = pneg %p431
      %p438 = scmp.eq.s32.totalorder %s39, 3
      %p439 = por %p437, %p438
      %p440 = scmp.ne.s32.totalorder %s432, %s435
      %p441 = scmp.eq.s32.totalorder %s39, 0
      %p442 = por %p440, %p441
      %p443 = scmp.ne.s32.totalorder %s432, %s435
      %p444 = scmp.eq.s32.totalorder %s44, 3
      %p445 = por %p443, %p444
      %p446 = scmp.ne.s32.totalorder %s435, %s436
      %p447 = scmp.eq.s32.totalorder %s44, 0
      %p448 = por %p446, %p447
      %p449 = scmp.ne.s32.totalorder %s435, %s436
      %p450 = scmp.eq.s32.totalorder %s45, 3
      %p451 = por %p449, %p450
      %p453 = scmp.ne.s32.totalorder %s436, %s452
      %p454 = scmp.eq.s32.totalorder %s45, 0
      %p455 = por %p453, %p454
      %p456 = scmp.le.s32.totalorder 1, %s39
      %p457 = scmp.lt.s32.totalorder %s39, 5
      %p458 = pnand %p456, %p457
      %p459 = pneg %p458
      // Predicated region
      $region9: #{forward.2} parent=5 // pred_check
        _
      $region10: #{forward.2} parent=5 // pred_check_branch
        %461 = sbr.rel (%p458) target = $region12
      $region11: #{forward.2} parent=5 // pred_region
        %s462 = ssub.s32 %s39, 1
        // Predicated region
        $region13: #{forward.2} parent=11 // pred_check
          %p463 = pneg %p86
        $region14: #{forward.2} parent=11 // pred_check_branch
          %465 = sbr.rel (%p463) target = $region16
        $region15: #{forward.2} parent=11 // pred_region
          %s467 = ssub.s32 128, 128
          %468 = vsyncadd [#allocation6], %s467
          %s470 = sshll.u32 [#allocation5], 4
          %s471 = int_to_ptr.vmem [resolvable:$true] %s470
          %473 = dma.hbm_to_vmem [thread:$0]  %s1, 128, %s471, [#allocation6]
        $region16: #{forward.2} parent=11 // pred_fallthru
          _
        // Predicated region
        $region17: #{forward.2} parent=11 // pred_check
          %p474 = pneg %p107
        $region18: #{forward.2} parent=11 // pred_check_branch
          %476 = sbr.rel (%p474) target = $region20
        $region19: #{forward.2} parent=11 // pred_region
          %s478 = ssub.s32 32, 32
          %479 = vsyncadd [#allocation6], %s478
          %s481 = sshll.u32 [#allocation7], 4
          %s482 = int_to_ptr.vmem [resolvable:$true] %s481
          %484 = dma.hbm_to_vmem [thread:$0]  %s2, 32, %s482, [#allocation6]
        $region20: #{forward.2} parent=11 // pred_fallthru
          _
        // Predicated region
        $region21: #{forward.2} parent=11 // pred_check
          %p485 = pneg %p128
        $region22: #{forward.2} parent=11 // pred_check_branch
          %487 = sbr.rel (%p485) target = $region24
        $region23: #{forward.2} parent=11 // pred_region
          %s489 = ssub.s32 2048, 2048
          %490 = vsyncadd [#allocation9], %s489
          %s491 = sshll.u32 [#allocation8], 4
          %s492 = int_to_ptr.vmem [resolvable:$true] %s491
          %497 = dma.hbm_to_vmem [thread:$0]  %s3, 2048, %s492, [#allocation9], 64, 64, 4
        $region24: #{forward.2} parent=11 // pred_fallthru
          _
        // Predicated region
        $region25: #{forward.2} parent=11 // pred_check
          %p498 = pneg %p149
        $region26: #{forward.2} parent=11 // pred_check_branch
          %500 = sbr.rel (%p498) target = $region28
        $region27: #{forward.2} parent=11 // pred_region
          %s502 = ssub.s32 16, 16
          %503 = vsyncadd [#allocation9], %s502
          %s505 = sshll.u32 [#allocation10], 4
          %s506 = int_to_ptr.vmem [resolvable:$true] %s505
          %508 = dma.hbm_to_vmem [thread:$0]  %s4, 16, %s506, [#allocation9]
        $region28: #{forward.2} parent=11 // pred_fallthru
          _
        // Predicated region
        $region29: #{forward.2} parent=11 // pred_check
          %p509 = pneg %p170
        $region30: #{forward.2} parent=11 // pred_check_branch
          %511 = sbr.rel (%p509) target = $region32
        $region31: #{forward.2} parent=11 // pred_region
          %s513 = ssub.s32 4096, 4096
          %514 = vsyncadd [#allocation12], %s513
          %s515 = sshll.u32 [#allocation11], 4
          %s516 = int_to_ptr.vmem [resolvable:$true] %s515
          %521 = dma.hbm_to_vmem [thread:$0]  %s5, 4096, %s516, [#allocation12], 128, 128, 8
        $region32: #{forward.2} parent=11 // pred_fallthru
          _
        // Predicated region
        $region33: #{forward.2} parent=11 // pred_check
          %p522 = pneg %p191
        $region34: #{forward.2} parent=11 // pred_check_branch
          %524 = sbr.rel (%p522) target = $region36
        $region35: #{forward.2} parent=11 // pred_region
          %s526 = ssub.s32 32, 32
          %527 = vsyncadd [#allocation12], %s526
          %s529 = sshll.u32 [#allocation13], 4
          %s530 = int_to_ptr.vmem [resolvable:$true] %s529
          %532 = dma.hbm_to_vmem [thread:$0]  %s6, 32, %s530, [#allocation12]
        $region36: #{forward.2} parent=11 // pred_fallthru
          _
        // Predicated region
        $region37: #{forward.2} parent=11 // pred_check
          %p533 = pneg %p212
        $region38: #{forward.2} parent=11 // pred_check_branch
          %535 = sbr.rel (%p533) target = $region40
        $region39: #{forward.2} parent=11 // pred_region
          %s537 = ssub.s32 4096, 4096
          %538 = vsyncadd [#allocation15], %s537
          %s539 = sshll.u32 [#allocation14], 4
          %s540 = int_to_ptr.vmem [resolvable:$true] %s539
          %545 = dma.hbm_to_vmem [thread:$0]  %s7, 4096, %s540, [#allocation15], 128, 128, 8
        $region40: #{forward.2} parent=11 // pred_fallthru
          _
        // Predicated region
        $region41: #{forward.2} parent=11 // pred_check
          %p546 = pneg %p233
        $region42: #{forward.2} parent=11 // pred_check_branch
          %548 = sbr.rel (%p546) target = $region44
        $region43: #{forward.2} parent=11 // pred_region
          %s550 = ssub.s32 32, 32
          %551 = vsyncadd [#allocation15], %s550
          %s553 = sshll.u32 [#allocation16], 4
          %s554 = int_to_ptr.vmem [resolvable:$true] %s553
          %556 = dma.hbm_to_vmem [thread:$0]  %s8, 32, %s554, [#allocation15]
        $region44: #{forward.2} parent=11 // pred_fallthru
          _
        // Predicated region
        $region45: #{forward.2} parent=11 // pred_check
          %p557 = pneg %p254
        $region46: #{forward.2} parent=11 // pred_check_branch
          %559 = sbr.rel (%p557) target = $region48
        $region47: #{forward.2} parent=11 // pred_region
          %s561 = ssub.s32 4096, 4096
          %562 = vsyncadd [#allocation18], %s561
          %s563 = sshll.u32 [#allocation17], 4
          %s564 = int_to_ptr.vmem [resolvable:$true] %s563
          %569 = dma.hbm_to_vmem [thread:$0]  %s9, 4096, %s564, [#allocation18], 128, 128, 8
        $region48: #{forward.2} parent=11 // pred_fallthru
          _
        // Predicated region
        $region49: #{forward.2} parent=11 // pred_check
          %p570 = pneg %p275
        $region50: #{forward.2} parent=11 // pred_check_branch
          %572 = sbr.rel (%p570) target = $region52
        $region51: #{forward.2} parent=11 // pred_region
          %s574 = ssub.s32 32, 32
          %575 = vsyncadd [#allocation18], %s574
          %s577 = sshll.u32 [#allocation19], 4
          %s578 = int_to_ptr.vmem [resolvable:$true] %s577
          %580 = dma.hbm_to_vmem [thread:$0]  %s10, 32, %s578, [#allocation18]
        $region52: #{forward.2} parent=11 // pred_fallthru
          _
        // Predicated region
        $region53: #{forward.2} parent=11 // pred_check
          %p581 = pneg %p296
        $region54: #{forward.2} parent=11 // pred_check_branch
          %583 = sbr.rel (%p581) target = $region56
        $region55: #{forward.2} parent=11 // pred_region
          %s585 = ssub.s32 4096, 4096
          %586 = vsyncadd [#allocation21], %s585
          %s587 = sshll.u32 [#allocation20], 4
          %s588 = int_to_ptr.vmem [resolvable:$true] %s587
          %593 = dma.hbm_to_vmem [thread:$0]  %s11, 4096, %s588, [#allocation21], 128, 128, 8
        $region56: #{forward.2} parent=11 // pred_fallthru
          _
        // Predicated region
        $region57: #{forward.2} parent=11 // pred_check
          %p594 = pneg %p317
        $region58: #{forward.2} parent=11 // pred_check_branch
          %596 = sbr.rel (%p594) target = $region60
        $region59: #{forward.2} parent=11 // pred_region
          %s598 = ssub.s32 32, 32
          %599 = vsyncadd [#allocation21], %s598
          %s601 = sshll.u32 [#allocation22], 4
          %s602 = int_to_ptr.vmem [resolvable:$true] %s601
          %604 = dma.hbm_to_vmem [thread:$0]  %s12, 32, %s602, [#allocation21]
        $region60: #{forward.2} parent=11 // pred_fallthru
          _
        // Predicated region
        $region61: #{forward.2} parent=11 // pred_check
          %p605 = pneg %p338
        $region62: #{forward.2} parent=11 // pred_check_branch
          %607 = sbr.rel (%p605) target = $region64
        $region63: #{forward.2} parent=11 // pred_region
          %s609 = ssub.s32 4096, 4096
          %610 = vsyncadd [#allocation24], %s609
          %s611 = sshll.u32 [#allocation23], 4
          %s612 = int_to_ptr.vmem [resolvable:$true] %s611
          %617 = dma.hbm_to_vmem [thread:$0]  %s13, 4096, %s612, [#allocation24], 128, 128, 8
        $region64: #{forward.2} parent=11 // pred_fallthru
          _
        // Predicated region
        $region65: #{forward.2} parent=11 // pred_check
          %p618 = pneg %p359
        $region66: #{forward.2} parent=11 // pred_check_branch
          %620 = sbr.rel (%p618) target = $region68
        $region67: #{forward.2} parent=11 // pred_region
          %s622 = ssub.s32 4096, 4096
          %623 = vsyncadd [#allocation24], %s622
          %s624 = sshll.u32 [#allocation25], 4
          %s625 = int_to_ptr.vmem [resolvable:$true] %s624
          %630 = dma.hbm_to_vmem [thread:$0]  %s14, 4096, %s625, [#allocation24], 128, 128, 8
        $region68: #{forward.2} parent=11 // pred_fallthru
          _
        // Predicated region
        $region69: #{forward.2} parent=11 // pred_check
          %p631 = pneg %p380
        $region70: #{forward.2} parent=11 // pred_check_branch
          %633 = sbr.rel (%p631) target = $region72
        $region71: #{forward.2} parent=11 // pred_region
          %s635 = ssub.s32 32, 32
          %636 = vsyncadd [#allocation27], %s635
          %s638 = sshll.u32 [#allocation26], 4
          %s639 = int_to_ptr.vmem [resolvable:$true] %s638
          %641 = dma.hbm_to_vmem [thread:$0]  %s15, 32, %s639, [#allocation27]
        $region72: #{forward.2} parent=11 // pred_fallthru
          _
        // Predicated region
        $region73: #{forward.2} parent=11 // pred_check
          %p642 = pneg %p401
        $region74: #{forward.2} parent=11 // pred_check_branch
          %644 = sbr.rel (%p642) target = $region76
        $region75: #{forward.2} parent=11 // pred_region
          %s646 = ssub.s32 2048, 2048
          %647 = vsyncadd [#allocation27], %s646
          %s648 = sshll.u32 [#allocation28], 4
          %s649 = int_to_ptr.vmem [resolvable:$true] %s648
          %654 = dma.hbm_to_vmem [thread:$0]  %s16, 2048, %s649, [#allocation27], 64, 64, 4
        $region76: #{forward.2} parent=11 // pred_fallthru
          _
        // Predicated region
        $region77: #{forward.2} parent=11 // pred_check
          %p655 = pneg %p422
        $region78: #{forward.2} parent=11 // pred_check_branch
          %657 = sbr.rel (%p655) target = $region80
        $region79: #{forward.2} parent=11 // pred_region
          %s659 = ssub.s32 16, 16
          %660 = vsyncadd [#allocation30], %s659
          %s662 = sshll.u32 [#allocation29], 4
          %s663 = int_to_ptr.vmem [resolvable:$true] %s662
          %665 = dma.hbm_to_vmem [thread:$0]  %s17, 16, %s663, [#allocation30]
        $region80: #{forward.2} parent=11 // pred_fallthru
          _
      $region12: #{forward.2} parent=5 // pred_fallthru
        _
      %p666 = scmp.lt.s32.totalorder %s39, 4
      // Predicated region
      $region81: #{forward.2} parent=5 // pred_check
        %p667 = pneg %p666
      $region82: #{forward.2} parent=5 // pred_check_branch
        %669 = sbr.rel (%p667) target = $region84
      $region83: #{forward.2} parent=5 // pred_region
        // Predicated region
        $region85: #{forward.2} parent=83 // pred_check
          %p670 = pneg %p59
        $region86: #{forward.2} parent=83 // pred_check_branch
          %672 = sbr.rel (%p670) target = $region88
        $region87: #{forward.2} parent=83 // pred_region
          %s673 = sand.u32 %s49, 1
          %s674 = scalar_lea.sflag [#allocation3], %s673
          %s675 = sand.u32 %s49, 1
          %s676 = smul.addr %s675, 64
          %s677 = scalar_lea.vmem [#allocation2], %s676
          %s679 = ssub.s32 1024, 1024
          %680 = vsyncadd %s674, %s679
          %s681 = smul.addr %s39, 8
          %s682 = smul.addr %s681, 128
          %s683 = scalar_lea.hbm %s0, %s682
          %s684 = sshll.u32 %s677, 4
          %s685 = int_to_ptr.vmem [resolvable:$true] %s684
          %690 = dma.hbm_to_vmem [thread:$0]  %s683, 1024, %s685, %s674, 128, 128, 8
        $region88: #{forward.2} parent=83 // pred_fallthru
          _
      $region84: #{forward.2} parent=5 // pred_fallthru
        _
      %p691 = scmp.le.s32.totalorder 1, %s39
      %p692 = scmp.lt.s32.totalorder %s39, 5
      %p693 = pnand %p691, %p692
      %p694 = pneg %p693
      // Predicated region
      $region89: #{forward.2} parent=5 // pred_check
        _
      $region90: #{forward.2} parent=5 // pred_check_branch
        %696 = sbr.rel (%p693) target = $region92
      $region91: #{forward.2} parent=5 // pred_region
        %s697 = ssub.s32 %s39, 1
        %s698 = sand.u32 %s52, 1
        %s699 = scalar_lea.sflag [#allocation3], %s698
        %s700 = sand.u32 %s52, 1
        %s701 = smul.addr %s700, 64
        %s702 = scalar_lea.vmem [#allocation2], %s701
        // Predicated region
        $region93: #{forward.2} parent=91 // pred_check
          %p703 = pneg %p65
        $region94: #{forward.2} parent=91 // pred_check_branch
          %705 = sbr.rel (%p703) target = $region96
        $region95: #{forward.2} parent=91 // pred_region
          %706 = dma.done %s699, 1024
        $region96: #{forward.2} parent=91 // pred_fallthru
          _
        // Predicated region
        $region97: #{forward.2} parent=91 // pred_check
          %p707 = pneg %p86
        $region98: #{forward.2} parent=91 // pred_check_branch
          %709 = sbr.rel (%p707) target = $region100
        $region99: #{forward.2} parent=91 // pred_region
          %710 = dma.done [#allocation6], 128
        $region100: #{forward.2} parent=91 // pred_fallthru
          _
        // Predicated region
        $region101: #{forward.2} parent=91 // pred_check
          %p711 = pneg %p107
        $region102: #{forward.2} parent=91 // pred_check_branch
          %713 = sbr.rel (%p711) target = $region104
        $region103: #{forward.2} parent=91 // pred_region
          %714 = dma.done [#allocation6], 32
        $region104: #{forward.2} parent=91 // pred_fallthru
          _
        // Predicated region
        $region105: #{forward.2} parent=91 // pred_check
          %p715 = pneg %p128
        $region106: #{forward.2} parent=91 // pred_check_branch
          %717 = sbr.rel (%p715) target = $region108
        $region107: #{forward.2} parent=91 // pred_region
          %718 = dma.done [#allocation9], 2048
        $region108: #{forward.2} parent=91 // pred_fallthru
          _
        // Predicated region
        $region109: #{forward.2} parent=91 // pred_check
          %p719 = pneg %p149
        $region110: #{forward.2} parent=91 // pred_check_branch
          %721 = sbr.rel (%p719) target = $region112
        $region111: #{forward.2} parent=91 // pred_region
          %722 = dma.done [#allocation9], 16
        $region112: #{forward.2} parent=91 // pred_fallthru
          _
        // Predicated region
        $region113: #{forward.2} parent=91 // pred_check
          %p723 = pneg %p170
        $region114: #{forward.2} parent=91 // pred_check_branch
          %725 = sbr.rel (%p723) target = $region116
        $region115: #{forward.2} parent=91 // pred_region
          %726 = dma.done [#allocation12], 4096
        $region116: #{forward.2} parent=91 // pred_fallthru
          _
        // Predicated region
        $region117: #{forward.2} parent=91 // pred_check
          %p727 = pneg %p191
        $region118: #{forward.2} parent=91 // pred_check_branch
          %729 = sbr.rel (%p727) target = $region120
        $region119: #{forward.2} parent=91 // pred_region
          %730 = dma.done [#allocation12], 32
        $region120: #{forward.2} parent=91 // pred_fallthru
          _
        // Predicated region
        $region121: #{forward.2} parent=91 // pred_check
          %p731 = pneg %p212
        $region122: #{forward.2} parent=91 // pred_check_branch
          %733 = sbr.rel (%p731) target = $region124
        $region123: #{forward.2} parent=91 // pred_region
          %734 = dma.done [#allocation15], 4096
        $region124: #{forward.2} parent=91 // pred_fallthru
          _
        // Predicated region
        $region125: #{forward.2} parent=91 // pred_check
          %p735 = pneg %p233
        $region126: #{forward.2} parent=91 // pred_check_branch
          %737 = sbr.rel (%p735) target = $region128
        $region127: #{forward.2} parent=91 // pred_region
          %738 = dma.done [#allocation15], 32
        $region128: #{forward.2} parent=91 // pred_fallthru
          _
        // Predicated region
        $region129: #{forward.2} parent=91 // pred_check
          %p739 = pneg %p254
        $region130: #{forward.2} parent=91 // pred_check_branch
          %741 = sbr.rel (%p739) target = $region132
        $region131: #{forward.2} parent=91 // pred_region
          %742 = dma.done [#allocation18], 4096
        $region132: #{forward.2} parent=91 // pred_fallthru
          _
        // Predicated region
        $region133: #{forward.2} parent=91 // pred_check
          %p743 = pneg %p275
        $region134: #{forward.2} parent=91 // pred_check_branch
          %745 = sbr.rel (%p743) target = $region136
        $region135: #{forward.2} parent=91 // pred_region
          %746 = dma.done [#allocation18], 32
        $region136: #{forward.2} parent=91 // pred_fallthru
          _
        // Predicated region
        $region137: #{forward.2} parent=91 // pred_check
          %p747 = pneg %p296
        $region138: #{forward.2} parent=91 // pred_check_branch
          %749 = sbr.rel (%p747) target = $region140
        $region139: #{forward.2} parent=91 // pred_region
          %750 = dma.done [#allocation21], 4096
        $region140: #{forward.2} parent=91 // pred_fallthru
          _
        // Predicated region
        $region141: #{forward.2} parent=91 // pred_check
          %p751 = pneg %p317
        $region142: #{forward.2} parent=91 // pred_check_branch
          %753 = sbr.rel (%p751) target = $region144
        $region143: #{forward.2} parent=91 // pred_region
          %754 = dma.done [#allocation21], 32
        $region144: #{forward.2} parent=91 // pred_fallthru
          _
        // Predicated region
        $region145: #{forward.2} parent=91 // pred_check
          %p755 = pneg %p338
        $region146: #{forward.2} parent=91 // pred_check_branch
          %757 = sbr.rel (%p755) target = $region148
        $region147: #{forward.2} parent=91 // pred_region
          %758 = dma.done [#allocation24], 4096
        $region148: #{forward.2} parent=91 // pred_fallthru
          _
        // Predicated region
        $region149: #{forward.2} parent=91 // pred_check
          %p759 = pneg %p359
        $region150: #{forward.2} parent=91 // pred_check_branch
          %761 = sbr.rel (%p759) target = $region152
        $region151: #{forward.2} parent=91 // pred_region
          %762 = dma.done [#allocation24], 4096
        $region152: #{forward.2} parent=91 // pred_fallthru
          _
        // Predicated region
        $region153: #{forward.2} parent=91 // pred_check
          %p763 = pneg %p380
        $region154: #{forward.2} parent=91 // pred_check_branch
          %765 = sbr.rel (%p763) target = $region156
        $region155: #{forward.2} parent=91 // pred_region
          %766 = dma.done [#allocation27], 32
        $region156: #{forward.2} parent=91 // pred_fallthru
          _
        // Predicated region
        $region157: #{forward.2} parent=91 // pred_check
          %p767 = pneg %p401
        $region158: #{forward.2} parent=91 // pred_check_branch
          %769 = sbr.rel (%p767) target = $region160
        $region159: #{forward.2} parent=91 // pred_region
          %770 = dma.done [#allocation27], 2048
        $region160: #{forward.2} parent=91 // pred_fallthru
          _
        // Predicated region
        $region161: #{forward.2} parent=91 // pred_check
          %p771 = pneg %p422
        $region162: #{forward.2} parent=91 // pred_check_branch
          %773 = sbr.rel (%p771) target = $region164
        $region163: #{forward.2} parent=91 // pred_region
          %774 = dma.done [#allocation30], 16
        $region164: #{forward.2} parent=91 // pred_fallthru
          _
        %s775 = sand.u32 %s52, 1
        %s776 = scalar_lea.sflag [#allocation3], %s775
        %s777 = sand.u32 %s52, 1
        %s778 = smul.addr %s777, 64
        %s779 = scalar_lea.vmem [#allocation2], %s778
        %p780 = pneg %p65
        %p781 = pneg %p62
        %p782 = pneg %p86
        %p783 = pneg %p83
        %p784 = pneg %p107
        %p785 = pneg %p104
        %p786 = pneg %p128
        %p787 = pneg %p125
        %p788 = pneg %p149
        %p789 = pneg %p146
        %p790 = pneg %p170
        %p791 = pneg %p167
        %p792 = pneg %p191
        %p793 = pneg %p188
        %p794 = pneg %p212
        %p795 = pneg %p209
        %p796 = pneg %p233
        %p797 = pneg %p230
        %p798 = pneg %p254
        %p799 = pneg %p251
        %p800 = pneg %p275
        %p801 = pneg %p272
        %p802 = pneg %p296
        %p803 = pneg %p293
        %p804 = pneg %p317
        %p805 = pneg %p314
        %p806 = pneg %p338
        %p807 = pneg %p335
        %p808 = pneg %p359
        %p809 = pneg %p356
        %p810 = pneg %p380
        %p811 = pneg %p377
        %p812 = pneg %p401
        %p813 = pneg %p398
        %p814 = pneg %p422
        %p815 = pneg %p419
        %p816 = pneg %p448
        %p817 = pneg %p445
        %s818 = sand.u32 %s435, 1
        %s819 = scalar_lea.sflag [#allocation4], %s818
        %s820 = sand.u32 %s435, 1
        %s821 = smul.addr %s820, 64
        %s822 = scalar_lea.vmem [#allocation31], %s821
        %v824 = vld [vmem:[%s702] sm:$0xff]
        %v825 = vld [vmem:[%s702 + $0x8] sm:$0xff]
        %v826 = vld [vmem:[%s702 + $0x10] sm:$0xff]
        %v827 = vld [vmem:[%s702 + $0x18] sm:$0xff]
        %v828 = vld [vmem:[%s702 + $0x20] sm:$0xff]
        %v829 = vld [vmem:[%s702 + $0x28] sm:$0xff]
        %v830 = vld [vmem:[%s702 + $0x30] sm:$0xff]
        %v831 = vld [vmem:[%s702 + $0x38] sm:$0xff]
        %v832 = vld [vmem:[#allocation5] sm:$0x77]
        %v833 = vld [vmem:[#allocation7] sm:$0x3]
        %v835 = vlaneseq
        %v836 = vshrl.u32 %v835, 7
        %v837 = vsub.s32 0, %v836
        %v838 = vrot.slane %v833, %v837
        %v839 = vlaneseq
        %v840 = vshrl.u32 %v839, 7
        %v841 = vsub.s32 1, %v840
        %v842 = vrot.slane %v833, %v841
        %v846 = vcombine.high %v832, %v832
        %vm847 = vcmask 23552
        %v849 = vsel %vm847, %v824, 0
        %v852 = vsel %vm847, %v825, 0
        %v855 = vsel %vm847, %v826, 0
        %v858 = vsel %vm847, %v827, 0
        %v861 = vsel %vm847, %v828, 0
        %v864 = vsel %vm847, %v829, 0
        %v867 = vsel %vm847, %v830, 0
        %v870 = vsel %vm847, %v831, 0
        %vm872 = vcmask 1042432
        %v873 = vsel %vm872, %v832, 0
        %v875 = vsel %vm872, %v846, 0
        %877 = vmatprep.subr.mxu0 %v875
        %878 = vmatpush1.msra.mxu0 %v873
        %879 = vmatprep.subr.mxu0 0.0
        %880 = vmatpush1.msra.mxu0 0.0
        %881 = vmatprep.subr.mxu0 0.0
        %882 = vmatpush1.msra.mxu0 0.0
        %883 = vmatprep.subr.mxu0 0.0
        %884 = vmatpush1.msra.mxu0 0.0
        %885 = vmatprep.subr.mxu0 0.0
        %886 = vmatpush1.msra.mxu0 0.0
        %887 = vmatprep.subr.mxu0 0.0
        %888 = vmatpush1.msra.mxu0 0.0
        %889 = vmatprep.subr.mxu0 0.0
        %890 = vmatpush1.msra.mxu0 0.0
        %891 = vmatprep.subr.mxu0 0.0
        %892 = vmatpush1.msra.mxu0 0.0
        %893 = vmatprep.subr.mxu0 0.0
        %894 = vmatpush1.msra.mxu0 0.0
        %895 = vmatprep.subr.mxu0 0.0
        %896 = vmatpush1.msra.mxu0 0.0
        %897 = vmatprep.subr.mxu0 0.0
        %898 = vmatpush1.msra.mxu0 0.0
        %899 = vmatprep.subr.mxu0 0.0
        %900 = vmatpush1.msra.mxu0 0.0
        %901 = vmatprep.subr.mxu0 0.0
        %902 = vmatpush1.msra.mxu0 0.0
        %903 = vmatprep.subr.mxu0 0.0
        %904 = vmatpush1.msra.mxu0 0.0
        %905 = vmatprep.subr.mxu0 0.0
        %906 = vmatpush1.msra.mxu0 0.0
        %907 = vmatprep.subr.mxu0 0.0
        %908 = vmatpush1.msra.mxu0 0.0
        %909 = vmatprep.subr.mxu0 0.0
        %910 = vmatpush1.msra.mxu0 0.0
        %911 = vmatprep.subr.mxu0 0.0
        %912 = vmatpush1.msra.mxu0 0.0
        %913 = vmatprep.subr.mxu0 0.0
        %914 = vmatpush1.msra.mxu0 0.0
        %915 = vmatprep.subr.mxu0 0.0
        %916 = vmatpush1.msra.mxu0 0.0
        %917 = vmatprep.subr.mxu0 0.0
        %918 = vmatpush1.msra.mxu0 0.0
        %919 = vmatprep.subr.mxu0 0.0
        %920 = vmatpush1.msra.mxu0 0.0
        %921 = vmatprep.subr.mxu0 0.0
        %922 = vmatpush1.msra.mxu0 0.0
        %923 = vmatprep.subr.mxu0 0.0
        %924 = vmatpush1.msra.mxu0 0.0
        %925 = vmatprep.subr.mxu0 0.0
        %926 = vmatpush1.msra.mxu0 0.0
        %927 = vmatprep.subr.mxu0 0.0
        %928 = vmatpush1.msra.mxu0 0.0
        %929 = vmatprep.subr.mxu0 0.0
        %930 = vmatpush1.msra.mxu0 0.0
        %931 = vmatprep.subr.mxu0 0.0
        %932 = vmatpush1.msra.mxu0 0.0
        %933 = vmatprep.subr.mxu0 0.0
        %934 = vmatpush1.msra.mxu0 0.0
        %935 = vmatprep.subr.mxu0 0.0
        %936 = vmatpush1.msra.mxu0 0.0
        %937 = vmatprep.subr.mxu0 0.0
        %938 = vmatpush1.msra.mxu0 0.0
        %939 = vmatprep.subr.mxu0 0.0
        %940 = vmatpush1.msra.mxu0 0.0
        %941 = vmatprep.mubr.f32.mxu0 0.0
        %942 = vmatmul.mubr.f32.gmra.mrb[0].mxu0 %v849
        %v943 = vpop.f32.mrb[0].mxu0
        %v944 = vadd.f32 %v838, %v943
        %v945 = vpop.f32.mrb[0].mxu0
        %v946 = vadd.f32 %v842, %v945
        %947 = vmatprep.mubr.f32.mxu0 0.0
        %948 = vmatmul.mubr.f32.gmra.mrb[0].mxu0 %v852
        %v949 = vpop.f32.mrb[0].mxu0
        %v950 = vadd.f32 %v838, %v949
        %v951 = vpop.f32.mrb[0].mxu0
        %v952 = vadd.f32 %v842, %v951
        %953 = vmatprep.mubr.f32.mxu0 0.0
        %954 = vmatmul.mubr.f32.gmra.mrb[0].mxu0 %v855
        %v955 = vpop.f32.mrb[0].mxu0
        %v956 = vadd.f32 %v838, %v955
        %v957 = vpop.f32.mrb[0].mxu0
        %v958 = vadd.f32 %v842, %v957
        %959 = vmatprep.mubr.f32.mxu0 0.0
        %960 = vmatmul.mubr.f32.gmra.mrb[0].mxu0 %v858
        %v961 = vpop.f32.mrb[0].mxu0
        %v962 = vadd.f32 %v838, %v961
        %v963 = vpop.f32.mrb[0].mxu0
        %v964 = vadd.f32 %v842, %v963
        %965 = vmatprep.mubr.f32.mxu0 0.0
        %966 = vmatmul.mubr.f32.gmra.mrb[0].mxu0 %v861
        %v967 = vpop.f32.mrb[0].mxu0
        %v968 = vadd.f32 %v838, %v967
        %v969 = vpop.f32.mrb[0].mxu0
        %v970 = vadd.f32 %v842, %v969
        %971 = vmatprep.mubr.f32.mxu0 0.0
        %972 = vmatmul.mubr.f32.gmra.mrb[0].mxu0 %v864
        %v973 = vpop.f32.mrb[0].mxu0
        %v974 = vadd.f32 %v838, %v973
        %v975 = vpop.f32.mrb[0].mxu0
        %v976 = vadd.f32 %v842, %v975
        %977 = vmatprep.mubr.f32.mxu0 0.0
        %978 = vmatmul.mubr.f32.gmra.mrb[0].mxu0 %v867
        %v979 = vpop.f32.mrb[0].mxu0
        %v980 = vadd.f32 %v838, %v979
        %v981 = vpop.f32.mrb[0].mxu0
        %v982 = vadd.f32 %v842, %v981
        %983 = vmatprep.mubr.f32.mxu0 0.0
        %984 = vmatmul.mubr.f32.gmra.mrb[0].mxu0 %v870
        %v985 = vpop.f32.mrb[0].mxu0
        %v986 = vadd.f32 %v838, %v985
        %v987 = vpop.f32.mrb[0].mxu0
        %v988 = vadd.f32 %v842, %v987
        %989 = vdwg.mxu0
        %v990 = vmax.f32 %v944, 0.0
        %v991 = vmax.f32 %v946, 0.0
        %v992 = vmax.f32 %v950, 0.0
        %v993 = vmax.f32 %v952, 0.0
        %v994 = vmax.f32 %v956, 0.0
        %v995 = vmax.f32 %v958, 0.0
        %v996 = vmax.f32 %v962, 0.0
        %v997 = vmax.f32 %v964, 0.0
        %v998 = vmax.f32 %v968, 0.0
        %v999 = vmax.f32 %v970, 0.0
        %v1000 = vmax.f32 %v974, 0.0
        %v1001 = vmax.f32 %v976, 0.0
        %v1002 = vmax.f32 %v980, 0.0
        %v1003 = vmax.f32 %v982, 0.0
        %v1004 = vmax.f32 %v986, 0.0
        %v1005 = vmax.f32 %v988, 0.0
        %v1006 = vpack.c.bf16 %v992, %v990
        %v1007 = vpack.c.bf16 %v993, %v991
        %v1008 = vpack.c.bf16 %v996, %v994
        %v1009 = vpack.c.bf16 %v997, %v995
        %v1010 = vpack.c.bf16 %v1000, %v998
        %v1011 = vpack.c.bf16 %v1001, %v999
        %v1012 = vpack.c.bf16 %v1004, %v1002
        %v1013 = vpack.c.bf16 %v1005, %v1003
        %v1014 = vld [vmem:[#allocation8] sm:$0xf]
        %v1015 = vld [vmem:[#allocation8 + $0x4] sm:$0xf]
        %v1016 = vld [vmem:[#allocation8 + $0x8] sm:$0xf]
        %v1017 = vld [vmem:[#allocation8 + $0xc] sm:$0xf]
        %v1018 = vld [vmem:[#allocation8 + $0x10] sm:$0xf]
        %v1019 = vld [vmem:[#allocation8 + $0x14] sm:$0xf]
        %v1020 = vld [vmem:[#allocation8 + $0x18] sm:$0xf]
        %v1021 = vld [vmem:[#allocation8 + $0x1c] sm:$0xf]
        %v1022 = vld [vmem:[#allocation8 + $0x20] sm:$0xf]
        %v1023 = vld [vmem:[#allocation8 + $0x24] sm:$0xf]
        %v1024 = vld [vmem:[#allocation8 + $0x28] sm:$0xf]
        %v1025 = vld [vmem:[#allocation8 + $0x2c] sm:$0xf]
        %v1026 = vld [vmem:[#allocation8 + $0x30] sm:$0xf]
        %v1027 = vld [vmem:[#allocation8 + $0x34] sm:$0xf]
        %v1028 = vld [vmem:[#allocation8 + $0x38] sm:$0xf]
        %v1029 = vld [vmem:[#allocation8 + $0x3c] sm:$0xf]
        %v1030 = vld [vmem:[#allocation8 + $0x40] sm:$0xf]
        %v1031 = vld [vmem:[#allocation8 + $0x44] sm:$0xf]
        %v1032 = vld [vmem:[#allocation8 + $0x48] sm:$0xf]
        %v1033 = vld [vmem:[#allocation8 + $0x4c] sm:$0xf]
        %v1034 = vld [vmem:[#allocation8 + $0x50] sm:$0xf]
        %v1035 = vld [vmem:[#allocation8 + $0x54] sm:$0xf]
        %v1036 = vld [vmem:[#allocation8 + $0x58] sm:$0xf]
        %v1037 = vld [vmem:[#allocation8 + $0x5c] sm:$0xf]
        %v1038 = vld [vmem:[#allocation8 + $0x60] sm:$0xf]
        %v1039 = vld [vmem:[#allocation8 + $0x64] sm:$0xf]
        %v1040 = vld [vmem:[#allocation8 + $0x68] sm:$0xf]
        %v1041 = vld [vmem:[#allocation8 + $0x6c] sm:$0xf]
        %v1042 = vld [vmem:[#allocation8 + $0x70] sm:$0xf]
        %v1043 = vld [vmem:[#allocation8 + $0x74] sm:$0xf]
        %v1044 = vld [vmem:[#allocation8 + $0x78] sm:$0xf]
        %v1045 = vld [vmem:[#allocation8 + $0x7c] sm:$0xf]
        %v1046 = vld [vmem:[#allocation10] sm:$0x1]
        %v1048 = vlaneseq
        %v1049 = vshrl.u32 %v1048, 7
        %v1050 = vsub.s32 0, %v1049
        %v1051 = vrot.slane %v1046, %v1050
        %v1085 = vunpack.c.l.b16 %v1014
        %v1086 = vunpack.c.l.b16 %v1015
        %v1087 = vunpack.c.l.b16 %v1016
        %v1088 = vunpack.c.l.b16 %v1017
        %v1089 = vunpack.c.l.b16 %v1018
        %v1090 = vunpack.c.l.b16 %v1019
        %v1091 = vunpack.c.l.b16 %v1020
        %v1092 = vunpack.c.l.b16 %v1021
        %v1093 = vunpack.c.l.b16 %v1022
        %v1094 = vunpack.c.l.b16 %v1023
        %v1095 = vunpack.c.l.b16 %v1024
        %v1096 = vunpack.c.l.b16 %v1025
        %v1097 = vunpack.c.l.b16 %v1026
        %v1098 = vunpack.c.l.b16 %v1027
        %v1099 = vunpack.c.l.b16 %v1028
        %v1100 = vunpack.c.l.b16 %v1029
        %v1101 = vunpack.c.l.b16 %v1030
        %v1102 = vunpack.c.l.b16 %v1031
        %v1103 = vunpack.c.l.b16 %v1032
        %v1104 = vunpack.c.l.b16 %v1033
        %v1105 = vunpack.c.l.b16 %v1034
        %v1106 = vunpack.c.l.b16 %v1035
        %v1107 = vunpack.c.l.b16 %v1036
        %v1108 = vunpack.c.l.b16 %v1037
        %v1109 = vunpack.c.l.b16 %v1038
        %v1110 = vunpack.c.l.b16 %v1039
        %v1111 = vunpack.c.l.b16 %v1040
        %v1112 = vunpack.c.l.b16 %v1041
        %v1113 = vunpack.c.l.b16 %v1042
        %v1114 = vunpack.c.l.b16 %v1043
        %v1115 = vunpack.c.l.b16 %v1044
        %v1116 = vunpack.c.l.b16 %v1045
        %v1117 = vpack.c.b16 %v1086, %v1085
        %v1118 = vpack.c.b16 %v1088, %v1087
        %v1119 = vpack.c.b16 %v1090, %v1089
        %v1120 = vpack.c.b16 %v1092, %v1091
        %v1121 = vpack.c.b16 %v1094, %v1093
        %v1122 = vpack.c.b16 %v1096, %v1095
        %v1123 = vpack.c.b16 %v1098, %v1097
        %v1124 = vpack.c.b16 %v1100, %v1099
        %v1125 = vpack.c.b16 %v1102, %v1101
        %v1126 = vpack.c.b16 %v1104, %v1103
        %v1127 = vpack.c.b16 %v1106, %v1105
        %v1128 = vpack.c.b16 %v1108, %v1107
        %v1129 = vpack.c.b16 %v1110, %v1109
        %v1130 = vpack.c.b16 %v1112, %v1111
        %v1131 = vpack.c.b16 %v1114, %v1113
        %v1132 = vpack.c.b16 %v1116, %v1115
        %1149 = vmatprep.subr.bf16.mxu0 0
        %1150 = vmatpush1.bf16.msra.mxu0 %v1117
        %1151 = vmatprep.subr.bf16.mxu0 0
        %1152 = vmatpush1.bf16.msra.mxu0 %v1118
        %1153 = vmatprep.subr.bf16.mxu0 0
        %1154 = vmatpush1.bf16.msra.mxu0 %v1119
        %1155 = vmatprep.subr.bf16.mxu0 0
        %1156 = vmatpush1.bf16.msra.mxu0 %v1120
        %1157 = vmatprep.subr.bf16.mxu0 0
        %1158 = vmatpush1.bf16.msra.mxu0 %v1121
        %1159 = vmatprep.subr.bf16.mxu0 0
        %1160 = vmatpush1.bf16.msra.mxu0 %v1122
        %1161 = vmatprep.subr.bf16.mxu0 0
        %1162 = vmatpush1.bf16.msra.mxu0 %v1123
        %1163 = vmatprep.subr.bf16.mxu0 0
        %1164 = vmatpush1.bf16.msra.mxu0 %v1124
        %1165 = vmatprep.subr.bf16.mxu0 0
        %1166 = vmatpush1.bf16.msra.mxu0 %v1125
        %1167 = vmatprep.subr.bf16.mxu0 0
        %1168 = vmatpush1.bf16.msra.mxu0 %v1126
        %1169 = vmatprep.subr.bf16.mxu0 0
        %1170 = vmatpush1.bf16.msra.mxu0 %v1127
        %1171 = vmatprep.subr.bf16.mxu0 0
        %1172 = vmatpush1.bf16.msra.mxu0 %v1128
        %1173 = vmatprep.subr.bf16.mxu0 0
        %1174 = vmatpush1.bf16.msra.mxu0 %v1129
        %1175 = vmatprep.subr.bf16.mxu0 0
        %1176 = vmatpush1.bf16.msra.mxu0 %v1130
        %1177 = vmatprep.subr.bf16.mxu0 0
        %1178 = vmatpush1.bf16.msra.mxu0 %v1131
        %1179 = vmatprep.subr.bf16.mxu0 0
        %1180 = vmatpush1.bf16.msra.mxu0 %v1132
        %1181 = vmatprep.mubr.bf16.mxu0 %v1007
        %1182 = vmatmul.mubr.bf16.gmra.mrb[0].mxu0 %v1006
        %v1183 = vpop.f32.mrb[0].mxu0
        %v1184 = vadd.f32 %v1051, %v1183
        %v1185 = vpop.f32.mrb[0].mxu0
        %v1186 = vpop.f32.mrb[0].mxu0
        %v1187 = vadd.f32 %v1051, %v1186
        %v1188 = vpop.f32.mrb[0].mxu0
        %1189 = vmatprep.mubr.bf16.mxu0 %v1009
        %1190 = vmatmul.mubr.bf16.gmra.mrb[0].mxu0 %v1008
        %v1191 = vpop.f32.mrb[0].mxu0
        %v1192 = vadd.f32 %v1051, %v1191
        %v1193 = vpop.f32.mrb[0].mxu0
        %v1194 = vpop.f32.mrb[0].mxu0
        %v1195 = vadd.f32 %v1051, %v1194
        %v1196 = vpop.f32.mrb[0].mxu0
        %1197 = vmatprep.mubr.bf16.mxu0 %v1011
        %1198 = vmatmul.mubr.bf16.gmra.mrb[0].mxu0 %v1010
        %v1199 = vpop.f32.mrb[0].mxu0
        %v1200 = vadd.f32 %v1051, %v1199
        %v1201 = vpop.f32.mrb[0].mxu0
        %v1202 = vpop.f32.mrb[0].mxu0
        %v1203 = vadd.f32 %v1051, %v1202
        %v1204 = vpop.f32.mrb[0].mxu0
        %1205 = vmatprep.mubr.bf16.mxu0 %v1013
        %1206 = vmatmul.mubr.bf16.gmra.mrb[0].mxu0 %v1012
        %v1207 = vpop.f32.mrb[0].mxu0
        %v1208 = vadd.f32 %v1051, %v1207
        %v1209 = vpop.f32.mrb[0].mxu0
        %v1210 = vpop.f32.mrb[0].mxu0
        %v1211 = vadd.f32 %v1051, %v1210
        %v1212 = vpop.f32.mrb[0].mxu0
        %1213 = vdwg.mxu0
        %v1214 = vld [vmem:[#allocation11] sm:$0xff]
        %v1215 = vld [vmem:[#allocation11 + $0x8] sm:$0xff]
        %v1216 = vld [vmem:[#allocation11 + $0x10] sm:$0xff]
        %v1217 = vld [vmem:[#allocation11 + $0x18] sm:$0xff]
        %v1218 = vld [vmem:[#allocation11 + $0x20] sm:$0xff]
        %v1219 = vld [vmem:[#allocation11 + $0x28] sm:$0xff]
        %v1220 = vld [vmem:[#allocation11 + $0x30] sm:$0xff]
        %v1221 = vld [vmem:[#allocation11 + $0x38] sm:$0xff]
        %v1222 = vld [vmem:[#allocation11 + $0x40] sm:$0xff]
        %v1223 = vld [vmem:[#allocation11 + $0x48] sm:$0xff]
        %v1224 = vld [vmem:[#allocation11 + $0x50] sm:$0xff]
        %v1225 = vld [vmem:[#allocation11 + $0x58] sm:$0xff]
        %v1226 = vld [vmem:[#allocation11 + $0x60] sm:$0xff]
        %v1227 = vld [vmem:[#allocation11 + $0x68] sm:$0xff]
        %v1228 = vld [vmem:[#allocation11 + $0x70] sm:$0xff]
        %v1229 = vld [vmem:[#allocation11 + $0x78] sm:$0xff]
        %v1230 = vld [vmem:[#allocation11 + $0x80] sm:$0xff]
        %v1231 = vld [vmem:[#allocation11 + $0x88] sm:$0xff]
        %v1232 = vld [vmem:[#allocation11 + $0x90] sm:$0xff]
        %v1233 = vld [vmem:[#allocation11 + $0x98] sm:$0xff]
        %v1234 = vld [vmem:[#allocation11 + $0xa0] sm:$0xff]
        %v1235 = vld [vmem:[#allocation11 + $0xa8] sm:$0xff]
        %v1236 = vld [vmem:[#allocation11 + $0xb0] sm:$0xff]
        %v1237 = vld [vmem:[#allocation11 + $0xb8] sm:$0xff]
        %v1238 = vld [vmem:[#allocation11 + $0xc0] sm:$0xff]
        %v1239 = vld [vmem:[#allocation11 + $0xc8] sm:$0xff]
        %v1240 = vld [vmem:[#allocation11 + $0xd0] sm:$0xff]
        %v1241 = vld [vmem:[#allocation11 + $0xd8] sm:$0xff]
        %v1242 = vld [vmem:[#allocation11 + $0xe0] sm:$0xff]
        %v1243 = vld [vmem:[#allocation11 + $0xe8] sm:$0xff]
        %v1244 = vld [vmem:[#allocation11 + $0xf0] sm:$0xff]
        %v1245 = vld [vmem:[#allocation11 + $0xf8] sm:$0xff]
        %v1246 = vld [vmem:[#allocation13] sm:$0x3]
        %v1248 = vlaneseq
        %v1249 = vshrl.u32 %v1248, 7
        %v1250 = vsub.s32 0, %v1249
        %v1251 = vrot.slane %v1246, %v1250
        %v1252 = vlaneseq
        %v1253 = vshrl.u32 %v1252, 7
        %v1254 = vsub.s32 1, %v1253
        %v1255 = vrot.slane %v1246, %v1254
        %v1290 = vunpack.c.l.b16 %v1214
        %v1291 = vunpack.c.h.b16 %v1214
        %v1292 = vunpack.c.l.b16 %v1215
        %v1293 = vunpack.c.h.b16 %v1215
        %v1294 = vunpack.c.l.b16 %v1216
        %v1295 = vunpack.c.h.b16 %v1216
        %v1296 = vunpack.c.l.b16 %v1217
        %v1297 = vunpack.c.h.b16 %v1217
        %v1298 = vunpack.c.l.b16 %v1218
        %v1299 = vunpack.c.h.b16 %v1218
        %v1300 = vunpack.c.l.b16 %v1219
        %v1301 = vunpack.c.h.b16 %v1219
        %v1302 = vunpack.c.l.b16 %v1220
        %v1303 = vunpack.c.h.b16 %v1220
        %v1304 = vunpack.c.l.b16 %v1221
        %v1305 = vunpack.c.h.b16 %v1221
        %v1306 = vunpack.c.l.b16 %v1222
        %v1307 = vunpack.c.h.b16 %v1222
        %v1308 = vunpack.c.l.b16 %v1223
        %v1309 = vunpack.c.h.b16 %v1223
        %v1310 = vunpack.c.l.b16 %v1224
        %v1311 = vunpack.c.h.b16 %v1224
        %v1312 = vunpack.c.l.b16 %v1225
        %v1313 = vunpack.c.h.b16 %v1225
        %v1314 = vunpack.c.l.b16 %v1226
        %v1315 = vunpack.c.h.b16 %v1226
        %v1316 = vunpack.c.l.b16 %v1227
        %v1317 = vunpack.c.h.b16 %v1227
        %v1318 = vunpack.c.l.b16 %v1228
        %v1319 = vunpack.c.h.b16 %v1228
        %v1320 = vunpack.c.l.b16 %v1229
        %v1321 = vunpack.c.h.b16 %v1229
        %v1322 = vunpack.c.l.b16 %v1230
        %v1323 = vunpack.c.h.b16 %v1230
        %v1324 = vunpack.c.l.b16 %v1231
        %v1325 = vunpack.c.h.b16 %v1231
        %v1326 = vunpack.c.l.b16 %v1232
        %v1327 = vunpack.c.h.b16 %v1232
        %v1328 = vunpack.c.l.b16 %v1233
        %v1329 = vunpack.c.h.b16 %v1233
        %v1330 = vunpack.c.l.b16 %v1234
        %v1331 = vunpack.c.h.b16 %v1234
        %v1332 = vunpack.c.l.b16 %v1235
        %v1333 = vunpack.c.h.b16 %v1235
        %v1334 = vunpack.c.l.b16 %v1236
        %v1335 = vunpack.c.h.b16 %v1236
        %v1336 = vunpack.c.l.b16 %v1237
        %v1337 = vunpack.c.h.b16 %v1237
        %v1338 = vunpack.c.l.b16 %v1238
        %v1339 = vunpack.c.h.b16 %v1238
        %v1340 = vunpack.c.l.b16 %v1239
        %v1341 = vunpack.c.h.b16 %v1239
        %v1342 = vunpack.c.l.b16 %v1240
        %v1343 = vunpack.c.h.b16 %v1240
        %v1344 = vunpack.c.l.b16 %v1241
        %v1345 = vunpack.c.h.b16 %v1241
        %v1346 = vunpack.c.l.b16 %v1242
        %v1347 = vunpack.c.h.b16 %v1242
        %v1348 = vunpack.c.l.b16 %v1243
        %v1349 = vunpack.c.h.b16 %v1243
        %v1350 = vunpack.c.l.b16 %v1244
        %v1351 = vunpack.c.h.b16 %v1244
        %v1352 = vunpack.c.l.b16 %v1245
        %v1353 = vunpack.c.h.b16 %v1245
        %v1354 = vpack.c.b16 %v1292, %v1290
        %v1355 = vpack.c.b16 %v1293, %v1291
        %v1356 = vpack.c.b16 %v1296, %v1294
        %v1357 = vpack.c.b16 %v1297, %v1295
        %v1358 = vpack.c.b16 %v1300, %v1298
        %v1359 = vpack.c.b16 %v1301, %v1299
        %v1360 = vpack.c.b16 %v1304, %v1302
        %v1361 = vpack.c.b16 %v1305, %v1303
        %v1362 = vpack.c.b16 %v1308, %v1306
        %v1363 = vpack.c.b16 %v1309, %v1307
        %v1364 = vpack.c.b16 %v1312, %v1310
        %v1365 = vpack.c.b16 %v1313, %v1311
        %v1366 = vpack.c.b16 %v1316, %v1314
        %v1367 = vpack.c.b16 %v1317, %v1315
        %v1368 = vpack.c.b16 %v1320, %v1318
        %v1369 = vpack.c.b16 %v1321, %v1319
        %v1370 = vpack.c.b16 %v1324, %v1322
        %v1371 = vpack.c.b16 %v1325, %v1323
        %v1372 = vpack.c.b16 %v1328, %v1326
        %v1373 = vpack.c.b16 %v1329, %v1327
        %v1374 = vpack.c.b16 %v1332, %v1330
        %v1375 = vpack.c.b16 %v1333, %v1331
        %v1376 = vpack.c.b16 %v1336, %v1334
        %v1377 = vpack.c.b16 %v1337, %v1335
        %v1378 = vpack.c.b16 %v1340, %v1338
        %v1379 = vpack.c.b16 %v1341, %v1339
        %v1380 = vpack.c.b16 %v1344, %v1342
        %v1381 = vpack.c.b16 %v1345, %v1343
        %v1382 = vpack.c.b16 %v1348, %v1346
        %v1383 = vpack.c.b16 %v1349, %v1347
        %v1384 = vpack.c.b16 %v1352, %v1350
        %v1385 = vpack.c.b16 %v1353, %v1351
        %1418 = vmatprep.subr.bf16.mxu0 %v1355
        %1419 = vmatpush1.bf16.msra.mxu0 %v1354
        %1420 = vmatprep.subr.bf16.mxu0 %v1357
        %1421 = vmatpush1.bf16.msra.mxu0 %v1356
        %1422 = vmatprep.subr.bf16.mxu0 %v1359
        %1423 = vmatpush1.bf16.msra.mxu0 %v1358
        %1424 = vmatprep.subr.bf16.mxu0 %v1361
        %1425 = vmatpush1.bf16.msra.mxu0 %v1360
        %1426 = vmatprep.subr.bf16.mxu0 %v1363
        %1427 = vmatpush1.bf16.msra.mxu0 %v1362
        %1428 = vmatprep.subr.bf16.mxu0 %v1365
        %1429 = vmatpush1.bf16.msra.mxu0 %v1364
        %1430 = vmatprep.subr.bf16.mxu0 %v1367
        %1431 = vmatpush1.bf16.msra.mxu0 %v1366
        %1432 = vmatprep.subr.bf16.mxu0 %v1369
        %1433 = vmatpush1.bf16.msra.mxu0 %v1368
        %1434 = vmatprep.subr.bf16.mxu0 %v1371
        %1435 = vmatpush1.bf16.msra.mxu0 %v1370
        %1436 = vmatprep.subr.bf16.mxu0 %v1373
        %1437 = vmatpush1.bf16.msra.mxu0 %v1372
        %1438 = vmatprep.subr.bf16.mxu0 %v1375
        %1439 = vmatpush1.bf16.msra.mxu0 %v1374
        %1440 = vmatprep.subr.bf16.mxu0 %v1377
        %1441 = vmatpush1.bf16.msra.mxu0 %v1376
        %1442 = vmatprep.subr.bf16.mxu0 %v1379
        %1443 = vmatpush1.bf16.msra.mxu0 %v1378
        %1444 = vmatprep.subr.bf16.mxu0 %v1381
        %1445 = vmatpush1.bf16.msra.mxu0 %v1380
        %1446 = vmatprep.subr.bf16.mxu0 %v1383
        %1447 = vmatpush1.bf16.msra.mxu0 %v1382
        %1448 = vmatprep.subr.bf16.mxu0 %v1385
        %1449 = vmatpush1.bf16.msra.mxu0 %v1384
        %1450 = vmatprep.mubr.bf16.mxu0 %v1007
        %1451 = vmatmul.mubr.bf16.gmra.mrb[0].mxu0 %v1006
        %v1452 = vpop.f32.mrb[0].mxu0
        %v1453 = vadd.f32 %v1251, %v1452
        %v1454 = vpop.f32.mrb[0].mxu0
        %v1455 = vadd.f32 %v1255, %v1454
        %v1456 = vpop.f32.mrb[0].mxu0
        %v1457 = vadd.f32 %v1251, %v1456
        %v1458 = vpop.f32.mrb[0].mxu0
        %v1459 = vadd.f32 %v1255, %v1458
        %1460 = vmatprep.mubr.bf16.mxu0 %v1009
        %1461 = vmatmul.mubr.bf16.gmra.mrb[0].mxu0 %v1008
        %v1462 = vpop.f32.mrb[0].mxu0
        %v1463 = vadd.f32 %v1251, %v1462
        %v1464 = vpop.f32.mrb[0].mxu0
        %v1465 = vadd.f32 %v1255, %v1464
        %v1466 = vpop.f32.mrb[0].mxu0
        %v1467 = vadd.f32 %v1251, %v1466
        %v1468 = vpop.f32.mrb[0].mxu0
        %v1469 = vadd.f32 %v1255, %v1468
        %1470 = vmatprep.mubr.bf16.mxu0 %v1011
        %1471 = vmatmul.mubr.bf16.gmra.mrb[0].mxu0 %v1010
        %v1472 = vpop.f32.mrb[0].mxu0
        %v1473 = vadd.f32 %v1251, %v1472
        %v1474 = vpop.f32.mrb[0].mxu0
        %v1475 = vadd.f32 %v1255, %v1474
        %v1476 = vpop.f32.mrb[0].mxu0
        %v1477 = vadd.f32 %v1251, %v1476
        %v1478 = vpop.f32.mrb[0].mxu0
        %v1479 = vadd.f32 %v1255, %v1478
        %1480 = vmatprep.mubr.bf16.mxu0 %v1013
        %1481 = vmatmul.mubr.bf16.gmra.mrb[0].mxu0 %v1012
        %v1482 = vpop.f32.mrb[0].mxu0
        %v1483 = vadd.f32 %v1251, %v1482
        %v1484 = vpop.f32.mrb[0].mxu0
        %v1485 = vadd.f32 %v1255, %v1484
        %v1486 = vpop.f32.mrb[0].mxu0
        %v1487 = vadd.f32 %v1251, %v1486
        %v1488 = vpop.f32.mrb[0].mxu0
        %v1489 = vadd.f32 %v1255, %v1488
        %1490 = vdwg.mxu0
        %v1491 = vmax.f32 %v1453, 0.0
        %v1492 = vmax.f32 %v1455, 0.0
        %v1493 = vmax.f32 %v1457, 0.0
        %v1494 = vmax.f32 %v1459, 0.0
        %v1495 = vmax.f32 %v1463, 0.0
        %v1496 = vmax.f32 %v1465, 0.0
        %v1497 = vmax.f32 %v1467, 0.0
        %v1498 = vmax.f32 %v1469, 0.0
        %v1499 = vmax.f32 %v1473, 0.0
        %v1500 = vmax.f32 %v1475, 0.0
        %v1501 = vmax.f32 %v1477, 0.0
        %v1502 = vmax.f32 %v1479, 0.0
        %v1503 = vmax.f32 %v1483, 0.0
        %v1504 = vmax.f32 %v1485, 0.0
        %v1505 = vmax.f32 %v1487, 0.0
        %v1506 = vmax.f32 %v1489, 0.0
        %v1507 = vpack.c.bf16 %v1493, %v1491
        %v1508 = vpack.c.bf16 %v1494, %v1492
        %v1509 = vpack.c.bf16 %v1497, %v1495
        %v1510 = vpack.c.bf16 %v1498, %v1496
        %v1511 = vpack.c.bf16 %v1501, %v1499
        %v1512 = vpack.c.bf16 %v1502, %v1500
        %v1513 = vpack.c.bf16 %v1505, %v1503
        %v1514 = vpack.c.bf16 %v1506, %v1504
        %vm1515 = vcmask 138240
        %v1516 = vsel %vm1515, %v1184, -inf
        %v1517 = vsel %vm1515, %v1187, -inf
        %v1518 = vsel %vm1515, %v1192, -inf
        %v1519 = vsel %vm1515, %v1195, -inf
        %v1520 = vsel %vm1515, %v1200, -inf
        %v1521 = vmax.f32 %v1516, %v1520
        %v1522 = vsel %vm1515, %v1203, -inf
        %v1523 = vmax.f32 %v1517, %v1522
        %v1524 = vsel %vm1515, %v1208, -inf
        %v1525 = vmax.f32 %v1518, %v1524
        %v1526 = vsel %vm1515, %v1211, -inf
        %v1527 = vmax.f32 %v1519, %v1526
        %v1528 = vmax.f32 %v1521, %v1523
        %v1529 = vmax.f32 %v1525, %v1527
        %v1530 = vmax.f32 %v1528, %v1529
        %v1531 = vrot.slane %v1530, 4
        %v1532 = vmax.f32 %v1530, %v1531
        %v1533 = vrot.slane %v1532, 2
        %v1534 = vmax.f32 %v1532, %v1533
        %v1535 = vrot.slane %v1534, 1
        %v1536 = vmax.f32 %v1534, %v1535
        %v1537 = vsub.f32 %v1184, %v1536
        %v1538 = vsub.f32 %v1187, %v1536
        %v1539 = vsub.f32 %v1192, %v1536
        %v1540 = vsub.f32 %v1195, %v1536
        %v1541 = vsub.f32 %v1200, %v1536
        %v1542 = vsub.f32 %v1203, %v1536
        %v1543 = vsub.f32 %v1208, %v1536
        %v1544 = vsub.f32 %v1211, %v1536
        %v1545 = vmul.f32 %v1537, 1.442695
        %v1546 = vpow.pop %v1545
        %v1547 = vmul.f32 %v1538, 1.442695
        %v1548 = vpow.pop %v1547
        %v1549 = vmul.f32 %v1539, 1.442695
        %v1550 = vpow.pop %v1549
        %v1551 = vmul.f32 %v1540, 1.442695
        %v1552 = vpow.pop %v1551
        %v1553 = vmul.f32 %v1541, 1.442695
        %v1554 = vpow.pop %v1553
        %v1555 = vmul.f32 %v1542, 1.442695
        %v1556 = vpow.pop %v1555
        %v1557 = vmul.f32 %v1543, 1.442695
        %v1558 = vpow.pop %v1557
        %v1559 = vmul.f32 %v1544, 1.442695
        %v1560 = vpow.pop %v1559
        %v1561 = vsel %vm1515, %v1546, 0.0
        %v1562 = vsel %vm1515, %v1548, 0.0
        %v1563 = vadd.f32 %v1561, %v1562
        %v1564 = vsel %vm1515, %v1550, 0.0
        %v1565 = vadd.f32 %v1563, %v1564
        %v1566 = vsel %vm1515, %v1552, 0.0
        %v1567 = vadd.f32 %v1565, %v1566
        %v1568 = vsel %vm1515, %v1554, 0.0
        %v1569 = vadd.f32 %v1567, %v1568
        %v1570 = vsel %vm1515, %v1556, 0.0
        %v1571 = vadd.f32 %v1569, %v1570
        %v1572 = vsel %vm1515, %v1558, 0.0
        %v1573 = vadd.f32 %v1571, %v1572
        %v1574 = vsel %vm1515, %v1560, 0.0
        %v1575 = vadd.f32 %v1573, %v1574
        %v1576 = vrot.slane %v1575, 4
        %v1577 = vadd.f32 %v1575, %v1576
        %v1578 = vrot.slane %v1577, 2
        %v1579 = vadd.f32 %v1577, %v1578
        %v1580 = vrot.slane %v1579, 1
        %v1581 = vadd.f32 %v1579, %v1580
        %v1582 = vrcp.pop %v1581
        %v1583 = vmul.f32 %v1546, %v1582
        %v1584 = vmul.f32 %v1548, %v1582
        %v1585 = vmul.f32 %v1550, %v1582
        %v1586 = vmul.f32 %v1552, %v1582
        %v1587 = vmul.f32 %v1554, %v1582
        %v1588 = vmul.f32 %v1556, %v1582
        %v1589 = vmul.f32 %v1558, %v1582
        %v1590 = vmul.f32 %v1560, %v1582
        %v1591 = vpack.c.bf16 %v1584, %v1583
        %v1592 = vpack.c.bf16 %v1586, %v1585
        %v1593 = vpack.c.bf16 %v1588, %v1587
        %v1594 = vpack.c.bf16 %v1590, %v1589
        %1595 = vxpose.xlu0.c.b16.start [1/8] %v1591, 128
        %1596 = vxpose.xlu0.c.b16.cont [2/8] %v1592, 128
        %1597 = vxpose.xlu0.c.b16.cont [3/8] %v1593, 128
        %1598 = vxpose.xlu0.c.b16.cont [4/8] %v1594, 128
        %1599 = vxpose.xlu0.c.b16.cont [5/8] 0, 128
        %1600 = vxpose.xlu0.c.b16.cont [6/8] 0, 128
        %1601 = vxpose.xlu0.c.b16.cont [7/8] 0, 128
        %1602 = vxpose.xlu0.c.b16.end [8/8] 0, 128
        %v1603 = vpop.trf.xlu0
        %v1604 = vpop.trf.xlu0
        %v1605 = vpop.trf.xlu0
        %v1606 = vpop.trf.xlu0
        %v1607 = vpop.trf.xlu0
        %v1608 = vpop.trf.xlu0
        %v1609 = vpop.trf.xlu0
        %v1610 = vpop.trf.xlu0
        %vm1611 = vcmask 523264
        %v1613 = vsel %vm1611, %v1603, 0
        %v1616 = vsel %vm1611, %v1604, 0
        %1618 = vmatprep.subr.bf16.mxu0 %v1508
        %1619 = vmatpush1.bf16.msra.mxu0 %v1507
        %1620 = vmatprep.subr.bf16.mxu0 %v1510
        %1621 = vmatpush1.bf16.msra.mxu0 %v1509
        %1622 = vmatprep.subr.bf16.mxu0 %v1512
        %1623 = vmatpush1.bf16.msra.mxu0 %v1511
        %1624 = vmatprep.subr.bf16.mxu0 %v1514
        %1625 = vmatpush1.bf16.msra.mxu0 %v1513
        %1626 = vmatprep.subr.bf16.mxu0 0
        %1627 = vmatpush1.bf16.msra.mxu0 0
        %1628 = vmatprep.subr.bf16.mxu0 0
        %1629 = vmatpush1.bf16.msra.mxu0 0
        %1630 = vmatprep.subr.bf16.mxu0 0
        %1631 = vmatpush1.bf16.msra.mxu0 0
        %1632 = vmatprep.subr.bf16.mxu0 0
        %1633 = vmatpush1.bf16.msra.mxu0 0
        %1634 = vmatprep.subr.bf16.mxu0 0
        %1635 = vmatpush1.bf16.msra.mxu0 0
        %1636 = vmatprep.subr.bf16.mxu0 0
        %1637 = vmatpush1.bf16.msra.mxu0 0
        %1638 = vmatprep.subr.bf16.mxu0 0
        %1639 = vmatpush1.bf16.msra.mxu0 0
        %1640 = vmatprep.subr.bf16.mxu0 0
        %1641 = vmatpush1.bf16.msra.mxu0 0
        %1642 = vmatprep.subr.bf16.mxu0 0
        %1643 = vmatpush1.bf16.msra.mxu0 0
        %1644 = vmatprep.subr.bf16.mxu0 0
        %1645 = vmatpush1.bf16.msra.mxu0 0
        %1646 = vmatprep.subr.bf16.mxu0 0
        %1647 = vmatpush1.bf16.msra.mxu0 0
        %1648 = vmatprep.subr.bf16.mxu0 0
        %1649 = vmatpush1.bf16.msra.mxu0 0
        %1650 = vmatprep.mubr.bf16.mxu0 0
        %1651 = vmatmul.mubr.bf16.gmra.mrb[0].mxu0 %v1613
        %v1652 = vpop.f32.mrb[0].mxu0
        %v1653 = vadd.f32 0.0, %v1652
        %v1654 = vpop.f32.mrb[0].mxu0
        %v1655 = vadd.f32 0.0, %v1654
        %v1656 = vpop.f32.mrb[0].mxu0
        %v1657 = vadd.f32 0.0, %v1656
        %v1658 = vpop.f32.mrb[0].mxu0
        %v1659 = vadd.f32 0.0, %v1658
        %1660 = vmatprep.mubr.bf16.mxu0 0
        %1661 = vmatmul.mubr.bf16.gmra.mrb[0].mxu0 %v1616
        %v1662 = vpop.f32.mrb[0].mxu0
        %v1663 = vadd.f32 0.0, %v1662
        %v1664 = vpop.f32.mrb[0].mxu0
        %v1665 = vadd.f32 0.0, %v1664
        %v1666 = vpop.f32.mrb[0].mxu0
        %v1667 = vpop.f32.mrb[0].mxu0
        %1668 = vdwg.mxu0
        %v1669 = vpack.c.bf16 %v1657, %v1653
        %v1670 = vpack.c.bf16 %v1659, %v1655
        %v1671 = vpack.c.bf16 %v1663, %v1663
        %v1672 = vpack.c.bf16 %v1665, %v1665
        %v1673 = vld [vmem:[#allocation14] sm:$0xff]
        %v1674 = vld [vmem:[#allocation14 + $0x8] sm:$0xff]
        %v1675 = vld [vmem:[#allocation14 + $0x10] sm:$0xff]
        %v1676 = vld [vmem:[#allocation14 + $0x18] sm:$0xff]
        %v1677 = vld [vmem:[#allocation14 + $0x20] sm:$0xff]
        %v1678 = vld [vmem:[#allocation14 + $0x28] sm:$0xff]
        %v1679 = vld [vmem:[#allocation14 + $0x30] sm:$0xff]
        %v1680 = vld [vmem:[#allocation14 + $0x38] sm:$0xff]
        %v1681 = vld [vmem:[#allocation14 + $0x40] sm:$0xff]
        %v1682 = vld [vmem:[#allocation14 + $0x48] sm:$0xff]
        %v1683 = vld [vmem:[#allocation14 + $0x50] sm:$0xff]
        %v1684 = vld [vmem:[#allocation14 + $0x58] sm:$0xff]
        %v1685 = vld [vmem:[#allocation14 + $0x60] sm:$0xff]
        %v1686 = vld [vmem:[#allocation14 + $0x68] sm:$0xff]
        %v1687 = vld [vmem:[#allocation14 + $0x70] sm:$0xff]
        %v1688 = vld [vmem:[#allocation14 + $0x78] sm:$0xff]
        %v1689 = vld [vmem:[#allocation14 + $0x80] sm:$0xff]
        %v1690 = vld [vmem:[#allocation14 + $0x88] sm:$0xff]
        %v1691 = vld [vmem:[#allocation14 + $0x90] sm:$0xff]
        %v1692 = vld [vmem:[#allocation14 + $0x98] sm:$0xff]
        %v1693 = vld [vmem:[#allocation14 + $0xa0] sm:$0xff]
        %v1694 = vld [vmem:[#allocation14 + $0xa8] sm:$0xff]
        %v1695 = vld [vmem:[#allocation14 + $0xb0] sm:$0xff]
        %v1696 = vld [vmem:[#allocation14 + $0xb8] sm:$0xff]
        %v1697 = vld [vmem:[#allocation14 + $0xc0] sm:$0xff]
        %v1698 = vld [vmem:[#allocation14 + $0xc8] sm:$0xff]
        %v1699 = vld [vmem:[#allocation14 + $0xd0] sm:$0xff]
        %v1700 = vld [vmem:[#allocation14 + $0xd8] sm:$0xff]
        %v1701 = vld [vmem:[#allocation14 + $0xe0] sm:$0xff]
        %v1702 = vld [vmem:[#allocation14 + $0xe8] sm:$0xff]
        %v1703 = vld [vmem:[#allocation14 + $0xf0] sm:$0xff]
        %v1704 = vld [vmem:[#allocation14 + $0xf8] sm:$0xff]
        %v1705 = vld [vmem:[#allocation16] sm:$0x3]
        %v1707 = vlaneseq
        %v1708 = vshrl.u32 %v1707, 7
        %v1709 = vsub.s32 0, %v1708
        %v1710 = vrot.slane %v1705, %v1709
        %v1711 = vlaneseq
        %v1712 = vshrl.u32 %v1711, 7
        %v1713 = vsub.s32 1, %v1712
        %v1714 = vrot.slane %v1705, %v1713
        %v1749 = vunpack.c.l.b16 %v1673
        %v1750 = vunpack.c.h.b16 %v1673
        %v1751 = vunpack.c.l.b16 %v1674
        %v1752 = vunpack.c.h.b16 %v1674
        %v1753 = vunpack.c.l.b16 %v1675
        %v1754 = vunpack.c.h.b16 %v1675
        %v1755 = vunpack.c.l.b16 %v1676
        %v1756 = vunpack.c.h.b16 %v1676
        %v1757 = vunpack.c.l.b16 %v1677
        %v1758 = vunpack.c.h.b16 %v1677
        %v1759 = vunpack.c.l.b16 %v1678
        %v1760 = vunpack.c.h.b16 %v1678
        %v1761 = vunpack.c.l.b16 %v1679
        %v1762 = vunpack.c.h.b16 %v1679
        %v1763 = vunpack.c.l.b16 %v1680
        %v1764 = vunpack.c.h.b16 %v1680
        %v1765 = vunpack.c.l.b16 %v1681
        %v1766 = vunpack.c.h.b16 %v1681
        %v1767 = vunpack.c.l.b16 %v1682
        %v1768 = vunpack.c.h.b16 %v1682
        %v1769 = vunpack.c.l.b16 %v1683
        %v1770 = vunpack.c.h.b16 %v1683
        %v1771 = vunpack.c.l.b16 %v1684
        %v1772 = vunpack.c.h.b16 %v1684
        %v1773 = vunpack.c.l.b16 %v1685
        %v1774 = vunpack.c.h.b16 %v1685
        %v1775 = vunpack.c.l.b16 %v1686
        %v1776 = vunpack.c.h.b16 %v1686
        %v1777 = vunpack.c.l.b16 %v1687
        %v1778 = vunpack.c.h.b16 %v1687
        %v1779 = vunpack.c.l.b16 %v1688
        %v1780 = vunpack.c.h.b16 %v1688
        %v1781 = vunpack.c.l.b16 %v1689
        %v1782 = vunpack.c.h.b16 %v1689
        %v1783 = vunpack.c.l.b16 %v1690
        %v1784 = vunpack.c.h.b16 %v1690
        %v1785 = vunpack.c.l.b16 %v1691
        %v1786 = vunpack.c.h.b16 %v1691
        %v1787 = vunpack.c.l.b16 %v1692
        %v1788 = vunpack.c.h.b16 %v1692
        %v1789 = vunpack.c.l.b16 %v1693
        %v1790 = vunpack.c.h.b16 %v1693
        %v1791 = vunpack.c.l.b16 %v1694
        %v1792 = vunpack.c.h.b16 %v1694
        %v1793 = vunpack.c.l.b16 %v1695
        %v1794 = vunpack.c.h.b16 %v1695
        %v1795 = vunpack.c.l.b16 %v1696
        %v1796 = vunpack.c.h.b16 %v1696
        %v1797 = vunpack.c.l.b16 %v1697
        %v1798 = vunpack.c.h.b16 %v1697
        %v1799 = vunpack.c.l.b16 %v1698
        %v1800 = vunpack.c.h.b16 %v1698
        %v1801 = vunpack.c.l.b16 %v1699
        %v1802 = vunpack.c.h.b16 %v1699
        %v1803 = vunpack.c.l.b16 %v1700
        %v1804 = vunpack.c.h.b16 %v1700
        %v1805 = vunpack.c.l.b16 %v1701
        %v1806 = vunpack.c.h.b16 %v1701
        %v1807 = vunpack.c.l.b16 %v1702
        %v1808 = vunpack.c.h.b16 %v1702
        %v1809 = vunpack.c.l.b16 %v1703
        %v1810 = vunpack.c.h.b16 %v1703
        %v1811 = vunpack.c.l.b16 %v1704
        %v1812 = vunpack.c.h.b16 %v1704
        %v1813 = vpack.c.b16 %v1751, %v1749
        %v1814 = vpack.c.b16 %v1752, %v1750
        %v1815 = vpack.c.b16 %v1755, %v1753
        %v1816 = vpack.c.b16 %v1756, %v1754
        %v1817 = vpack.c.b16 %v1759, %v1757
        %v1818 = vpack.c.b16 %v1760, %v1758
        %v1819 = vpack.c.b16 %v1763, %v1761
        %v1820 = vpack.c.b16 %v1764, %v1762
        %v1821 = vpack.c.b16 %v1767, %v1765
        %v1822 = vpack.c.b16 %v1768, %v1766
        %v1823 = vpack.c.b16 %v1771, %v1769
        %v1824 = vpack.c.b16 %v1772, %v1770
        %v1825 = vpack.c.b16 %v1775, %v1773
        %v1826 = vpack.c.b16 %v1776, %v1774
        %v1827 = vpack.c.b16 %v1779, %v1777
        %v1828 = vpack.c.b16 %v1780, %v1778
        %v1829 = vpack.c.b16 %v1783, %v1781
        %v1830 = vpack.c.b16 %v1784, %v1782
        %v1831 = vpack.c.b16 %v1787, %v1785
        %v1832 = vpack.c.b16 %v1788, %v1786
        %v1833 = vpack.c.b16 %v1791, %v1789
        %v1834 = vpack.c.b16 %v1792, %v1790
        %v1835 = vpack.c.b16 %v1795, %v1793
        %v1836 = vpack.c.b16 %v1796, %v1794
        %v1837 = vpack.c.b16 %v1799, %v1797
        %v1838 = vpack.c.b16 %v1800, %v1798
        %v1839 = vpack.c.b16 %v1803, %v1801
        %v1840 = vpack.c.b16 %v1804, %v1802
        %v1841 = vpack.c.b16 %v1807, %v1805
        %v1842 = vpack.c.b16 %v1808, %v1806
        %v1843 = vpack.c.b16 %v1811, %v1809
        %v1844 = vpack.c.b16 %v1812, %v1810
        %1877 = vmatprep.subr.bf16.mxu0 %v1814
        %1878 = vmatpush1.bf16.msra.mxu0 %v1813
        %1879 = vmatprep.subr.bf16.mxu0 %v1816
        %1880 = vmatpush1.bf16.msra.mxu0 %v1815
        %1881 = vmatprep.subr.bf16.mxu0 %v1818
        %1882 = vmatpush1.bf16.msra.mxu0 %v1817
        %1883 = vmatprep.subr.bf16.mxu0 %v1820
        %1884 = vmatpush1.bf16.msra.mxu0 %v1819
        %1885 = vmatprep.subr.bf16.mxu0 %v1822
        %1886 = vmatpush1.bf16.msra.mxu0 %v1821
        %1887 = vmatprep.subr.bf16.mxu0 %v1824
        %1888 = vmatpush1.bf16.msra.mxu0 %v1823
        %1889 = vmatprep.subr.bf16.mxu0 %v1826
        %1890 = vmatpush1.bf16.msra.mxu0 %v1825
        %1891 = vmatprep.subr.bf16.mxu0 %v1828
        %1892 = vmatpush1.bf16.msra.mxu0 %v1827
        %1893 = vmatprep.subr.bf16.mxu0 %v1830
        %1894 = vmatpush1.bf16.msra.mxu0 %v1829
        %1895 = vmatprep.subr.bf16.mxu0 %v1832
        %1896 = vmatpush1.bf16.msra.mxu0 %v1831
        %1897 = vmatprep.subr.bf16.mxu0 %v1834
        %1898 = vmatpush1.bf16.msra.mxu0 %v1833
        %1899 = vmatprep.subr.bf16.mxu0 %v1836
        %1900 = vmatpush1.bf16.msra.mxu0 %v1835
        %1901 = vmatprep.subr.bf16.mxu0 %v1838
        %1902 = vmatpush1.bf16.msra.mxu0 %v1837
        %1903 = vmatprep.subr.bf16.mxu0 %v1840
        %1904 = vmatpush1.bf16.msra.mxu0 %v1839
        %1905 = vmatprep.subr.bf16.mxu0 %v1842
        %1906 = vmatpush1.bf16.msra.mxu0 %v1841
        %1907 = vmatprep.subr.bf16.mxu0 %v1844
        %1908 = vmatpush1.bf16.msra.mxu0 %v1843
        %1909 = vmatprep.mubr.bf16.mxu0 %v1508
        %1910 = vmatmul.mubr.bf16.gmra.mrb[0].mxu0 %v1507
        %v1911 = vpop.f32.mrb[0].mxu0
        %v1912 = vadd.f32 %v1710, %v1911
        %v1913 = vpop.f32.mrb[0].mxu0
        %v1914 = vadd.f32 %v1714, %v1913
        %v1915 = vpop.f32.mrb[0].mxu0
        %v1916 = vadd.f32 %v1710, %v1915
        %v1917 = vpop.f32.mrb[0].mxu0
        %v1918 = vadd.f32 %v1714, %v1917
        %1919 = vmatprep.mubr.bf16.mxu0 %v1510
        %1920 = vmatmul.mubr.bf16.gmra.mrb[0].mxu0 %v1509
        %v1921 = vpop.f32.mrb[0].mxu0
        %v1922 = vadd.f32 %v1710, %v1921
        %v1923 = vpop.f32.mrb[0].mxu0
        %v1924 = vadd.f32 %v1714, %v1923
        %v1925 = vpop.f32.mrb[0].mxu0
        %v1926 = vadd.f32 %v1710, %v1925
        %v1927 = vpop.f32.mrb[0].mxu0
        %v1928 = vadd.f32 %v1714, %v1927
        %1929 = vmatprep.mubr.bf16.mxu0 %v1512
        %1930 = vmatmul.mubr.bf16.gmra.mrb[0].mxu0 %v1511
        %v1931 = vpop.f32.mrb[0].mxu0
        %v1932 = vadd.f32 %v1710, %v1931
        %v1933 = vpop.f32.mrb[0].mxu0
        %v1934 = vadd.f32 %v1714, %v1933
        %v1935 = vpop.f32.mrb[0].mxu0
        %v1936 = vadd.f32 %v1710, %v1935
        %v1937 = vpop.f32.mrb[0].mxu0
        %v1938 = vadd.f32 %v1714, %v1937
        %1939 = vmatprep.mubr.bf16.mxu0 %v1514
        %1940 = vmatmul.mubr.bf16.gmra.mrb[0].mxu0 %v1513
        %v1941 = vpop.f32.mrb[0].mxu0
        %v1942 = vadd.f32 %v1710, %v1941
        %v1943 = vpop.f32.mrb[0].mxu0
        %v1944 = vadd.f32 %v1714, %v1943
        %v1945 = vpop.f32.mrb[0].mxu0
        %v1946 = vadd.f32 %v1710, %v1945
        %v1947 = vpop.f32.mrb[0].mxu0
        %v1948 = vadd.f32 %v1714, %v1947
        %1949 = vdwg.mxu0
        %v1950 = vld [vmem:[#allocation17] sm:$0xff]
        %v1951 = vld [vmem:[#allocation17 + $0x8] sm:$0xff]
        %v1952 = vld [vmem:[#allocation17 + $0x10] sm:$0xff]
        %v1953 = vld [vmem:[#allocation17 + $0x18] sm:$0xff]
        %v1954 = vld [vmem:[#allocation17 + $0x20] sm:$0xff]
        %v1955 = vld [vmem:[#allocation17 + $0x28] sm:$0xff]
        %v1956 = vld [vmem:[#allocation17 + $0x30] sm:$0xff]
        %v1957 = vld [vmem:[#allocation17 + $0x38] sm:$0xff]
        %v1958 = vld [vmem:[#allocation17 + $0x40] sm:$0xff]
        %v1959 = vld [vmem:[#allocation17 + $0x48] sm:$0xff]
        %v1960 = vld [vmem:[#allocation17 + $0x50] sm:$0xff]
        %v1961 = vld [vmem:[#allocation17 + $0x58] sm:$0xff]
        %v1962 = vld [vmem:[#allocation17 + $0x60] sm:$0xff]
        %v1963 = vld [vmem:[#allocation17 + $0x68] sm:$0xff]
        %v1964 = vld [vmem:[#allocation17 + $0x70] sm:$0xff]
        %v1965 = vld [vmem:[#allocation17 + $0x78] sm:$0xff]
        %v1966 = vld [vmem:[#allocation17 + $0x80] sm:$0xff]
        %v1967 = vld [vmem:[#allocation17 + $0x88] sm:$0xff]
        %v1968 = vld [vmem:[#allocation17 + $0x90] sm:$0xff]
        %v1969 = vld [vmem:[#allocation17 + $0x98] sm:$0xff]
        %v1970 = vld [vmem:[#allocation17 + $0xa0] sm:$0xff]
        %v1971 = vld [vmem:[#allocation17 + $0xa8] sm:$0xff]
        %v1972 = vld [vmem:[#allocation17 + $0xb0] sm:$0xff]
        %v1973 = vld [vmem:[#allocation17 + $0xb8] sm:$0xff]
        %v1974 = vld [vmem:[#allocation17 + $0xc0] sm:$0xff]
        %v1975 = vld [vmem:[#allocation17 + $0xc8] sm:$0xff]
        %v1976 = vld [vmem:[#allocation17 + $0xd0] sm:$0xff]
        %v1977 = vld [vmem:[#allocation17 + $0xd8] sm:$0xff]
        %v1978 = vld [vmem:[#allocation17 + $0xe0] sm:$0xff]
        %v1979 = vld [vmem:[#allocation17 + $0xe8] sm:$0xff]
        %v1980 = vld [vmem:[#allocation17 + $0xf0] sm:$0xff]
        %v1981 = vld [vmem:[#allocation17 + $0xf8] sm:$0xff]
        %v1982 = vld [vmem:[#allocation19] sm:$0x3]
        %v1984 = vlaneseq
        %v1985 = vshrl.u32 %v1984, 7
        %v1986 = vsub.s32 0, %v1985
        %v1987 = vrot.slane %v1982, %v1986
        %v1988 = vlaneseq
        %v1989 = vshrl.u32 %v1988, 7
        %v1990 = vsub.s32 1, %v1989
        %v1991 = vrot.slane %v1982, %v1990
        %v2026 = vunpack.c.l.b16 %v1950
        %v2027 = vunpack.c.h.b16 %v1950
        %v2028 = vunpack.c.l.b16 %v1951
        %v2029 = vunpack.c.h.b16 %v1951
        %v2030 = vunpack.c.l.b16 %v1952
        %v2031 = vunpack.c.h.b16 %v1952
        %v2032 = vunpack.c.l.b16 %v1953
        %v2033 = vunpack.c.h.b16 %v1953
        %v2034 = vunpack.c.l.b16 %v1954
        %v2035 = vunpack.c.h.b16 %v1954
        %v2036 = vunpack.c.l.b16 %v1955
        %v2037 = vunpack.c.h.b16 %v1955
        %v2038 = vunpack.c.l.b16 %v1956
        %v2039 = vunpack.c.h.b16 %v1956
        %v2040 = vunpack.c.l.b16 %v1957
        %v2041 = vunpack.c.h.b16 %v1957
        %v2042 = vunpack.c.l.b16 %v1958
        %v2043 = vunpack.c.h.b16 %v1958
        %v2044 = vunpack.c.l.b16 %v1959
        %v2045 = vunpack.c.h.b16 %v1959
        %v2046 = vunpack.c.l.b16 %v1960
        %v2047 = vunpack.c.h.b16 %v1960
        %v2048 = vunpack.c.l.b16 %v1961
        %v2049 = vunpack.c.h.b16 %v1961
        %v2050 = vunpack.c.l.b16 %v1962
        %v2051 = vunpack.c.h.b16 %v1962
        %v2052 = vunpack.c.l.b16 %v1963
        %v2053 = vunpack.c.h.b16 %v1963
        %v2054 = vunpack.c.l.b16 %v1964
        %v2055 = vunpack.c.h.b16 %v1964
        %v2056 = vunpack.c.l.b16 %v1965
        %v2057 = vunpack.c.h.b16 %v1965
        %v2058 = vunpack.c.l.b16 %v1966
        %v2059 = vunpack.c.h.b16 %v1966
        %v2060 = vunpack.c.l.b16 %v1967
        %v2061 = vunpack.c.h.b16 %v1967
        %v2062 = vunpack.c.l.b16 %v1968
        %v2063 = vunpack.c.h.b16 %v1968
        %v2064 = vunpack.c.l.b16 %v1969
        %v2065 = vunpack.c.h.b16 %v1969
        %v2066 = vunpack.c.l.b16 %v1970
        %v2067 = vunpack.c.h.b16 %v1970
        %v2068 = vunpack.c.l.b16 %v1971
        %v2069 = vunpack.c.h.b16 %v1971
        %v2070 = vunpack.c.l.b16 %v1972
        %v2071 = vunpack.c.h.b16 %v1972
        %v2072 = vunpack.c.l.b16 %v1973
        %v2073 = vunpack.c.h.b16 %v1973
        %v2074 = vunpack.c.l.b16 %v1974
        %v2075 = vunpack.c.h.b16 %v1974
        %v2076 = vunpack.c.l.b16 %v1975
        %v2077 = vunpack.c.h.b16 %v1975
        %v2078 = vunpack.c.l.b16 %v1976
        %v2079 = vunpack.c.h.b16 %v1976
        %v2080 = vunpack.c.l.b16 %v1977
        %v2081 = vunpack.c.h.b16 %v1977
        %v2082 = vunpack.c.l.b16 %v1978
        %v2083 = vunpack.c.h.b16 %v1978
        %v2084 = vunpack.c.l.b16 %v1979
        %v2085 = vunpack.c.h.b16 %v1979
        %v2086 = vunpack.c.l.b16 %v1980
        %v2087 = vunpack.c.h.b16 %v1980
        %v2088 = vunpack.c.l.b16 %v1981
        %v2089 = vunpack.c.h.b16 %v1981
        %v2090 = vpack.c.b16 %v2028, %v2026
        %v2091 = vpack.c.b16 %v2029, %v2027
        %v2092 = vpack.c.b16 %v2032, %v2030
        %v2093 = vpack.c.b16 %v2033, %v2031
        %v2094 = vpack.c.b16 %v2036, %v2034
        %v2095 = vpack.c.b16 %v2037, %v2035
        %v2096 = vpack.c.b16 %v2040, %v2038
        %v2097 = vpack.c.b16 %v2041, %v2039
        %v2098 = vpack.c.b16 %v2044, %v2042
        %v2099 = vpack.c.b16 %v2045, %v2043
        %v2100 = vpack.c.b16 %v2048, %v2046
        %v2101 = vpack.c.b16 %v2049, %v2047
        %v2102 = vpack.c.b16 %v2052, %v2050
        %v2103 = vpack.c.b16 %v2053, %v2051
        %v2104 = vpack.c.b16 %v2056, %v2054
        %v2105 = vpack.c.b16 %v2057, %v2055
        %v2106 = vpack.c.b16 %v2060, %v2058
        %v2107 = vpack.c.b16 %v2061, %v2059
        %v2108 = vpack.c.b16 %v2064, %v2062
        %v2109 = vpack.c.b16 %v2065, %v2063
        %v2110 = vpack.c.b16 %v2068, %v2066
        %v2111 = vpack.c.b16 %v2069, %v2067
        %v2112 = vpack.c.b16 %v2072, %v2070
        %v2113 = vpack.c.b16 %v2073, %v2071
        %v2114 = vpack.c.b16 %v2076, %v2074
        %v2115 = vpack.c.b16 %v2077, %v2075
        %v2116 = vpack.c.b16 %v2080, %v2078
        %v2117 = vpack.c.b16 %v2081, %v2079
        %v2118 = vpack.c.b16 %v2084, %v2082
        %v2119 = vpack.c.b16 %v2085, %v2083
        %v2120 = vpack.c.b16 %v2088, %v2086
        %v2121 = vpack.c.b16 %v2089, %v2087
        %2154 = vmatprep.subr.bf16.mxu0 %v2091
        %2155 = vmatpush1.bf16.msra.mxu0 %v2090
        %2156 = vmatprep.subr.bf16.mxu0 %v2093
        %2157 = vmatpush1.bf16.msra.mxu0 %v2092
        %2158 = vmatprep.subr.bf16.mxu0 %v2095
        %2159 = vmatpush1.bf16.msra.mxu0 %v2094
        %2160 = vmatprep.subr.bf16.mxu0 %v2097
        %2161 = vmatpush1.bf16.msra.mxu0 %v2096
        %2162 = vmatprep.subr.bf16.mxu0 %v2099
        %2163 = vmatpush1.bf16.msra.mxu0 %v2098
        %2164 = vmatprep.subr.bf16.mxu0 %v2101
        %2165 = vmatpush1.bf16.msra.mxu0 %v2100
        %2166 = vmatprep.subr.bf16.mxu0 %v2103
        %2167 = vmatpush1.bf16.msra.mxu0 %v2102
        %2168 = vmatprep.subr.bf16.mxu0 %v2105
        %2169 = vmatpush1.bf16.msra.mxu0 %v2104
        %2170 = vmatprep.subr.bf16.mxu0 %v2107
        %2171 = vmatpush1.bf16.msra.mxu0 %v2106
        %2172 = vmatprep.subr.bf16.mxu0 %v2109
        %2173 = vmatpush1.bf16.msra.mxu0 %v2108
        %2174 = vmatprep.subr.bf16.mxu0 %v2111
        %2175 = vmatpush1.bf16.msra.mxu0 %v2110
        %2176 = vmatprep.subr.bf16.mxu0 %v2113
        %2177 = vmatpush1.bf16.msra.mxu0 %v2112
        %2178 = vmatprep.subr.bf16.mxu0 %v2115
        %2179 = vmatpush1.bf16.msra.mxu0 %v2114
        %2180 = vmatprep.subr.bf16.mxu0 %v2117
        %2181 = vmatpush1.bf16.msra.mxu0 %v2116
        %2182 = vmatprep.subr.bf16.mxu0 %v2119
        %2183 = vmatpush1.bf16.msra.mxu0 %v2118
        %2184 = vmatprep.subr.bf16.mxu0 %v2121
        %2185 = vmatpush1.bf16.msra.mxu0 %v2120
        %2186 = vmatprep.mubr.bf16.mxu0 %v1670
        %2187 = vmatmul.mubr.bf16.gmra.mrb[0].mxu0 %v1669
        %v2188 = vpop.f32.mrb[0].mxu0
        %v2189 = vadd.f32 %v1987, %v2188
        %v2190 = vpop.f32.mrb[0].mxu0
        %v2191 = vadd.f32 %v1991, %v2190
        %v2192 = vpop.f32.mrb[0].mxu0
        %v2193 = vadd.f32 %v1987, %v2192
        %v2194 = vpop.f32.mrb[0].mxu0
        %v2195 = vadd.f32 %v1991, %v2194
        %2196 = vmatprep.mubr.bf16.mxu0 %v1672
        %2197 = vmatmul.mubr.bf16.gmra.mrb[0].mxu0 %v1671
        %v2198 = vpop.f32.mrb[0].mxu0
        %v2199 = vadd.f32 %v1987, %v2198
        %v2200 = vpop.f32.mrb[0].mxu0
        %v2201 = vadd.f32 %v1991, %v2200
        %v2202 = vpop.f32.mrb[0].mxu0
        %v2203 = vpop.f32.mrb[0].mxu0
        %2204 = vdwg.mxu0
        %v2205 = vld [vmem:[#allocation20] sm:$0xff]
        %v2206 = vld [vmem:[#allocation20 + $0x8] sm:$0xff]
        %v2207 = vld [vmem:[#allocation20 + $0x10] sm:$0xff]
        %v2208 = vld [vmem:[#allocation20 + $0x18] sm:$0xff]
        %v2209 = vld [vmem:[#allocation20 + $0x20] sm:$0xff]
        %v2210 = vld [vmem:[#allocation20 + $0x28] sm:$0xff]
        %v2211 = vld [vmem:[#allocation20 + $0x30] sm:$0xff]
        %v2212 = vld [vmem:[#allocation20 + $0x38] sm:$0xff]
        %v2213 = vld [vmem:[#allocation20 + $0x40] sm:$0xff]
        %v2214 = vld [vmem:[#allocation20 + $0x48] sm:$0xff]
        %v2215 = vld [vmem:[#allocation20 + $0x50] sm:$0xff]
        %v2216 = vld [vmem:[#allocation20 + $0x58] sm:$0xff]
        %v2217 = vld [vmem:[#allocation20 + $0x60] sm:$0xff]
        %v2218 = vld [vmem:[#allocation20 + $0x68] sm:$0xff]
        %v2219 = vld [vmem:[#allocation20 + $0x70] sm:$0xff]
        %v2220 = vld [vmem:[#allocation20 + $0x78] sm:$0xff]
        %v2221 = vld [vmem:[#allocation20 + $0x80] sm:$0xff]
        %v2222 = vld [vmem:[#allocation20 + $0x88] sm:$0xff]
        %v2223 = vld [vmem:[#allocation20 + $0x90] sm:$0xff]
        %v2224 = vld [vmem:[#allocation20 + $0x98] sm:$0xff]
        %v2225 = vld [vmem:[#allocation20 + $0xa0] sm:$0xff]
        %v2226 = vld [vmem:[#allocation20 + $0xa8] sm:$0xff]
        %v2227 = vld [vmem:[#allocation20 + $0xb0] sm:$0xff]
        %v2228 = vld [vmem:[#allocation20 + $0xb8] sm:$0xff]
        %v2229 = vld [vmem:[#allocation20 + $0xc0] sm:$0xff]
        %v2230 = vld [vmem:[#allocation20 + $0xc8] sm:$0xff]
        %v2231 = vld [vmem:[#allocation20 + $0xd0] sm:$0xff]
        %v2232 = vld [vmem:[#allocation20 + $0xd8] sm:$0xff]
        %v2233 = vld [vmem:[#allocation20 + $0xe0] sm:$0xff]
        %v2234 = vld [vmem:[#allocation20 + $0xe8] sm:$0xff]
        %v2235 = vld [vmem:[#allocation20 + $0xf0] sm:$0xff]
        %v2236 = vld [vmem:[#allocation20 + $0xf8] sm:$0xff]
        %v2237 = vld [vmem:[#allocation22] sm:$0x3]
        %v2239 = vlaneseq
        %v2240 = vshrl.u32 %v2239, 7
        %v2241 = vsub.s32 0, %v2240
        %v2242 = vrot.slane %v2237, %v2241
        %v2243 = vlaneseq
        %v2244 = vshrl.u32 %v2243, 7
        %v2245 = vsub.s32 1, %v2244
        %v2246 = vrot.slane %v2237, %v2245
        %v2281 = vunpack.c.l.b16 %v2205
        %v2282 = vunpack.c.h.b16 %v2205
        %v2283 = vunpack.c.l.b16 %v2206
        %v2284 = vunpack.c.h.b16 %v2206
        %v2285 = vunpack.c.l.b16 %v2207
        %v2286 = vunpack.c.h.b16 %v2207
        %v2287 = vunpack.c.l.b16 %v2208
        %v2288 = vunpack.c.h.b16 %v2208
        %v2289 = vunpack.c.l.b16 %v2209
        %v2290 = vunpack.c.h.b16 %v2209
        %v2291 = vunpack.c.l.b16 %v2210
        %v2292 = vunpack.c.h.b16 %v2210
        %v2293 = vunpack.c.l.b16 %v2211
        %v2294 = vunpack.c.h.b16 %v2211
        %v2295 = vunpack.c.l.b16 %v2212
        %v2296 = vunpack.c.h.b16 %v2212
        %v2297 = vunpack.c.l.b16 %v2213
        %v2298 = vunpack.c.h.b16 %v2213
        %v2299 = vunpack.c.l.b16 %v2214
        %v2300 = vunpack.c.h.b16 %v2214
        %v2301 = vunpack.c.l.b16 %v2215
        %v2302 = vunpack.c.h.b16 %v2215
        %v2303 = vunpack.c.l.b16 %v2216
        %v2304 = vunpack.c.h.b16 %v2216
        %v2305 = vunpack.c.l.b16 %v2217
        %v2306 = vunpack.c.h.b16 %v2217
        %v2307 = vunpack.c.l.b16 %v2218
        %v2308 = vunpack.c.h.b16 %v2218
        %v2309 = vunpack.c.l.b16 %v2219
        %v2310 = vunpack.c.h.b16 %v2219
        %v2311 = vunpack.c.l.b16 %v2220
        %v2312 = vunpack.c.h.b16 %v2220
        %v2313 = vunpack.c.l.b16 %v2221
        %v2314 = vunpack.c.h.b16 %v2221
        %v2315 = vunpack.c.l.b16 %v2222
        %v2316 = vunpack.c.h.b16 %v2222
        %v2317 = vunpack.c.l.b16 %v2223
        %v2318 = vunpack.c.h.b16 %v2223
        %v2319 = vunpack.c.l.b16 %v2224
        %v2320 = vunpack.c.h.b16 %v2224
        %v2321 = vunpack.c.l.b16 %v2225
        %v2322 = vunpack.c.h.b16 %v2225
        %v2323 = vunpack.c.l.b16 %v2226
        %v2324 = vunpack.c.h.b16 %v2226
        %v2325 = vunpack.c.l.b16 %v2227
        %v2326 = vunpack.c.h.b16 %v2227
        %v2327 = vunpack.c.l.b16 %v2228
        %v2328 = vunpack.c.h.b16 %v2228
        %v2329 = vunpack.c.l.b16 %v2229
        %v2330 = vunpack.c.h.b16 %v2229
        %v2331 = vunpack.c.l.b16 %v2230
        %v2332 = vunpack.c.h.b16 %v2230
        %v2333 = vunpack.c.l.b16 %v2231
        %v2334 = vunpack.c.h.b16 %v2231
        %v2335 = vunpack.c.l.b16 %v2232
        %v2336 = vunpack.c.h.b16 %v2232
        %v2337 = vunpack.c.l.b16 %v2233
        %v2338 = vunpack.c.h.b16 %v2233
        %v2339 = vunpack.c.l.b16 %v2234
        %v2340 = vunpack.c.h.b16 %v2234
        %v2341 = vunpack.c.l.b16 %v2235
        %v2342 = vunpack.c.h.b16 %v2235
        %v2343 = vunpack.c.l.b16 %v2236
        %v2344 = vunpack.c.h.b16 %v2236
        %v2345 = vpack.c.b16 %v2283, %v2281
        %v2346 = vpack.c.b16 %v2284, %v2282
        %v2347 = vpack.c.b16 %v2287, %v2285
        %v2348 = vpack.c.b16 %v2288, %v2286
        %v2349 = vpack.c.b16 %v2291, %v2289
        %v2350 = vpack.c.b16 %v2292, %v2290
        %v2351 = vpack.c.b16 %v2295, %v2293
        %v2352 = vpack.c.b16 %v2296, %v2294
        %v2353 = vpack.c.b16 %v2299, %v2297
        %v2354 = vpack.c.b16 %v2300, %v2298
        %v2355 = vpack.c.b16 %v2303, %v2301
        %v2356 = vpack.c.b16 %v2304, %v2302
        %v2357 = vpack.c.b16 %v2307, %v2305
        %v2358 = vpack.c.b16 %v2308, %v2306
        %v2359 = vpack.c.b16 %v2311, %v2309
        %v2360 = vpack.c.b16 %v2312, %v2310
        %v2361 = vpack.c.b16 %v2315, %v2313
        %v2362 = vpack.c.b16 %v2316, %v2314
        %v2363 = vpack.c.b16 %v2319, %v2317
        %v2364 = vpack.c.b16 %v2320, %v2318
        %v2365 = vpack.c.b16 %v2323, %v2321
        %v2366 = vpack.c.b16 %v2324, %v2322
        %v2367 = vpack.c.b16 %v2327, %v2325
        %v2368 = vpack.c.b16 %v2328, %v2326
        %v2369 = vpack.c.b16 %v2331, %v2329
        %v2370 = vpack.c.b16 %v2332, %v2330
        %v2371 = vpack.c.b16 %v2335, %v2333
        %v2372 = vpack.c.b16 %v2336, %v2334
        %v2373 = vpack.c.b16 %v2339, %v2337
        %v2374 = vpack.c.b16 %v2340, %v2338
        %v2375 = vpack.c.b16 %v2343, %v2341
        %v2376 = vpack.c.b16 %v2344, %v2342
        %2409 = vmatprep.subr.bf16.mxu0 %v2346
        %2410 = vmatpush1.bf16.msra.mxu0 %v2345
        %2411 = vmatprep.subr.bf16.mxu0 %v2348
        %2412 = vmatpush1.bf16.msra.mxu0 %v2347
        %2413 = vmatprep.subr.bf16.mxu0 %v2350
        %2414 = vmatpush1.bf16.msra.mxu0 %v2349
        %2415 = vmatprep.subr.bf16.mxu0 %v2352
        %2416 = vmatpush1.bf16.msra.mxu0 %v2351
        %2417 = vmatprep.subr.bf16.mxu0 %v2354
        %2418 = vmatpush1.bf16.msra.mxu0 %v2353
        %2419 = vmatprep.subr.bf16.mxu0 %v2356
        %2420 = vmatpush1.bf16.msra.mxu0 %v2355
        %2421 = vmatprep.subr.bf16.mxu0 %v2358
        %2422 = vmatpush1.bf16.msra.mxu0 %v2357
        %2423 = vmatprep.subr.bf16.mxu0 %v2360
        %2424 = vmatpush1.bf16.msra.mxu0 %v2359
        %2425 = vmatprep.subr.bf16.mxu0 %v2362
        %2426 = vmatpush1.bf16.msra.mxu0 %v2361
        %2427 = vmatprep.subr.bf16.mxu0 %v2364
        %2428 = vmatpush1.bf16.msra.mxu0 %v2363
        %2429 = vmatprep.subr.bf16.mxu0 %v2366
        %2430 = vmatpush1.bf16.msra.mxu0 %v2365
        %2431 = vmatprep.subr.bf16.mxu0 %v2368
        %2432 = vmatpush1.bf16.msra.mxu0 %v2367
        %2433 = vmatprep.subr.bf16.mxu0 %v2370
        %2434 = vmatpush1.bf16.msra.mxu0 %v2369
        %2435 = vmatprep.subr.bf16.mxu0 %v2372
        %2436 = vmatpush1.bf16.msra.mxu0 %v2371
        %2437 = vmatprep.subr.bf16.mxu0 %v2374
        %2438 = vmatpush1.bf16.msra.mxu0 %v2373
        %2439 = vmatprep.subr.bf16.mxu0 %v2376
        %2440 = vmatpush1.bf16.msra.mxu0 %v2375
        %2441 = vmatprep.mubr.bf16.mxu0 %v1670
        %2442 = vmatmul.mubr.bf16.gmra.mrb[0].mxu0 %v1669
        %v2443 = vpop.f32.mrb[0].mxu0
        %v2444 = vadd.f32 %v2242, %v2443
        %v2445 = vpop.f32.mrb[0].mxu0
        %v2446 = vadd.f32 %v2246, %v2445
        %v2447 = vpop.f32.mrb[0].mxu0
        %v2448 = vadd.f32 %v2242, %v2447
        %v2449 = vpop.f32.mrb[0].mxu0
        %v2450 = vadd.f32 %v2246, %v2449
        %2451 = vmatprep.mubr.bf16.mxu0 %v1672
        %2452 = vmatmul.mubr.bf16.gmra.mrb[0].mxu0 %v1671
        %v2453 = vpop.f32.mrb[0].mxu0
        %v2454 = vadd.f32 %v2242, %v2453
        %v2455 = vpop.f32.mrb[0].mxu0
        %v2456 = vadd.f32 %v2246, %v2455
        %v2457 = vpop.f32.mrb[0].mxu0
        %v2458 = vpop.f32.mrb[0].mxu0
        %2459 = vdwg.mxu0
        %v2460 = vpack.c.bf16 %v1916, %v1912
        %v2461 = vpack.c.bf16 %v1918, %v1914
        %v2462 = vpack.c.bf16 %v1926, %v1922
        %v2463 = vpack.c.bf16 %v1928, %v1924
        %v2464 = vpack.c.bf16 %v1936, %v1932
        %v2465 = vpack.c.bf16 %v1938, %v1934
        %v2466 = vpack.c.bf16 %v1946, %v1942
        %v2467 = vpack.c.bf16 %v1948, %v1944
        %v2468 = vpack.c.bf16 %v2193, %v2189
        %v2469 = vpack.c.bf16 %v2195, %v2191
        %v2470 = vpack.c.bf16 %v2199, %v2199
        %v2471 = vpack.c.bf16 %v2201, %v2201
        %2472 = vmatprep.subr.bf16.mxu0 %v2469
        %2473 = vmatpush1.bf16.xpose.msra.mxu0 %v2468
        %2474 = vmatprep.subr.bf16.mxu0 %v2471
        %2475 = vmatpush1.bf16.xpose.msra.mxu0 %v2470
        %2476 = vmatprep.subr.bf16.mxu0 0
        %2477 = vmatpush1.bf16.xpose.msra.mxu0 0
        %2478 = vmatprep.subr.bf16.mxu0 0
        %2479 = vmatpush1.bf16.xpose.msra.mxu0 0
        %2480 = vmatprep.subr.bf16.mxu0 0
        %2481 = vmatpush1.bf16.xpose.msra.mxu0 0
        %2482 = vmatprep.subr.bf16.mxu0 0
        %2483 = vmatpush1.bf16.xpose.msra.mxu0 0
        %2484 = vmatprep.subr.bf16.mxu0 0
        %2485 = vmatpush1.bf16.xpose.msra.mxu0 0
        %2486 = vmatprep.subr.bf16.mxu0 0
        %2487 = vmatpush1.bf16.xpose.msra.mxu0 0
        %2488 = vmatprep.subr.bf16.mxu0 0
        %2489 = vmatpush1.bf16.xpose.msra.mxu0 0
        %2490 = vmatprep.subr.bf16.mxu0 0
        %2491 = vmatpush1.bf16.xpose.msra.mxu0 0
        %2492 = vmatprep.subr.bf16.mxu0 0
        %2493 = vmatpush1.bf16.xpose.msra.mxu0 0
        %2494 = vmatprep.subr.bf16.mxu0 0
        %2495 = vmatpush1.bf16.xpose.msra.mxu0 0
        %2496 = vmatprep.subr.bf16.mxu0 0
        %2497 = vmatpush1.bf16.xpose.msra.mxu0 0
        %2498 = vmatprep.subr.bf16.mxu0 0
        %2499 = vmatpush1.bf16.xpose.msra.mxu0 0
        %2500 = vmatprep.subr.bf16.mxu0 0
        %2501 = vmatpush1.bf16.xpose.msra.mxu0 0
        %2502 = vmatprep.subr.bf16.mxu0 0
        %2503 = vmatpush1.bf16.xpose.msra.mxu0 0
        %2504 = vmatprep.mubr.bf16.mxu0 %v2461
        %2505 = vmatmul.mubr.bf16.gmra.mrb[0].mxu0 %v2460
        %v2506 = vpop.f32.mrb[0].mxu0
        %v2507 = vadd.f32 0.0, %v2506
        %v2508 = vpop.f32.mrb[0].mxu0
        %v2509 = vpop.f32.mrb[0].mxu0
        %v2510 = vadd.f32 0.0, %v2509
        %v2511 = vpop.f32.mrb[0].mxu0
        %2512 = vmatprep.mubr.bf16.mxu0 %v2463
        %2513 = vmatmul.mubr.bf16.gmra.mrb[0].mxu0 %v2462
        %v2514 = vpop.f32.mrb[0].mxu0
        %v2515 = vadd.f32 0.0, %v2514
        %v2516 = vpop.f32.mrb[0].mxu0
        %v2517 = vpop.f32.mrb[0].mxu0
        %v2518 = vadd.f32 0.0, %v2517
        %v2519 = vpop.f32.mrb[0].mxu0
        %2520 = vmatprep.mubr.bf16.mxu0 %v2465
        %2521 = vmatmul.mubr.bf16.gmra.mrb[0].mxu0 %v2464
        %v2522 = vpop.f32.mrb[0].mxu0
        %v2523 = vadd.f32 0.0, %v2522
        %v2524 = vpop.f32.mrb[0].mxu0
        %v2525 = vpop.f32.mrb[0].mxu0
        %v2526 = vadd.f32 0.0, %v2525
        %v2527 = vpop.f32.mrb[0].mxu0
        %2528 = vmatprep.mubr.bf16.mxu0 %v2467
        %2529 = vmatmul.mubr.bf16.gmra.mrb[0].mxu0 %v2466
        %v2530 = vpop.f32.mrb[0].mxu0
        %v2531 = vadd.f32 0.0, %v2530
        %v2532 = vpop.f32.mrb[0].mxu0
        %v2533 = vpop.f32.mrb[0].mxu0
        %v2534 = vadd.f32 0.0, %v2533
        %v2535 = vpop.f32.mrb[0].mxu0
        %2536 = vdwg.mxu0
        %v2537 = vmul.f32 %v2507, 0.0625
        %v2538 = vmul.f32 %v2510, 0.0625
        %v2539 = vmul.f32 %v2515, 0.0625
        %v2540 = vmul.f32 %v2518, 0.0625
        %v2541 = vmul.f32 %v2523, 0.0625
        %v2542 = vmul.f32 %v2526, 0.0625
        %v2543 = vmul.f32 %v2531, 0.0625
        %v2544 = vmul.f32 %v2534, 0.0625
        %v2545 = vsel %vm1515, %v2537, -inf
        %2546 = vmax.xlane.f32.xlu0 %v2545
        %v2547 = vpop.xlane.xlu0 %2546
        %v2548 = vsel %vm1515, %v2538, -inf
        %2549 = vmax.xlane.f32.xlu0 %v2548
        %v2550 = vpop.xlane.xlu0 %2549
        %v2551 = vsel %vm1515, %v2539, -inf
        %2552 = vmax.xlane.f32.xlu0 %v2551
        %v2553 = vpop.xlane.xlu0 %2552
        %v2554 = vsel %vm1515, %v2540, -inf
        %2555 = vmax.xlane.f32.xlu0 %v2554
        %v2556 = vpop.xlane.xlu0 %2555
        %v2557 = vsel %vm1515, %v2541, -inf
        %2558 = vmax.xlane.f32.xlu0 %v2557
        %v2559 = vpop.xlane.xlu0 %2558
        %v2560 = vsel %vm1515, %v2542, -inf
        %2561 = vmax.xlane.f32.xlu0 %v2560
        %v2562 = vpop.xlane.xlu0 %2561
        %v2563 = vsel %vm1515, %v2543, -inf
        %2564 = vmax.xlane.f32.xlu0 %v2563
        %v2565 = vpop.xlane.xlu0 %2564
        %v2566 = vsel %vm1515, %v2544, -inf
        %2567 = vmax.xlane.f32.xlu0 %v2566
        %v2568 = vpop.xlane.xlu0 %2567
        %v2569 = vsub.f32 %v2537, %v2547
        %v2570 = vsub.f32 %v2538, %v2550
        %v2571 = vsub.f32 %v2539, %v2553
        %v2572 = vsub.f32 %v2540, %v2556
        %v2573 = vsub.f32 %v2541, %v2559
        %v2574 = vsub.f32 %v2542, %v2562
        %v2575 = vsub.f32 %v2543, %v2565
        %v2576 = vsub.f32 %v2544, %v2568
        %v2577 = vmul.f32 %v2569, 1.442695
        %v2578 = vpow.pop %v2577
        %v2579 = vmul.f32 %v2570, 1.442695
        %v2580 = vpow.pop %v2579
        %v2581 = vmul.f32 %v2571, 1.442695
        %v2582 = vpow.pop %v2581
        %v2583 = vmul.f32 %v2572, 1.442695
        %v2584 = vpow.pop %v2583
        %v2585 = vmul.f32 %v2573, 1.442695
        %v2586 = vpow.pop %v2585
        %v2587 = vmul.f32 %v2574, 1.442695
        %v2588 = vpow.pop %v2587
        %v2589 = vmul.f32 %v2575, 1.442695
        %v2590 = vpow.pop %v2589
        %v2591 = vmul.f32 %v2576, 1.442695
        %v2592 = vpow.pop %v2591
        %v2593 = vsel %vm1515, %v2578, 0.0
        %2594 = vadd.xlane.f32.xlu0 %v2593
        %v2595 = vpop.xlane.xlu0 %2594
        %v2596 = vsel %vm1515, %v2580, 0.0
        %2597 = vadd.xlane.f32.xlu0 %v2596
        %v2598 = vpop.xlane.xlu0 %2597
        %v2599 = vsel %vm1515, %v2582, 0.0
        %2600 = vadd.xlane.f32.xlu0 %v2599
        %v2601 = vpop.xlane.xlu0 %2600
        %v2602 = vsel %vm1515, %v2584, 0.0
        %2603 = vadd.xlane.f32.xlu0 %v2602
        %v2604 = vpop.xlane.xlu0 %2603
        %v2605 = vsel %vm1515, %v2586, 0.0
        %2606 = vadd.xlane.f32.xlu0 %v2605
        %v2607 = vpop.xlane.xlu0 %2606
        %v2608 = vsel %vm1515, %v2588, 0.0
        %2609 = vadd.xlane.f32.xlu0 %v2608
        %v2610 = vpop.xlane.xlu0 %2609
        %v2611 = vsel %vm1515, %v2590, 0.0
        %2612 = vadd.xlane.f32.xlu0 %v2611
        %v2613 = vpop.xlane.xlu0 %2612
        %v2614 = vsel %vm1515, %v2592, 0.0
        %2615 = vadd.xlane.f32.xlu0 %v2614
        %v2616 = vpop.xlane.xlu0 %2615
        %v2617 = vrcp.pop %v2595
        %v2618 = vmul.f32 %v2578, %v2617
        %v2619 = vrcp.pop %v2598
        %v2620 = vmul.f32 %v2580, %v2619
        %v2621 = vrcp.pop %v2601
        %v2622 = vmul.f32 %v2582, %v2621
        %v2623 = vrcp.pop %v2604
        %v2624 = vmul.f32 %v2584, %v2623
        %v2625 = vrcp.pop %v2607
        %v2626 = vmul.f32 %v2586, %v2625
        %v2627 = vrcp.pop %v2610
        %v2628 = vmul.f32 %v2588, %v2627
        %v2629 = vrcp.pop %v2613
        %v2630 = vmul.f32 %v2590, %v2629
        %v2631 = vrcp.pop %v2616
        %v2632 = vmul.f32 %v2592, %v2631
        %v2633 = vpack.c.bf16 %v2620, %v2618
        %v2634 = vpack.c.bf16 %v2624, %v2622
        %v2635 = vpack.c.bf16 %v2628, %v2626
        %v2636 = vpack.c.bf16 %v2632, %v2630
        %v2637 = vpack.c.bf16 %v2448, %v2444
        %v2638 = vpack.c.bf16 %v2450, %v2446
        %v2639 = vpack.c.bf16 %v2454, %v2454
        %v2640 = vpack.c.bf16 %v2456, %v2456
        %v2642 = vsel %vm1515, %v2633, 0
        %v2645 = vsel %vm1515, %v2634, 0
        %v2648 = vsel %vm1515, %v2635, 0
        %v2651 = vsel %vm1515, %v2636, 0
        %vm2653 = vcmask 1040384
        %v2654 = vsel 0, 4294967295, 65535
        %v2655 = vsel %vm2653, %v2654, 0
        %v2657 = vand.u32 %v2639, %v2655
        %v2660 = vand.u32 %v2640, %v2655
        %2662 = vmatprep.subr.bf16.mxu0 %v2638
        %2663 = vmatpush1.bf16.msra.mxu0 %v2637
        %2664 = vmatprep.subr.bf16.mxu0 %v2660
        %2665 = vmatpush1.bf16.msra.mxu0 %v2657
        %2666 = vmatprep.subr.bf16.mxu0 0
        %2667 = vmatpush1.bf16.msra.mxu0 0
        %2668 = vmatprep.subr.bf16.mxu0 0
        %2669 = vmatpush1.bf16.msra.mxu0 0
        %2670 = vmatprep.subr.bf16.mxu0 0
        %2671 = vmatpush1.bf16.msra.mxu0 0
        %2672 = vmatprep.subr.bf16.mxu0 0
        %2673 = vmatpush1.bf16.msra.mxu0 0
        %2674 = vmatprep.subr.bf16.mxu0 0
        %2675 = vmatpush1.bf16.msra.mxu0 0
        %2676 = vmatprep.subr.bf16.mxu0 0
        %2677 = vmatpush1.bf16.msra.mxu0 0
        %2678 = vmatprep.subr.bf16.mxu0 0
        %2679 = vmatpush1.bf16.msra.mxu0 0
        %2680 = vmatprep.subr.bf16.mxu0 0
        %2681 = vmatpush1.bf16.msra.mxu0 0
        %2682 = vmatprep.subr.bf16.mxu0 0
        %2683 = vmatpush1.bf16.msra.mxu0 0
        %2684 = vmatprep.subr.bf16.mxu0 0
        %2685 = vmatpush1.bf16.msra.mxu0 0
        %2686 = vmatprep.subr.bf16.mxu0 0
        %2687 = vmatpush1.bf16.msra.mxu0 0
        %2688 = vmatprep.subr.bf16.mxu0 0
        %2689 = vmatpush1.bf16.msra.mxu0 0
        %2690 = vmatprep.subr.bf16.mxu0 0
        %2691 = vmatpush1.bf16.msra.mxu0 0
        %2692 = vmatprep.subr.bf16.mxu0 0
        %2693 = vmatpush1.bf16.msra.mxu0 0
        %2694 = vmatprep.mubr.bf16.mxu0 0
        %2695 = vmatmul.mubr.bf16.gmra.mrb[0].mxu0 %v2642
        %v2696 = vpop.f32.mrb[0].mxu0
        %v2697 = vadd.f32 0.0, %v2696
        %v2698 = vpop.f32.mrb[0].mxu0
        %v2699 = vadd.f32 0.0, %v2698
        %v2700 = vpop.f32.mrb[0].mxu0
        %v2701 = vadd.f32 0.0, %v2700
        %v2702 = vpop.f32.mrb[0].mxu0
        %v2703 = vadd.f32 0.0, %v2702
        %2704 = vmatprep.mubr.bf16.mxu0 0
        %2705 = vmatmul.mubr.bf16.gmra.mrb[0].mxu0 %v2645
        %v2706 = vpop.f32.mrb[0].mxu0
        %v2707 = vadd.f32 0.0, %v2706
        %v2708 = vpop.f32.mrb[0].mxu0
        %v2709 = vadd.f32 0.0, %v2708
        %v2710 = vpop.f32.mrb[0].mxu0
        %v2711 = vadd.f32 0.0, %v2710
        %v2712 = vpop.f32.mrb[0].mxu0
        %v2713 = vadd.f32 0.0, %v2712
        %2714 = vmatprep.mubr.bf16.mxu0 0
        %2715 = vmatmul.mubr.bf16.gmra.mrb[0].mxu0 %v2648
        %v2716 = vpop.f32.mrb[0].mxu0
        %v2717 = vadd.f32 0.0, %v2716
        %v2718 = vpop.f32.mrb[0].mxu0
        %v2719 = vadd.f32 0.0, %v2718
        %v2720 = vpop.f32.mrb[0].mxu0
        %v2721 = vadd.f32 0.0, %v2720
        %v2722 = vpop.f32.mrb[0].mxu0
        %v2723 = vadd.f32 0.0, %v2722
        %2724 = vmatprep.mubr.bf16.mxu0 0
        %2725 = vmatmul.mubr.bf16.gmra.mrb[0].mxu0 %v2651
        %v2726 = vpop.f32.mrb[0].mxu0
        %v2727 = vadd.f32 0.0, %v2726
        %v2728 = vpop.f32.mrb[0].mxu0
        %v2729 = vadd.f32 0.0, %v2728
        %v2730 = vpop.f32.mrb[0].mxu0
        %v2731 = vadd.f32 0.0, %v2730
        %v2732 = vpop.f32.mrb[0].mxu0
        %v2733 = vadd.f32 0.0, %v2732
        %2734 = vdwg.mxu0
        %v2735 = vld [vmem:[#allocation23] sm:$0xff]
        %v2736 = vld [vmem:[#allocation23 + $0x8] sm:$0xff]
        %v2737 = vld [vmem:[#allocation23 + $0x10] sm:$0xff]
        %v2738 = vld [vmem:[#allocation23 + $0x18] sm:$0xff]
        %v2739 = vld [vmem:[#allocation23 + $0x20] sm:$0xff]
        %v2740 = vld [vmem:[#allocation23 + $0x28] sm:$0xff]
        %v2741 = vld [vmem:[#allocation23 + $0x30] sm:$0xff]
        %v2742 = vld [vmem:[#allocation23 + $0x38] sm:$0xff]
        %v2743 = vld [vmem:[#allocation23 + $0x40] sm:$0xff]
        %v2744 = vld [vmem:[#allocation23 + $0x48] sm:$0xff]
        %v2745 = vld [vmem:[#allocation23 + $0x50] sm:$0xff]
        %v2746 = vld [vmem:[#allocation23 + $0x58] sm:$0xff]
        %v2747 = vld [vmem:[#allocation23 + $0x60] sm:$0xff]
        %v2748 = vld [vmem:[#allocation23 + $0x68] sm:$0xff]
        %v2749 = vld [vmem:[#allocation23 + $0x70] sm:$0xff]
        %v2750 = vld [vmem:[#allocation23 + $0x78] sm:$0xff]
        %v2751 = vld [vmem:[#allocation23 + $0x80] sm:$0xff]
        %v2752 = vld [vmem:[#allocation23 + $0x88] sm:$0xff]
        %v2753 = vld [vmem:[#allocation23 + $0x90] sm:$0xff]
        %v2754 = vld [vmem:[#allocation23 + $0x98] sm:$0xff]
        %v2755 = vld [vmem:[#allocation23 + $0xa0] sm:$0xff]
        %v2756 = vld [vmem:[#allocation23 + $0xa8] sm:$0xff]
        %v2757 = vld [vmem:[#allocation23 + $0xb0] sm:$0xff]
        %v2758 = vld [vmem:[#allocation23 + $0xb8] sm:$0xff]
        %v2759 = vld [vmem:[#allocation23 + $0xc0] sm:$0xff]
        %v2760 = vld [vmem:[#allocation23 + $0xc8] sm:$0xff]
        %v2761 = vld [vmem:[#allocation23 + $0xd0] sm:$0xff]
        %v2762 = vld [vmem:[#allocation23 + $0xd8] sm:$0xff]
        %v2763 = vld [vmem:[#allocation23 + $0xe0] sm:$0xff]
        %v2764 = vld [vmem:[#allocation23 + $0xe8] sm:$0xff]
        %v2765 = vld [vmem:[#allocation23 + $0xf0] sm:$0xff]
        %v2766 = vld [vmem:[#allocation23 + $0xf8] sm:$0xff]
        %v2767 = vpack.c.bf16 %v2701, %v2697
        %v2768 = vpack.c.bf16 %v2703, %v2699
        %v2769 = vpack.c.bf16 %v2711, %v2707
        %v2770 = vpack.c.bf16 %v2713, %v2709
        %v2771 = vpack.c.bf16 %v2721, %v2717
        %v2772 = vpack.c.bf16 %v2723, %v2719
        %v2773 = vpack.c.bf16 %v2731, %v2727
        %v2774 = vpack.c.bf16 %v2733, %v2729
        %v2775 = vld [vmem:[#allocation25] sm:$0xff]
        %v2776 = vld [vmem:[#allocation25 + $0x8] sm:$0xff]
        %v2777 = vld [vmem:[#allocation25 + $0x10] sm:$0xff]
        %v2778 = vld [vmem:[#allocation25 + $0x18] sm:$0xff]
        %v2779 = vld [vmem:[#allocation25 + $0x20] sm:$0xff]
        %v2780 = vld [vmem:[#allocation25 + $0x28] sm:$0xff]
        %v2781 = vld [vmem:[#allocation25 + $0x30] sm:$0xff]
        %v2782 = vld [vmem:[#allocation25 + $0x38] sm:$0xff]
        %v2783 = vld [vmem:[#allocation25 + $0x40] sm:$0xff]
        %v2784 = vld [vmem:[#allocation25 + $0x48] sm:$0xff]
        %v2785 = vld [vmem:[#allocation25 + $0x50] sm:$0xff]
        %v2786 = vld [vmem:[#allocation25 + $0x58] sm:$0xff]
        %v2787 = vld [vmem:[#allocation25 + $0x60] sm:$0xff]
        %v2788 = vld [vmem:[#allocation25 + $0x68] sm:$0xff]
        %v2789 = vld [vmem:[#allocation25 + $0x70] sm:$0xff]
        %v2790 = vld [vmem:[#allocation25 + $0x78] sm:$0xff]
        %v2791 = vld [vmem:[#allocation25 + $0x80] sm:$0xff]
        %v2792 = vld [vmem:[#allocation25 + $0x88] sm:$0xff]
        %v2793 = vld [vmem:[#allocation25 + $0x90] sm:$0xff]
        %v2794 = vld [vmem:[#allocation25 + $0x98] sm:$0xff]
        %v2795 = vld [vmem:[#allocation25 + $0xa0] sm:$0xff]
        %v2796 = vld [vmem:[#allocation25 + $0xa8] sm:$0xff]
        %v2797 = vld [vmem:[#allocation25 + $0xb0] sm:$0xff]
        %v2798 = vld [vmem:[#allocation25 + $0xb8] sm:$0xff]
        %v2799 = vld [vmem:[#allocation25 + $0xc0] sm:$0xff]
        %v2800 = vld [vmem:[#allocation25 + $0xc8] sm:$0xff]
        %v2801 = vld [vmem:[#allocation25 + $0xd0] sm:$0xff]
        %v2802 = vld [vmem:[#allocation25 + $0xd8] sm:$0xff]
        %v2803 = vld [vmem:[#allocation25 + $0xe0] sm:$0xff]
        %v2804 = vld [vmem:[#allocation25 + $0xe8] sm:$0xff]
        %v2805 = vld [vmem:[#allocation25 + $0xf0] sm:$0xff]
        %v2806 = vld [vmem:[#allocation25 + $0xf8] sm:$0xff]
        %v2839 = vunpack.c.l.b16 %v2775
        %v2840 = vunpack.c.h.b16 %v2775
        %v2841 = vunpack.c.l.b16 %v2776
        %v2842 = vunpack.c.h.b16 %v2776
        %v2843 = vunpack.c.l.b16 %v2777
        %v2844 = vunpack.c.h.b16 %v2777
        %v2845 = vunpack.c.l.b16 %v2778
        %v2846 = vunpack.c.h.b16 %v2778
        %v2847 = vunpack.c.l.b16 %v2779
        %v2848 = vunpack.c.h.b16 %v2779
        %v2849 = vunpack.c.l.b16 %v2780
        %v2850 = vunpack.c.h.b16 %v2780
        %v2851 = vunpack.c.l.b16 %v2781
        %v2852 = vunpack.c.h.b16 %v2781
        %v2853 = vunpack.c.l.b16 %v2782
        %v2854 = vunpack.c.h.b16 %v2782
        %v2855 = vunpack.c.l.b16 %v2783
        %v2856 = vunpack.c.h.b16 %v2783
        %v2857 = vunpack.c.l.b16 %v2784
        %v2858 = vunpack.c.h.b16 %v2784
        %v2859 = vunpack.c.l.b16 %v2785
        %v2860 = vunpack.c.h.b16 %v2785
        %v2861 = vunpack.c.l.b16 %v2786
        %v2862 = vunpack.c.h.b16 %v2786
        %v2863 = vunpack.c.l.b16 %v2787
        %v2864 = vunpack.c.h.b16 %v2787
        %v2865 = vunpack.c.l.b16 %v2788
        %v2866 = vunpack.c.h.b16 %v2788
        %v2867 = vunpack.c.l.b16 %v2789
        %v2868 = vunpack.c.h.b16 %v2789
        %v2869 = vunpack.c.l.b16 %v2790
        %v2870 = vunpack.c.h.b16 %v2790
        %v2871 = vunpack.c.l.b16 %v2791
        %v2872 = vunpack.c.h.b16 %v2791
        %v2873 = vunpack.c.l.b16 %v2792
        %v2874 = vunpack.c.h.b16 %v2792
        %v2875 = vunpack.c.l.b16 %v2793
        %v2876 = vunpack.c.h.b16 %v2793
        %v2877 = vunpack.c.l.b16 %v2794
        %v2878 = vunpack.c.h.b16 %v2794
        %v2879 = vunpack.c.l.b16 %v2795
        %v2880 = vunpack.c.h.b16 %v2795
        %v2881 = vunpack.c.l.b16 %v2796
        %v2882 = vunpack.c.h.b16 %v2796
        %v2883 = vunpack.c.l.b16 %v2797
        %v2884 = vunpack.c.h.b16 %v2797
        %v2885 = vunpack.c.l.b16 %v2798
        %v2886 = vunpack.c.h.b16 %v2798
        %v2887 = vunpack.c.l.b16 %v2799
        %v2888 = vunpack.c.h.b16 %v2799
        %v2889 = vunpack.c.l.b16 %v2800
        %v2890 = vunpack.c.h.b16 %v2800
        %v2891 = vunpack.c.l.b16 %v2801
        %v2892 = vunpack.c.h.b16 %v2801
        %v2893 = vunpack.c.l.b16 %v2802
        %v2894 = vunpack.c.h.b16 %v2802
        %v2895 = vunpack.c.l.b16 %v2803
        %v2896 = vunpack.c.h.b16 %v2803
        %v2897 = vunpack.c.l.b16 %v2804
        %v2898 = vunpack.c.h.b16 %v2804
        %v2899 = vunpack.c.l.b16 %v2805
        %v2900 = vunpack.c.h.b16 %v2805
        %v2901 = vunpack.c.l.b16 %v2806
        %v2902 = vunpack.c.h.b16 %v2806
        %v2903 = vpack.c.b16 %v2841, %v2839
        %v2904 = vpack.c.b16 %v2842, %v2840
        %v2905 = vpack.c.b16 %v2845, %v2843
        %v2906 = vpack.c.b16 %v2846, %v2844
        %v2907 = vpack.c.b16 %v2849, %v2847
        %v2908 = vpack.c.b16 %v2850, %v2848
        %v2909 = vpack.c.b16 %v2853, %v2851
        %v2910 = vpack.c.b16 %v2854, %v2852
        %v2911 = vpack.c.b16 %v2857, %v2855
        %v2912 = vpack.c.b16 %v2858, %v2856
        %v2913 = vpack.c.b16 %v2861, %v2859
        %v2914 = vpack.c.b16 %v2862, %v2860
        %v2915 = vpack.c.b16 %v2865, %v2863
        %v2916 = vpack.c.b16 %v2866, %v2864
        %v2917 = vpack.c.b16 %v2869, %v2867
        %v2918 = vpack.c.b16 %v2870, %v2868
        %v2919 = vpack.c.b16 %v2873, %v2871
        %v2920 = vpack.c.b16 %v2874, %v2872
        %v2921 = vpack.c.b16 %v2877, %v2875
        %v2922 = vpack.c.b16 %v2878, %v2876
        %v2923 = vpack.c.b16 %v2881, %v2879
        %v2924 = vpack.c.b16 %v2882, %v2880
        %v2925 = vpack.c.b16 %v2885, %v2883
        %v2926 = vpack.c.b16 %v2886, %v2884
        %v2927 = vpack.c.b16 %v2889, %v2887
        %v2928 = vpack.c.b16 %v2890, %v2888
        %v2929 = vpack.c.b16 %v2893, %v2891
        %v2930 = vpack.c.b16 %v2894, %v2892
        %v2931 = vpack.c.b16 %v2897, %v2895
        %v2932 = vpack.c.b16 %v2898, %v2896
        %v2933 = vpack.c.b16 %v2901, %v2899
        %v2934 = vpack.c.b16 %v2902, %v2900
        %2967 = vmatprep.subr.bf16.mxu0 %v2904
        %2968 = vmatpush1.bf16.msra.mxu0 %v2903
        %2969 = vmatprep.subr.bf16.mxu0 %v2906
        %2970 = vmatpush1.bf16.msra.mxu0 %v2905
        %2971 = vmatprep.subr.bf16.mxu0 %v2908
        %2972 = vmatpush1.bf16.msra.mxu0 %v2907
        %2973 = vmatprep.subr.bf16.mxu0 %v2910
        %2974 = vmatpush1.bf16.msra.mxu0 %v2909
        %2975 = vmatprep.subr.bf16.mxu0 %v2912
        %2976 = vmatpush1.bf16.msra.mxu0 %v2911
        %2977 = vmatprep.subr.bf16.mxu0 %v2914
        %2978 = vmatpush1.bf16.msra.mxu0 %v2913
        %2979 = vmatprep.subr.bf16.mxu0 %v2916
        %2980 = vmatpush1.bf16.msra.mxu0 %v2915
        %2981 = vmatprep.subr.bf16.mxu0 %v2918
        %2982 = vmatpush1.bf16.msra.mxu0 %v2917
        %2983 = vmatprep.subr.bf16.mxu0 %v2920
        %2984 = vmatpush1.bf16.msra.mxu0 %v2919
        %2985 = vmatprep.subr.bf16.mxu0 %v2922
        %2986 = vmatpush1.bf16.msra.mxu0 %v2921
        %2987 = vmatprep.subr.bf16.mxu0 %v2924
        %2988 = vmatpush1.bf16.msra.mxu0 %v2923
        %2989 = vmatprep.subr.bf16.mxu0 %v2926
        %2990 = vmatpush1.bf16.msra.mxu0 %v2925
        %2991 = vmatprep.subr.bf16.mxu0 %v2928
        %2992 = vmatpush1.bf16.msra.mxu0 %v2927
        %2993 = vmatprep.subr.bf16.mxu0 %v2930
        %2994 = vmatpush1.bf16.msra.mxu0 %v2929
        %2995 = vmatprep.subr.bf16.mxu0 %v2932
        %2996 = vmatpush1.bf16.msra.mxu0 %v2931
        %2997 = vmatprep.subr.bf16.mxu0 %v2934
        %2998 = vmatpush1.bf16.msra.mxu0 %v2933
        %2999 = vmatprep.mubr.bf16.mxu0 %v2768
        %3000 = vmatmul.mubr.bf16.gmra.mrb[0].mxu0 %v2767
        %v3001 = vpop.f32.mrb[0].mxu0
        %v3002 = vadd.f32 0.0, %v3001
        %v3003 = vpop.f32.mrb[0].mxu0
        %v3004 = vadd.f32 0.0, %v3003
        %v3005 = vpop.f32.mrb[0].mxu0
        %v3006 = vadd.f32 0.0, %v3005
        %v3007 = vpop.f32.mrb[0].mxu0
        %v3008 = vadd.f32 0.0, %v3007
        %3009 = vmatprep.mubr.bf16.mxu0 %v2770
        %3010 = vmatmul.mubr.bf16.gmra.mrb[0].mxu0 %v2769
        %v3011 = vpop.f32.mrb[0].mxu0
        %v3012 = vadd.f32 0.0, %v3011
        %v3013 = vpop.f32.mrb[0].mxu0
        %v3014 = vadd.f32 0.0, %v3013
        %v3015 = vpop.f32.mrb[0].mxu0
        %v3016 = vadd.f32 0.0, %v3015
        %v3017 = vpop.f32.mrb[0].mxu0
        %v3018 = vadd.f32 0.0, %v3017
        %3019 = vmatprep.mubr.bf16.mxu0 %v2772
        %3020 = vmatmul.mubr.bf16.gmra.mrb[0].mxu0 %v2771
        %v3021 = vpop.f32.mrb[0].mxu0
        %v3022 = vadd.f32 0.0, %v3021
        %v3023 = vpop.f32.mrb[0].mxu0
        %v3024 = vadd.f32 0.0, %v3023
        %v3025 = vpop.f32.mrb[0].mxu0
        %v3026 = vadd.f32 0.0, %v3025
        %v3027 = vpop.f32.mrb[0].mxu0
        %v3028 = vadd.f32 0.0, %v3027
        %3029 = vmatprep.mubr.bf16.mxu0 %v2774
        %3030 = vmatmul.mubr.bf16.gmra.mrb[0].mxu0 %v2773
        %v3031 = vpop.f32.mrb[0].mxu0
        %v3032 = vadd.f32 0.0, %v3031
        %v3033 = vpop.f32.mrb[0].mxu0
        %v3034 = vadd.f32 0.0, %v3033
        %v3035 = vpop.f32.mrb[0].mxu0
        %v3036 = vadd.f32 0.0, %v3035
        %v3037 = vpop.f32.mrb[0].mxu0
        %v3038 = vadd.f32 0.0, %v3037
        %3039 = vdwg.mxu0
        %v3072 = vunpack.c.l.b16 %v2735
        %v3073 = vunpack.c.h.b16 %v2735
        %v3074 = vunpack.c.l.b16 %v2736
        %v3075 = vunpack.c.h.b16 %v2736
        %v3076 = vunpack.c.l.b16 %v2737
        %v3077 = vunpack.c.h.b16 %v2737
        %v3078 = vunpack.c.l.b16 %v2738
        %v3079 = vunpack.c.h.b16 %v2738
        %v3080 = vunpack.c.l.b16 %v2739
        %v3081 = vunpack.c.h.b16 %v2739
        %v3082 = vunpack.c.l.b16 %v2740
        %v3083 = vunpack.c.h.b16 %v2740
        %v3084 = vunpack.c.l.b16 %v2741
        %v3085 = vunpack.c.h.b16 %v2741
        %v3086 = vunpack.c.l.b16 %v2742
        %v3087 = vunpack.c.h.b16 %v2742
        %v3088 = vunpack.c.l.b16 %v2743
        %v3089 = vunpack.c.h.b16 %v2743
        %v3090 = vunpack.c.l.b16 %v2744
        %v3091 = vunpack.c.h.b16 %v2744
        %v3092 = vunpack.c.l.b16 %v2745
        %v3093 = vunpack.c.h.b16 %v2745
        %v3094 = vunpack.c.l.b16 %v2746
        %v3095 = vunpack.c.h.b16 %v2746
        %v3096 = vunpack.c.l.b16 %v2747
        %v3097 = vunpack.c.h.b16 %v2747
        %v3098 = vunpack.c.l.b16 %v2748
        %v3099 = vunpack.c.h.b16 %v2748
        %v3100 = vunpack.c.l.b16 %v2749
        %v3101 = vunpack.c.h.b16 %v2749
        %v3102 = vunpack.c.l.b16 %v2750
        %v3103 = vunpack.c.h.b16 %v2750
        %v3104 = vunpack.c.l.b16 %v2751
        %v3105 = vunpack.c.h.b16 %v2751
        %v3106 = vunpack.c.l.b16 %v2752
        %v3107 = vunpack.c.h.b16 %v2752
        %v3108 = vunpack.c.l.b16 %v2753
        %v3109 = vunpack.c.h.b16 %v2753
        %v3110 = vunpack.c.l.b16 %v2754
        %v3111 = vunpack.c.h.b16 %v2754
        %v3112 = vunpack.c.l.b16 %v2755
        %v3113 = vunpack.c.h.b16 %v2755
        %v3114 = vunpack.c.l.b16 %v2756
        %v3115 = vunpack.c.h.b16 %v2756
        %v3116 = vunpack.c.l.b16 %v2757
        %v3117 = vunpack.c.h.b16 %v2757
        %v3118 = vunpack.c.l.b16 %v2758
        %v3119 = vunpack.c.h.b16 %v2758
        %v3120 = vunpack.c.l.b16 %v2759
        %v3121 = vunpack.c.h.b16 %v2759
        %v3122 = vunpack.c.l.b16 %v2760
        %v3123 = vunpack.c.h.b16 %v2760
        %v3124 = vunpack.c.l.b16 %v2761
        %v3125 = vunpack.c.h.b16 %v2761
        %v3126 = vunpack.c.l.b16 %v2762
        %v3127 = vunpack.c.h.b16 %v2762
        %v3128 = vunpack.c.l.b16 %v2763
        %v3129 = vunpack.c.h.b16 %v2763
        %v3130 = vunpack.c.l.b16 %v2764
        %v3131 = vunpack.c.h.b16 %v2764
        %v3132 = vunpack.c.l.b16 %v2765
        %v3133 = vunpack.c.h.b16 %v2765
        %v3134 = vunpack.c.l.b16 %v2766
        %v3135 = vunpack.c.h.b16 %v2766
        %v3136 = vpack.c.b16 %v3074, %v3072
        %v3137 = vpack.c.b16 %v3075, %v3073
        %v3138 = vpack.c.b16 %v3078, %v3076
        %v3139 = vpack.c.b16 %v3079, %v3077
        %v3140 = vpack.c.b16 %v3082, %v3080
        %v3141 = vpack.c.b16 %v3083, %v3081
        %v3142 = vpack.c.b16 %v3086, %v3084
        %v3143 = vpack.c.b16 %v3087, %v3085
        %v3144 = vpack.c.b16 %v3090, %v3088
        %v3145 = vpack.c.b16 %v3091, %v3089
        %v3146 = vpack.c.b16 %v3094, %v3092
        %v3147 = vpack.c.b16 %v3095, %v3093
        %v3148 = vpack.c.b16 %v3098, %v3096
        %v3149 = vpack.c.b16 %v3099, %v3097
        %v3150 = vpack.c.b16 %v3102, %v3100
        %v3151 = vpack.c.b16 %v3103, %v3101
        %v3152 = vpack.c.b16 %v3106, %v3104
        %v3153 = vpack.c.b16 %v3107, %v3105
        %v3154 = vpack.c.b16 %v3110, %v3108
        %v3155 = vpack.c.b16 %v3111, %v3109
        %v3156 = vpack.c.b16 %v3114, %v3112
        %v3157 = vpack.c.b16 %v3115, %v3113
        %v3158 = vpack.c.b16 %v3118, %v3116
        %v3159 = vpack.c.b16 %v3119, %v3117
        %v3160 = vpack.c.b16 %v3122, %v3120
        %v3161 = vpack.c.b16 %v3123, %v3121
        %v3162 = vpack.c.b16 %v3126, %v3124
        %v3163 = vpack.c.b16 %v3127, %v3125
        %v3164 = vpack.c.b16 %v3130, %v3128
        %v3165 = vpack.c.b16 %v3131, %v3129
        %v3166 = vpack.c.b16 %v3134, %v3132
        %v3167 = vpack.c.b16 %v3135, %v3133
        %3200 = vmatprep.subr.bf16.mxu0 %v3137
        %3201 = vmatpush1.bf16.msra.mxu0 %v3136
        %3202 = vmatprep.subr.bf16.mxu0 %v3139
        %3203 = vmatpush1.bf16.msra.mxu0 %v3138
        %3204 = vmatprep.subr.bf16.mxu0 %v3141
        %3205 = vmatpush1.bf16.msra.mxu0 %v3140
        %3206 = vmatprep.subr.bf16.mxu0 %v3143
        %3207 = vmatpush1.bf16.msra.mxu0 %v3142
        %3208 = vmatprep.subr.bf16.mxu0 %v3145
        %3209 = vmatpush1.bf16.msra.mxu0 %v3144
        %3210 = vmatprep.subr.bf16.mxu0 %v3147
        %3211 = vmatpush1.bf16.msra.mxu0 %v3146
        %3212 = vmatprep.subr.bf16.mxu0 %v3149
        %3213 = vmatpush1.bf16.msra.mxu0 %v3148
        %3214 = vmatprep.subr.bf16.mxu0 %v3151
        %3215 = vmatpush1.bf16.msra.mxu0 %v3150
        %3216 = vmatprep.subr.bf16.mxu0 %v3153
        %3217 = vmatpush1.bf16.msra.mxu0 %v3152
        %3218 = vmatprep.subr.bf16.mxu0 %v3155
        %3219 = vmatpush1.bf16.msra.mxu0 %v3154
        %3220 = vmatprep.subr.bf16.mxu0 %v3157
        %3221 = vmatpush1.bf16.msra.mxu0 %v3156
        %3222 = vmatprep.subr.bf16.mxu0 %v3159
        %3223 = vmatpush1.bf16.msra.mxu0 %v3158
        %3224 = vmatprep.subr.bf16.mxu0 %v3161
        %3225 = vmatpush1.bf16.msra.mxu0 %v3160
        %3226 = vmatprep.subr.bf16.mxu0 %v3163
        %3227 = vmatpush1.bf16.msra.mxu0 %v3162
        %3228 = vmatprep.subr.bf16.mxu0 %v3165
        %3229 = vmatpush1.bf16.msra.mxu0 %v3164
        %3230 = vmatprep.subr.bf16.mxu0 %v3167
        %3231 = vmatpush1.bf16.msra.mxu0 %v3166
        %3232 = vmatprep.mubr.bf16.mxu0 %v1508
        %3233 = vmatmul.mubr.bf16.gmra.mrb[0].mxu0 %v1507
        %v3234 = vpop.f32.mrb[0].mxu0
        %v3235 = vadd.f32 %v3002, %v3234
        %v3236 = vpop.f32.mrb[0].mxu0
        %v3237 = vadd.f32 %v3004, %v3236
        %v3238 = vpop.f32.mrb[0].mxu0
        %v3239 = vadd.f32 %v3006, %v3238
        %v3240 = vpop.f32.mrb[0].mxu0
        %v3241 = vadd.f32 %v3008, %v3240
        %3242 = vmatprep.mubr.bf16.mxu0 %v1510
        %3243 = vmatmul.mubr.bf16.gmra.mrb[0].mxu0 %v1509
        %v3244 = vpop.f32.mrb[0].mxu0
        %v3245 = vadd.f32 %v3012, %v3244
        %v3246 = vpop.f32.mrb[0].mxu0
        %v3247 = vadd.f32 %v3014, %v3246
        %v3248 = vpop.f32.mrb[0].mxu0
        %v3249 = vadd.f32 %v3016, %v3248
        %v3250 = vpop.f32.mrb[0].mxu0
        %v3251 = vadd.f32 %v3018, %v3250
        %3252 = vmatprep.mubr.bf16.mxu0 %v1512
        %3253 = vmatmul.mubr.bf16.gmra.mrb[0].mxu0 %v1511
        %v3254 = vpop.f32.mrb[0].mxu0
        %v3255 = vadd.f32 %v3022, %v3254
        %v3256 = vpop.f32.mrb[0].mxu0
        %v3257 = vadd.f32 %v3024, %v3256
        %v3258 = vpop.f32.mrb[0].mxu0
        %v3259 = vadd.f32 %v3026, %v3258
        %v3260 = vpop.f32.mrb[0].mxu0
        %v3261 = vadd.f32 %v3028, %v3260
        %3262 = vmatprep.mubr.bf16.mxu0 %v1514
        %3263 = vmatmul.mubr.bf16.gmra.mrb[0].mxu0 %v1513
        %v3264 = vpop.f32.mrb[0].mxu0
        %v3265 = vadd.f32 %v3032, %v3264
        %v3266 = vpop.f32.mrb[0].mxu0
        %v3267 = vadd.f32 %v3034, %v3266
        %v3268 = vpop.f32.mrb[0].mxu0
        %v3269 = vadd.f32 %v3036, %v3268
        %v3270 = vpop.f32.mrb[0].mxu0
        %v3271 = vadd.f32 %v3038, %v3270
        %3272 = vdwg.mxu0
        %v3273 = vld [vmem:[#allocation26] sm:$0x3]
        %v3275 = vlaneseq
        %v3276 = vshrl.u32 %v3275, 7
        %v3277 = vsub.s32 0, %v3276
        %v3278 = vrot.slane %v3273, %v3277
        %v3279 = vlaneseq
        %v3280 = vshrl.u32 %v3279, 7
        %v3281 = vsub.s32 1, %v3280
        %v3282 = vrot.slane %v3273, %v3281
        %v3285 = vadd.f32 %v3235, %v3278
        %v3286 = vadd.f32 %v3237, %v3282
        %v3287 = vadd.f32 %v3239, %v3278
        %v3288 = vadd.f32 %v3241, %v3282
        %v3289 = vadd.f32 %v3245, %v3278
        %v3290 = vadd.f32 %v3247, %v3282
        %v3291 = vadd.f32 %v3249, %v3278
        %v3292 = vadd.f32 %v3251, %v3282
        %v3293 = vadd.f32 %v3255, %v3278
        %v3294 = vadd.f32 %v3257, %v3282
        %v3295 = vadd.f32 %v3259, %v3278
        %v3296 = vadd.f32 %v3261, %v3282
        %v3297 = vadd.f32 %v3265, %v3278
        %v3298 = vadd.f32 %v3267, %v3282
        %v3299 = vadd.f32 %v3269, %v3278
        %v3300 = vadd.f32 %v3271, %v3282
        %v3301 = vmax.f32 %v3285, 0.0
        %v3302 = vmax.f32 %v3286, 0.0
        %v3303 = vmax.f32 %v3287, 0.0
        %v3304 = vmax.f32 %v3288, 0.0
        %v3305 = vmax.f32 %v3289, 0.0
        %v3306 = vmax.f32 %v3290, 0.0
        %v3307 = vmax.f32 %v3291, 0.0
        %v3308 = vmax.f32 %v3292, 0.0
        %v3309 = vmax.f32 %v3293, 0.0
        %v3310 = vmax.f32 %v3294, 0.0
        %v3311 = vmax.f32 %v3295, 0.0
        %v3312 = vmax.f32 %v3296, 0.0
        %v3313 = vmax.f32 %v3297, 0.0
        %v3314 = vmax.f32 %v3298, 0.0
        %v3315 = vmax.f32 %v3299, 0.0
        %v3316 = vmax.f32 %v3300, 0.0
        %v3317 = vpack.c.bf16 %v3303, %v3301
        %v3318 = vpack.c.bf16 %v3304, %v3302
        %v3319 = vpack.c.bf16 %v3307, %v3305
        %v3320 = vpack.c.bf16 %v3308, %v3306
        %v3321 = vpack.c.bf16 %v3311, %v3309
        %v3322 = vpack.c.bf16 %v3312, %v3310
        %v3323 = vpack.c.bf16 %v3315, %v3313
        %v3324 = vpack.c.bf16 %v3316, %v3314
        %v3325 = vld [vmem:[#allocation28] sm:$0xf]
        %v3326 = vld [vmem:[#allocation28 + $0x4] sm:$0xf]
        %v3327 = vld [vmem:[#allocation28 + $0x8] sm:$0xf]
        %v3328 = vld [vmem:[#allocation28 + $0xc] sm:$0xf]
        %v3329 = vld [vmem:[#allocation28 + $0x10] sm:$0xf]
        %v3330 = vld [vmem:[#allocation28 + $0x14] sm:$0xf]
        %v3331 = vld [vmem:[#allocation28 + $0x18] sm:$0xf]
        %v3332 = vld [vmem:[#allocation28 + $0x1c] sm:$0xf]
        %v3333 = vld [vmem:[#allocation28 + $0x20] sm:$0xf]
        %v3334 = vld [vmem:[#allocation28 + $0x24] sm:$0xf]
        %v3335 = vld [vmem:[#allocation28 + $0x28] sm:$0xf]
        %v3336 = vld [vmem:[#allocation28 + $0x2c] sm:$0xf]
        %v3337 = vld [vmem:[#allocation28 + $0x30] sm:$0xf]
        %v3338 = vld [vmem:[#allocation28 + $0x34] sm:$0xf]
        %v3339 = vld [vmem:[#allocation28 + $0x38] sm:$0xf]
        %v3340 = vld [vmem:[#allocation28 + $0x3c] sm:$0xf]
        %v3341 = vld [vmem:[#allocation28 + $0x40] sm:$0xf]
        %v3342 = vld [vmem:[#allocation28 + $0x44] sm:$0xf]
        %v3343 = vld [vmem:[#allocation28 + $0x48] sm:$0xf]
        %v3344 = vld [vmem:[#allocation28 + $0x4c] sm:$0xf]
        %v3345 = vld [vmem:[#allocation28 + $0x50] sm:$0xf]
        %v3346 = vld [vmem:[#allocation28 + $0x54] sm:$0xf]
        %v3347 = vld [vmem:[#allocation28 + $0x58] sm:$0xf]
        %v3348 = vld [vmem:[#allocation28 + $0x5c] sm:$0xf]
        %v3349 = vld [vmem:[#allocation28 + $0x60] sm:$0xf]
        %v3350 = vld [vmem:[#allocation28 + $0x64] sm:$0xf]
        %v3351 = vld [vmem:[#allocation28 + $0x68] sm:$0xf]
        %v3352 = vld [vmem:[#allocation28 + $0x6c] sm:$0xf]
        %v3353 = vld [vmem:[#allocation28 + $0x70] sm:$0xf]
        %v3354 = vld [vmem:[#allocation28 + $0x74] sm:$0xf]
        %v3355 = vld [vmem:[#allocation28 + $0x78] sm:$0xf]
        %v3356 = vld [vmem:[#allocation28 + $0x7c] sm:$0xf]
        %v3357 = vld [vmem:[#allocation29] sm:$0x1]
        %v3359 = vlaneseq
        %v3360 = vshrl.u32 %v3359, 7
        %v3361 = vsub.s32 0, %v3360
        %v3362 = vrot.slane %v3357, %v3361
        %v3396 = vunpack.c.l.b16 %v3325
        %v3397 = vunpack.c.l.b16 %v3326
        %v3398 = vunpack.c.l.b16 %v3327
        %v3399 = vunpack.c.l.b16 %v3328
        %v3400 = vunpack.c.l.b16 %v3329
        %v3401 = vunpack.c.l.b16 %v3330
        %v3402 = vunpack.c.l.b16 %v3331
        %v3403 = vunpack.c.l.b16 %v3332
        %v3404 = vunpack.c.l.b16 %v3333
        %v3405 = vunpack.c.l.b16 %v3334
        %v3406 = vunpack.c.l.b16 %v3335
        %v3407 = vunpack.c.l.b16 %v3336
        %v3408 = vunpack.c.l.b16 %v3337
        %v3409 = vunpack.c.l.b16 %v3338
        %v3410 = vunpack.c.l.b16 %v3339
        %v3411 = vunpack.c.l.b16 %v3340
        %v3412 = vunpack.c.l.b16 %v3341
        %v3413 = vunpack.c.l.b16 %v3342
        %v3414 = vunpack.c.l.b16 %v3343
        %v3415 = vunpack.c.l.b16 %v3344
        %v3416 = vunpack.c.l.b16 %v3345
        %v3417 = vunpack.c.l.b16 %v3346
        %v3418 = vunpack.c.l.b16 %v3347
        %v3419 = vunpack.c.l.b16 %v3348
        %v3420 = vunpack.c.l.b16 %v3349
        %v3421 = vunpack.c.l.b16 %v3350
        %v3422 = vunpack.c.l.b16 %v3351
        %v3423 = vunpack.c.l.b16 %v3352
        %v3424 = vunpack.c.l.b16 %v3353
        %v3425 = vunpack.c.l.b16 %v3354
        %v3426 = vunpack.c.l.b16 %v3355
        %v3427 = vunpack.c.l.b16 %v3356
        %v3428 = vpack.c.b16 %v3397, %v3396
        %v3429 = vpack.c.b16 %v3399, %v3398
        %v3430 = vpack.c.b16 %v3401, %v3400
        %v3431 = vpack.c.b16 %v3403, %v3402
        %v3432 = vpack.c.b16 %v3405, %v3404
        %v3433 = vpack.c.b16 %v3407, %v3406
        %v3434 = vpack.c.b16 %v3409, %v3408
        %v3435 = vpack.c.b16 %v3411, %v3410
        %v3436 = vpack.c.b16 %v3413, %v3412
        %v3437 = vpack.c.b16 %v3415, %v3414
        %v3438 = vpack.c.b16 %v3417, %v3416
        %v3439 = vpack.c.b16 %v3419, %v3418
        %v3440 = vpack.c.b16 %v3421, %v3420
        %v3441 = vpack.c.b16 %v3423, %v3422
        %v3442 = vpack.c.b16 %v3425, %v3424
        %v3443 = vpack.c.b16 %v3427, %v3426
        %3460 = vmatprep.subr.bf16.mxu0 0
        %3461 = vmatpush1.bf16.msra.mxu0 %v3428
        %3462 = vmatprep.subr.bf16.mxu0 0
        %3463 = vmatpush1.bf16.msra.mxu0 %v3429
        %3464 = vmatprep.subr.bf16.mxu0 0
        %3465 = vmatpush1.bf16.msra.mxu0 %v3430
        %3466 = vmatprep.subr.bf16.mxu0 0
        %3467 = vmatpush1.bf16.msra.mxu0 %v3431
        %3468 = vmatprep.subr.bf16.mxu0 0
        %3469 = vmatpush1.bf16.msra.mxu0 %v3432
        %3470 = vmatprep.subr.bf16.mxu0 0
        %3471 = vmatpush1.bf16.msra.mxu0 %v3433
        %3472 = vmatprep.subr.bf16.mxu0 0
        %3473 = vmatpush1.bf16.msra.mxu0 %v3434
        %3474 = vmatprep.subr.bf16.mxu0 0
        %3475 = vmatpush1.bf16.msra.mxu0 %v3435
        %3476 = vmatprep.subr.bf16.mxu0 0
        %3477 = vmatpush1.bf16.msra.mxu0 %v3436
        %3478 = vmatprep.subr.bf16.mxu0 0
        %3479 = vmatpush1.bf16.msra.mxu0 %v3437
        %3480 = vmatprep.subr.bf16.mxu0 0
        %3481 = vmatpush1.bf16.msra.mxu0 %v3438
        %3482 = vmatprep.subr.bf16.mxu0 0
        %3483 = vmatpush1.bf16.msra.mxu0 %v3439
        %3484 = vmatprep.subr.bf16.mxu0 0
        %3485 = vmatpush1.bf16.msra.mxu0 %v3440
        %3486 = vmatprep.subr.bf16.mxu0 0
        %3487 = vmatpush1.bf16.msra.mxu0 %v3441
        %3488 = vmatprep.subr.bf16.mxu0 0
        %3489 = vmatpush1.bf16.msra.mxu0 %v3442
        %3490 = vmatprep.subr.bf16.mxu0 0
        %3491 = vmatpush1.bf16.msra.mxu0 %v3443
        %3492 = vmatprep.mubr.bf16.mxu0 %v3318
        %3493 = vmatmul.mubr.bf16.gmra.mrb[0].mxu0 %v3317
        %v3494 = vpop.f32.mrb[0].mxu0
        %v3495 = vadd.f32 %v3362, %v3494
        %v3496 = vpop.f32.mrb[0].mxu0
        %v3497 = vpop.f32.mrb[0].mxu0
        %v3498 = vadd.f32 %v3362, %v3497
        %v3499 = vpop.f32.mrb[0].mxu0
        %3500 = vmatprep.mubr.bf16.mxu0 %v3320
        %3501 = vmatmul.mubr.bf16.gmra.mrb[0].mxu0 %v3319
        %v3502 = vpop.f32.mrb[0].mxu0
        %v3503 = vadd.f32 %v3362, %v3502
        %v3504 = vpop.f32.mrb[0].mxu0
        %v3505 = vpop.f32.mrb[0].mxu0
        %v3506 = vadd.f32 %v3362, %v3505
        %v3507 = vpop.f32.mrb[0].mxu0
        %3508 = vmatprep.mubr.bf16.mxu0 %v3322
        %3509 = vmatmul.mubr.bf16.gmra.mrb[0].mxu0 %v3321
        %v3510 = vpop.f32.mrb[0].mxu0
        %v3511 = vadd.f32 %v3362, %v3510
        %v3512 = vpop.f32.mrb[0].mxu0
        %v3513 = vpop.f32.mrb[0].mxu0
        %v3514 = vadd.f32 %v3362, %v3513
        %v3515 = vpop.f32.mrb[0].mxu0
        %3516 = vmatprep.mubr.bf16.mxu0 %v3324
        %3517 = vmatmul.mubr.bf16.gmra.mrb[0].mxu0 %v3323
        %v3518 = vpop.f32.mrb[0].mxu0
        %v3519 = vadd.f32 %v3362, %v3518
        %v3520 = vpop.f32.mrb[0].mxu0
        %v3521 = vpop.f32.mrb[0].mxu0
        %v3522 = vadd.f32 %v3362, %v3521
        %v3523 = vpop.f32.mrb[0].mxu0
        %3524 = vdwg.mxu0
        %vm3525 = vcmask 261120
        %3526 = vst.msk [vmem:[%s822] sm:$0xff] %vm3525, %v3495
        %3527 = vst.msk [vmem:[%s822 + $0x8] sm:$0xff] %vm3525, %v3498
        %3528 = vst.msk [vmem:[%s822 + $0x10] sm:$0xff] %vm3525, %v3503
        %3529 = vst.msk [vmem:[%s822 + $0x18] sm:$0xff] %vm3525, %v3506
        %3530 = vst.msk [vmem:[%s822 + $0x20] sm:$0xff] %vm3525, %v3511
        %3531 = vst.msk [vmem:[%s822 + $0x28] sm:$0xff] %vm3525, %v3514
        %3532 = vst.msk [vmem:[%s822 + $0x30] sm:$0xff] %vm3525, %v3519
        %3533 = vst.msk [vmem:[%s822 + $0x38] sm:$0xff] %vm3525, %v3522
        %s3534 = sand.u32 %s435, 1
        %s3535 = scalar_lea.sflag [#allocation4], %s3534
        %s3536 = sand.u32 %s435, 1
        %s3537 = smul.addr %s3536, 64
        %s3538 = scalar_lea.vmem [#allocation31], %s3537
        // Predicated region
        $region165: #{forward.2} parent=91 // pred_check
          %p3539 = pneg %p445
        $region166: #{forward.2} parent=91 // pred_check_branch
          %3541 = sbr.rel (%p3539) target = $region168
        $region167: #{forward.2} parent=91 // pred_region
          %s3543 = ssub.s32 1024, 1024
          %3544 = vsyncadd %s3535, %s3543
          %s3545 = smul.addr %s44, 8
          %s3546 = smul.addr %s3545, 128
          %s3547 = scalar_lea.hbm %s18, %s3546
          %s3548 = sshll.u32 %s3538, 4
          %s3549 = int_to_ptr.vmem [resolvable:$true] %s3548
          %3554 = dma.vmem_to_hbm [thread:$0]  %s3549, 1024, %s3547, %s3535, 128, 128, 8
        $region168: #{forward.2} parent=91 // pred_fallthru
          _
      $region92: #{forward.2} parent=5 // pred_fallthru
        _
      %p3555 = scmp.le.s32.totalorder 2, %s39
      // Predicated region
      $region169: #{forward.2} parent=5 // pred_check
        %p3556 = pneg %p3555
      $region170: #{forward.2} parent=5 // pred_check_branch
        %3558 = sbr.rel (%p3556) target = $region172
      $region171: #{forward.2} parent=5 // pred_region
        %s3559 = ssub.s32 %s39, 2
        // Predicated region
        $region173: #{forward.2} parent=171 // pred_check
          %p3560 = pneg %p451
        $region174: #{forward.2} parent=171 // pred_check_branch
          %3562 = sbr.rel (%p3560) target = $region176
        $region175: #{forward.2} parent=171 // pred_region
          %s3563 = sand.u32 %s436, 1
          %s3564 = scalar_lea.sflag [#allocation4], %s3563
          %s3565 = sand.u32 %s436, 1
          %s3566 = smul.addr %s3565, 64
          %s3567 = scalar_lea.vmem [#allocation31], %s3566
          %3568 = dma.done %s3564, 1024
        $region176: #{forward.2} parent=171 // pred_fallthru
          _
      $region172: #{forward.2} parent=5 // pred_fallthru
        _
    $region6: #{forward.2} parent=1 // loop_footer
      %s43 = sadd.s32 1, %s39
    $region7: #{forward.2} parent=1 // loop_footer_branch
      %38 = sbr.rel target = $region3
    $region8: #{forward.2} parent=1 // loop_exit
      _
    %3569 = vsyncpa [#allocation3], 1
    %s3570 = scalar_lea.sflag [#allocation3], 1
    %3571 = vsyncpa %s3570, 1
    %3572 = vsyncpa [#allocation6], 1
    %3573 = vsyncpa [#allocation9], 1
    %3574 = vsyncpa [#allocation12], 1
    %3575 = vsyncpa [#allocation15], 1
    %3576 = vsyncpa [#allocation18], 1
    %3577 = vsyncpa [#allocation21], 1
    %3578 = vsyncpa [#allocation24], 1
    %3579 = vsyncpa [#allocation27], 1
    %3580 = vsyncpa [#allocation30], 1
    %3581 = vsyncpa [#allocation4], 1
    %s3582 = scalar_lea.sflag [#allocation4], 1
    %3583 = vsyncpa %s3582, 1

</llo_original>
